<compile_context>
chip_gen: v5e
topology: v5e:2x2
jax: 0.10.0
libtpu: 0.0.40
codegen_flags: <defaults>
</compile_context>

<pallas_src>
import functools

import jax
import jax.numpy as jnp
from jax.experimental import pallas as pl
from jax.experimental.pallas import tpu as pltpu


def _silu(v):
    # SiLU(x) = x * sigmoid(x); jax.nn.sigmoid lowers to lax.logistic (EUP path).
    return v * jax.nn.sigmoid(v)


def _autoencoder_kernel(x_ref,
                        w1e_ref, w2e_ref, w3e_ref,
                        w1d_ref, w2d_ref, w3d_ref,
                        bias_ref, out_ref,
                        *, bias_offsets):
    """One batch tile of the fused encoder+decoder forward pass.

    x_ref:   (TM, C*H*W) activation tile (f32 or bf16)
    w*_ref:  (fan_in, fan_out) bf16 weights (pre-transposed, latent padded to 128)
    bias_ref:(1, sum(fan_out)) f32 concatenated biases (lane-aligned offsets)
    out_ref: (TM, C*H*W) output tile (dtype = out_shape dtype)
    """
    def layer(h_bf16, w_ref, off, act):
        size = w_ref.shape[1]
        acc = jnp.dot(h_bf16, w_ref[...], preferred_element_type=jnp.float32)
        acc = acc + bias_ref[:, off:off + size]
        return act(acc)

    o1, o2, o3, o4, o5, o6 = bias_offsets

    x = x_ref[...].astype(jnp.bfloat16)
    # ---- encoder: (TM, C*H*W) -> 512 -> 256 -> latent_pad, SiLU after every layer
    h = layer(x, w1e_ref, o1, _silu).astype(jnp.bfloat16)
    h = layer(h, w2e_ref, o2, _silu).astype(jnp.bfloat16)
    z = layer(h, w3e_ref, o3, _silu).astype(jnp.bfloat16)
    # ---- decoder: latent_pad -> 128 -> 256 -> C*H*W, SiLU, SiLU, Tanh
    h = layer(z, w1d_ref, o4, _silu).astype(jnp.bfloat16)
    h = layer(h, w2d_ref, o5, _silu).astype(jnp.bfloat16)
    out_ref[...] = layer(h, w3d_ref, o6, jnp.tanh).astype(out_ref.dtype)


# ----------------------------------------------------------------------------- params
def _init_linear(key, fan_in, fan_out):
    # Deterministic init mimicking PyTorch Linear default: U(-1/sqrt(fan_in), 1/sqrt(fan_in)).
    kw, kb = jax.random.split(key)
    bound = 1.0 / float(fan_in) ** 0.5
    w = jax.random.uniform(kw, (fan_in, fan_out), jnp.float32, -bound, bound)
    b = jax.random.uniform(kb, (1, fan_out), jnp.float32, -bound, bound)
    return w, b


def make_params(key, latent_dim, shape, ch):
    d_in = ch * shape * shape
    dims = [
        (d_in, 512), (512, 256), (256, latent_dim),      # encoder fc1, fc2, fc3
        (latent_dim, 128), (128, 256), (256, d_in),      # decoder fc1, fc2, fc3
    ]
    keys = jax.random.split(key, len(dims))
    params = []
    for k, (fi, fo) in zip(keys, dims):
        params.extend(_init_linear(k, fi, fo))
    return params


def prepare_kernel_params(params, latent_dim):
    """Call ONCE and cache the result.  Pads the latent to a full 128-lane width,
    casts weights to bf16 and concatenates all biases into one f32 slab."""
    (w1e, b1e, w2e, b2e, w3e, b3e, w1d, b1d, w2d, b2d, w3d, b3d) = params

    lat_pad = ((latent_dim + 127) // 128) * 128
    extra = lat_pad - latent_dim
    if extra:
        w3e = jnp.pad(w3e, ((0, 0), (0, extra)))   # zero output columns
        b3e = jnp.pad(b3e, ((0, 0), (0, extra)))   # zero bias -> SiLU(0) = 0
        w1d = jnp.pad(w1d, ((0, extra), (0, 0)))   # zero contraction rows

    weights = tuple(w.astype(jnp.bfloat16) for w in (w1e, w2e, w3e, w1d, w2d, w3d))
    bias_cat = jnp.concatenate((b1e, b2e, b3e, b1d, b2d, b3d), axis=1).astype(jnp.float32)
    return weights, bias_cat


# ----------------------------------------------------------------------------- forward
def _round_up(n, m):
    return ((n + m - 1) // m) * m


def _choose_tile(b, tile_m):
    """Batch-tile size: single tile for tiny B, otherwise >= 2 tiles (v7x megacore),
    preferring a multiple of 8 that divides B exactly (no pad/slice HBM passes)."""
    if b <= 16:
        return b
    tm = min(tile_m, _round_up(pl.cdiv(b, 2), 8))
    probe = tm
    while probe > 8 and b % probe != 0:
        probe -= 8
    if b % probe == 0:
        return probe
    return tm   # ragged batch: caller pads (rare fallback)


@functools.partial(jax.jit, static_argnames=("shape", "ch", "tile_m", "out_dtype"))
def autoencoder_forward(x, prepared, *, shape, ch, tile_m=512, out_dtype=None):
    """x: (B, ch, shape, shape); prepared: output of prepare_kernel_params (reused
    across calls). Activations are streamed in x.dtype; output dtype defaults to it."""
    weights, bias_cat = prepared
    b = x.shape[0]
    d = ch * shape * shape
    out_dtype = x.dtype if out_dtype is None else out_dtype

    x_flat = x.reshape(b, d)                      # == torch.flatten(x, start_dim=1)

    # Bias offsets derive from the (static, padded) fan-out sizes -> lane-aligned.
    offsets, off = [], 0
    for w in weights:
        offsets.append(off)
        off += w.shape[1]

    tm = _choose_tile(b, tile_m)
    if b % tm != 0:
        # TODO(synk): ragged batch -> pad + slice costs two extra activation HBM
        # passes; only hit when no multiple-of-8 tile divides B.
        b_pad = pl.cdiv(b, tm) * tm
        x_in = jnp.pad(x_flat, ((0, b_pad - b), (0, 0)))
    else:
        x_in = x_flat
    rows = x_in.shape[0]
    grid = (rows // tm,)

    kernel = functools.partial(_autoencoder_kernel, bias_offsets=tuple(offsets))

    # Grid-invariant index_maps -> weights & bias slab resident in VMEM across batch
    # tiles; x / out tiles are double-buffered by the Pallas pipeline.
    weight_specs = [pl.BlockSpec(w.shape, lambda i: (0, 0)) for w in weights]
    bias_spec = pl.BlockSpec(bias_cat.shape, lambda i: (0, 0))

    macs = sum(w.shape[0] * w.shape[1] for w in weights)
    act_elems = sum(w.shape[1] for w in weights)          # one sigmoid/tanh per output elem
    weight_bytes = (sum(w.size * w.dtype.itemsize for w in weights)
                    + bias_cat.size * bias_cat.dtype.itemsize)
    io_bytes = rows * d * (x.dtype.itemsize + jnp.dtype(out_dtype).itemsize)
    cost = pl.CostEstimate(flops=2 * rows * macs,
                           transcendentals=rows * act_elems,
                           bytes_accessed=io_bytes + weight_bytes)

    out = pl.pallas_call(
        kernel,
        out_shape=jax.ShapeDtypeStruct((rows, d), out_dtype),
        grid=grid,
        in_specs=[pl.BlockSpec((tm, d), lambda i: (i, 0))] + weight_specs + [bias_spec],
        out_specs=pl.BlockSpec((tm, d), lambda i: (i, 0)),
        compiler_params=pltpu.CompilerParams(
            dimension_semantics=("parallel",),            # megacore sharding on v7x
            vmem_limit_bytes=32 * 1024 * 1024),           # v5e default is only 16 MiB
        cost_estimate=cost,
    )(x_in, *weights, bias_cat)

    if rows != b:
        out = out[:b]
    return out.reshape(b, ch, shape, shape)


# ----------------------------------------------------------------------------- references
def _reference_forward_f32(x, params, shape, ch):
    # Pure-JAX f32 reference matching the original PyTorch module semantics.
    (w1e, b1e, w2e, b2e, w3e, b3e, w1d, b1d, w2d, b2d, w3d, b3d) = params
    b = x.shape[0]
    h = x.reshape(b, -1).astype(jnp.float32)
    silu = lambda v: v * jax.nn.sigmoid(v)
    h = silu(h @ w1e + b1e)
    h = silu(h @ w2e + b2e)
    z = silu(h @ w3e + b3e)
    h = silu(z @ w1d + b1d)
    h = silu(h @ w2d + b2d)
    o = jnp.tanh(h @ w3d + b3d)
    return o.reshape(b, ch, shape, shape)


def _reference_forward_bf16(x, params, shape, ch):
    # Pure-JAX reference using the same bf16-weights / f32-accumulate numerics as the kernel.
    (w1e, b1e, w2e, b2e, w3e, b3e, w1d, b1d, w2d, b2d, w3d, b3d) = params
    b = x.shape[0]
    silu = lambda v: v * jax.nn.sigmoid(v)

    def layer(h, w, bias, act):
        acc = jnp.dot(h, w.astype(jnp.bfloat16), preferred_element_type=jnp.float32)
        return act(acc + bias)

    h = x.reshape(b, -1).astype(jnp.bfloat16)
    h = layer(h, w1e, b1e, silu).astype(jnp.bfloat16)
    h = layer(h, w2e, b2e, silu).astype(jnp.bfloat16)
    z = layer(h, w3e, b3e, silu).astype(jnp.bfloat16)
    h = layer(z, w1d, b1d, silu).astype(jnp.bfloat16)
    h = layer(h, w2d, b2d, silu).astype(jnp.bfloat16)
    o = layer(h, w3d, b3d, jnp.tanh)
    return o.reshape(b, ch, shape, shape)


if __name__ == "__main__":
    latent_dim, shape, ch = 32, 16, 4

    key = jax.random.PRNGKey(0)
    k_x, k_p, k_xb = jax.random.split(key, 3)
    params = make_params(k_p, latent_dim, shape, ch)

    # Weight prep happens ONCE; `prepared` is reused by every forward call.
    prepared = prepare_kernel_params(params, latent_dim)

    # --- small batch, f32 activations (matches the PyTorch module's I/O dtype) ---
    batch = 2
    x = jax.random.normal(k_x, (batch, ch, shape, shape), jnp.float32)
    out = autoencoder_forward(x, prepared, shape=shape, ch=ch)
    out = jax.block_until_ready(out)
    assert out.shape == (batch, ch, shape, shape)
    assert out.dtype == jnp.float32

    ref_bf16 = _reference_forward_bf16(x, params, shape, ch)
    assert jnp.allclose(out, ref_bf16, atol=2e-3, rtol=2e-3), \
        "mismatch vs bf16-matched pure-JAX reference"
    ref_f32 = _reference_forward_f32(x, params, shape, ch)
    assert jnp.allclose(out, ref_f32, atol=1e-1), \
        "mismatch vs f32 pure-JAX reference"

    # --- larger batch, bf16-streamed activations (>=2 tiles -> v7x megacore path) ---
    big = 512
    xb = jax.random.normal(k_xb, (big, ch, shape, shape), jnp.float32)
    out_b = autoencoder_forward(xb.astype(jnp.bfloat16), prepared, shape=shape, ch=ch)
    out_b = jax.block_until_ready(out_b)
    assert out_b.shape == (big, ch, shape, shape)
    assert out_b.dtype == jnp.bfloat16
    ref_b = _reference_forward_bf16(xb.astype(jnp.bfloat16), params, shape, ch)
    assert jnp.allclose(out_b.astype(jnp.float32), ref_b, atol=2e-2, rtol=2e-2), \
        "mismatch vs bf16-matched reference (bf16-streamed path)"

    print("KERNEL_OK")
</pallas_src>

<mosaic_0001>
module attributes {stable_mosaic.version = 11 : i64} {
  func.func @_autoencoder_kernel(%arg0: i32, %arg1: memref<2x1024xf32, #tpu.memory_space<vmem>>, %arg2: memref<1024x512xbf16, #tpu.memory_space<vmem>>, %arg3: memref<512x256xbf16, #tpu.memory_space<vmem>>, %arg4: memref<256x128xbf16, #tpu.memory_space<vmem>>, %arg5: memref<128x128xbf16, #tpu.memory_space<vmem>>, %arg6: memref<128x256xbf16, #tpu.memory_space<vmem>>, %arg7: memref<256x1024xbf16, #tpu.memory_space<vmem>>, %arg8: memref<1x2304xf32, #tpu.memory_space<vmem>>, %arg9: memref<2x1024xf32, #tpu.memory_space<vmem>>) attributes {dimension_semantics = [#tpu.dimension_semantics<parallel>], iteration_bounds = array<i64: 1>, scalar_prefetch = 0 : i64, scratch_operands = 0 : i64, tpu.core_type = #tpu.core_type<tc>, window_params = [{transform_indices = @transform_0, window_bounds = array<i64: 2, 1024>}, {pipeline_mode = #tpu.pipeline_mode<synchronous>, transform_indices = @transform_1, window_bounds = array<i64: 1024, 512>}, {pipeline_mode = #tpu.pipeline_mode<synchronous>, transform_indices = @transform_2, window_bounds = array<i64: 512, 256>}, {pipeline_mode = #tpu.pipeline_mode<synchronous>, transform_indices = @transform_3, window_bounds = array<i64: 256, 128>}, {pipeline_mode = #tpu.pipeline_mode<synchronous>, transform_indices = @transform_4, window_bounds = array<i64: 128, 128>}, {pipeline_mode = #tpu.pipeline_mode<synchronous>, transform_indices = @transform_5, window_bounds = array<i64: 128, 256>}, {pipeline_mode = #tpu.pipeline_mode<synchronous>, transform_indices = @transform_6, window_bounds = array<i64: 256, 1024>}, {pipeline_mode = #tpu.pipeline_mode<synchronous>, transform_indices = @transform_7, window_bounds = array<i64: 1, 2304>}, {transform_indices = @transform_8, window_bounds = array<i64: 2, 1024>}]} {
    %c0 = arith.constant 0 : index
    %c0_0 = arith.constant 0 : index
    %0 = vector.load %arg1[%c0, %c0_0] : memref<2x1024xf32, #tpu.memory_space<vmem>>, vector<2x1024xf32>
    %1 = arith.truncf %0 : vector<2x1024xf32> to vector<2x1024xbf16>
    %c0_1 = arith.constant 0 : index
    %c0_2 = arith.constant 0 : index
    %2 = vector.load %arg2[%c0_1, %c0_2] : memref<1024x512xbf16, #tpu.memory_space<vmem>>, vector<1024x512xbf16>
    %cst = arith.constant dense<0.000000e+00> : vector<2x512xf32>
    %3 = tpu.matmul %1, %2, %cst {dimension_numbers = #tpu.dot_dimension_numbers<[1], [0], [0], [1], [0, 0, 1, 1], [], []>} : vector<2x1024xbf16>, vector<1024x512xbf16>, vector<2x512xf32> -> vector<2x512xf32>
    %c0_3 = arith.constant 0 : index
    %c0_4 = arith.constant 0 : index
    %4 = vector.load %arg8[%c0_3, %c0_4] : memref<1x2304xf32, #tpu.memory_space<vmem>>, vector<1x512xf32>
    %5 = vector.broadcast %4 : vector<1x512xf32> to vector<2x512xf32>
    %6 = arith.addf %3, %5 : vector<2x512xf32>
    %7 = arith.negf %6 : vector<2x512xf32>
    %8 = math.exp %7 : vector<2x512xf32>
    %cst_5 = arith.constant 1.000000e+00 : f32
    %9 = vector.broadcast %cst_5 : f32 to vector<2x512xf32>
    %10 = arith.addf %9, %8 : vector<2x512xf32>
    %11 = arith.divf %9, %10 : vector<2x512xf32>
    %12 = arith.mulf %6, %11 : vector<2x512xf32>
    %13 = arith.truncf %12 : vector<2x512xf32> to vector<2x512xbf16>
    %c0_6 = arith.constant 0 : index
    %c0_7 = arith.constant 0 : index
    %14 = vector.load %arg3[%c0_6, %c0_7] : memref<512x256xbf16, #tpu.memory_space<vmem>>, vector<512x256xbf16>
    %cst_8 = arith.constant dense<0.000000e+00> : vector<2x256xf32>
    %15 = tpu.matmul %13, %14, %cst_8 {dimension_numbers = #tpu.dot_dimension_numbers<[1], [0], [0], [1], [0, 0, 1, 1], [], []>} : vector<2x512xbf16>, vector<512x256xbf16>, vector<2x256xf32> -> vector<2x256xf32>
    %c0_9 = arith.constant 0 : index
    %c512 = arith.constant 512 : index
    %16 = vector.load %arg8[%c0_9, %c512] : memref<1x2304xf32, #tpu.memory_space<vmem>>, vector<1x256xf32>
    %17 = vector.broadcast %16 : vector<1x256xf32> to vector<2x256xf32>
    %18 = arith.addf %15, %17 : vector<2x256xf32>
    %19 = arith.negf %18 : vector<2x256xf32>
    %20 = math.exp %19 : vector<2x256xf32>
    %cst_10 = arith.constant 1.000000e+00 : f32
    %21 = vector.broadcast %cst_10 : f32 to vector<2x256xf32>
    %22 = arith.addf %21, %20 : vector<2x256xf32>
    %23 = arith.divf %21, %22 : vector<2x256xf32>
    %24 = arith.mulf %18, %23 : vector<2x256xf32>
    %25 = arith.truncf %24 : vector<2x256xf32> to vector<2x256xbf16>
    %c0_11 = arith.constant 0 : index
    %c0_12 = arith.constant 0 : index
    %26 = vector.load %arg4[%c0_11, %c0_12] : memref<256x128xbf16, #tpu.memory_space<vmem>>, vector<256x128xbf16>
    %cst_13 = arith.constant dense<0.000000e+00> : vector<2x128xf32>
    %27 = tpu.matmul %25, %26, %cst_13 {dimension_numbers = #tpu.dot_dimension_numbers<[1], [0], [0], [1], [0, 0, 1, 1], [], []>} : vector<2x256xbf16>, vector<256x128xbf16>, vector<2x128xf32> -> vector<2x128xf32>
    %c0_14 = arith.constant 0 : index
    %c768 = arith.constant 768 : index
    %28 = vector.load %arg8[%c0_14, %c768] : memref<1x2304xf32, #tpu.memory_space<vmem>>, vector<1x128xf32>
    %29 = vector.broadcast %28 : vector<1x128xf32> to vector<2x128xf32>
    %30 = arith.addf %27, %29 : vector<2x128xf32>
    %31 = arith.negf %30 : vector<2x128xf32>
    %32 = math.exp %31 : vector<2x128xf32>
    %cst_15 = arith.constant 1.000000e+00 : f32
    %33 = vector.broadcast %cst_15 : f32 to vector<2x128xf32>
    %34 = arith.addf %33, %32 : vector<2x128xf32>
    %35 = arith.divf %33, %34 : vector<2x128xf32>
    %36 = arith.mulf %30, %35 : vector<2x128xf32>
    %37 = arith.truncf %36 : vector<2x128xf32> to vector<2x128xbf16>
    %c0_16 = arith.constant 0 : index
    %c0_17 = arith.constant 0 : index
    %38 = vector.load %arg5[%c0_16, %c0_17] : memref<128x128xbf16, #tpu.memory_space<vmem>>, vector<128x128xbf16>
    %cst_18 = arith.constant dense<0.000000e+00> : vector<2x128xf32>
    %39 = tpu.matmul %37, %38, %cst_18 {dimension_numbers = #tpu.dot_dimension_numbers<[1], [0], [0], [1], [0, 0, 1, 1], [], []>} : vector<2x128xbf16>, vector<128x128xbf16>, vector<2x128xf32> -> vector<2x128xf32>
    %c0_19 = arith.constant 0 : index
    %c896 = arith.constant 896 : index
    %40 = vector.load %arg8[%c0_19, %c896] : memref<1x2304xf32, #tpu.memory_space<vmem>>, vector<1x128xf32>
    %41 = vector.broadcast %40 : vector<1x128xf32> to vector<2x128xf32>
    %42 = arith.addf %39, %41 : vector<2x128xf32>
    %43 = arith.negf %42 : vector<2x128xf32>
    %44 = math.exp %43 : vector<2x128xf32>
    %cst_20 = arith.constant 1.000000e+00 : f32
    %45 = vector.broadcast %cst_20 : f32 to vector<2x128xf32>
    %46 = arith.addf %45, %44 : vector<2x128xf32>
    %47 = arith.divf %45, %46 : vector<2x128xf32>
    %48 = arith.mulf %42, %47 : vector<2x128xf32>
    %49 = arith.truncf %48 : vector<2x128xf32> to vector<2x128xbf16>
    %c0_21 = arith.constant 0 : index
    %c0_22 = arith.constant 0 : index
    %50 = vector.load %arg6[%c0_21, %c0_22] : memref<128x256xbf16, #tpu.memory_space<vmem>>, vector<128x256xbf16>
    %cst_23 = arith.constant dense<0.000000e+00> : vector<2x256xf32>
    %51 = tpu.matmul %49, %50, %cst_23 {dimension_numbers = #tpu.dot_dimension_numbers<[1], [0], [0], [1], [0, 0, 1, 1], [], []>} : vector<2x128xbf16>, vector<128x256xbf16>, vector<2x256xf32> -> vector<2x256xf32>
    %c0_24 = arith.constant 0 : index
    %c1024 = arith.constant 1024 : index
    %52 = vector.load %arg8[%c0_24, %c1024] : memref<1x2304xf32, #tpu.memory_space<vmem>>, vector<1x256xf32>
    %53 = vector.broadcast %52 : vector<1x256xf32> to vector<2x256xf32>
    %54 = arith.addf %51, %53 : vector<2x256xf32>
    %55 = arith.negf %54 : vector<2x256xf32>
    %56 = math.exp %55 : vector<2x256xf32>
    %cst_25 = arith.constant 1.000000e+00 : f32
    %57 = vector.broadcast %cst_25 : f32 to vector<2x256xf32>
    %58 = arith.addf %57, %56 : vector<2x256xf32>
    %59 = arith.divf %57, %58 : vector<2x256xf32>
    %60 = arith.mulf %54, %59 : vector<2x256xf32>
    %61 = arith.truncf %60 : vector<2x256xf32> to vector<2x256xbf16>
    %c0_26 = arith.constant 0 : index
    %c0_27 = arith.constant 0 : index
    %62 = vector.load %arg7[%c0_26, %c0_27] : memref<256x1024xbf16, #tpu.memory_space<vmem>>, vector<256x1024xbf16>
    %cst_28 = arith.constant dense<0.000000e+00> : vector<2x1024xf32>
    %63 = tpu.matmul %61, %62, %cst_28 {dimension_numbers = #tpu.dot_dimension_numbers<[1], [0], [0], [1], [0, 0, 1, 1], [], []>} : vector<2x256xbf16>, vector<256x1024xbf16>, vector<2x1024xf32> -> vector<2x1024xf32>
    %c0_29 = arith.constant 0 : index
    %c1280 = arith.constant 1280 : index
    %64 = vector.load %arg8[%c0_29, %c1280] : memref<1x2304xf32, #tpu.memory_space<vmem>>, vector<1x1024xf32>
    %65 = vector.broadcast %64 : vector<1x1024xf32> to vector<2x1024xf32>
    %66 = arith.addf %63, %65 : vector<2x1024xf32>
    %67 = math.tanh %66 : vector<2x1024xf32>
    %c0_30 = arith.constant 0 : index
    %c0_31 = arith.constant 0 : index
    %68 = vector.load %arg9[%c0_30, %c0_31] : memref<2x1024xf32, #tpu.memory_space<vmem>>, vector<2x1024xf32>
    tpu.vector_store %arg9[%c0_30, %c0_31], %67 {strides = array<i32>} : memref<2x1024xf32, #tpu.memory_space<vmem>>, vector<2x1024xf32>,
    return
  }
  func.func @transform_0(%arg0: i32) -> (i32, i32) {
    %c0_i32 = arith.constant 0 : i32
    %c0_i32_0 = arith.constant 0 : i32
    return %arg0, %c0_i32 : i32, i32
  }
  func.func @transform_1(%arg0: i32) -> (i32, i32) {
    %c0_i32 = arith.constant 0 : i32
    %c0_i32_0 = arith.constant 0 : i32
    %c0_i32_1 = arith.constant 0 : i32
    return %c0_i32, %c0_i32_0 : i32, i32
  }
  func.func @transform_2(%arg0: i32) -> (i32, i32) {
    %c0_i32 = arith.constant 0 : i32
    %c0_i32_0 = arith.constant 0 : i32
    %c0_i32_1 = arith.constant 0 : i32
    return %c0_i32, %c0_i32_0 : i32, i32
  }
  func.func @transform_3(%arg0: i32) -> (i32, i32) {
    %c0_i32 = arith.constant 0 : i32
    %c0_i32_0 = arith.constant 0 : i32
    %c0_i32_1 = arith.constant 0 : i32
    return %c0_i32, %c0_i32_0 : i32, i32
  }
  func.func @transform_4(%arg0: i32) -> (i32, i32) {
    %c0_i32 = arith.constant 0 : i32
    %c0_i32_0 = arith.constant 0 : i32
    %c0_i32_1 = arith.constant 0 : i32
    return %c0_i32, %c0_i32_0 : i32, i32
  }
  func.func @transform_5(%arg0: i32) -> (i32, i32) {
    %c0_i32 = arith.constant 0 : i32
    %c0_i32_0 = arith.constant 0 : i32
    %c0_i32_1 = arith.constant 0 : i32
    return %c0_i32, %c0_i32_0 : i32, i32
  }
  func.func @transform_6(%arg0: i32) -> (i32, i32) {
    %c0_i32 = arith.constant 0 : i32
    %c0_i32_0 = arith.constant 0 : i32
    %c0_i32_1 = arith.constant 0 : i32
    return %c0_i32, %c0_i32_0 : i32, i32
  }
  func.func @transform_7(%arg0: i32) -> (i32, i32) {
    %c0_i32 = arith.constant 0 : i32
    %c0_i32_0 = arith.constant 0 : i32
    %c0_i32_1 = arith.constant 0 : i32
    return %c0_i32, %c0_i32_0 : i32, i32
  }
  func.func @transform_8(%arg0: i32) -> (i32, i32) {
    %c0_i32 = arith.constant 0 : i32
    %c0_i32_0 = arith.constant 0 : i32
    return %arg0, %c0_i32 : i32, i32
  }
}

</mosaic_0001>

<llo_original>
// kernel: autoencoder_forward.1
$region0: #{autoencoder_forward.1}
  #allocation0 [shape = 'u32[]', space=smem, size = 0x4, offset = 0x4, fixed_abs, tag = 'smem constant byte address 0x4 - core index']
  #allocation1 [shape = 'u32[72,128]{1,0:T(1,128)}', space=vmem, size = 0x9000, scoped, tag = 'internal scratch']
  %s0 = inlined_call_operand.vmem [shape: f32[2,1024], index: 0, kind: input, shape index: {}]
  %s1 = inlined_call_operand.hbm [shape: bf16[1024,512], index: 1, kind: input, shape index: {}]
  %s2 = inlined_call_operand.hbm [shape: bf16[512,256], index: 2, kind: input, shape index: {}]
  %s3 = inlined_call_operand.vmem [shape: bf16[256,128], index: 3, kind: input, shape index: {}]
  %s4 = inlined_call_operand.hbm [shape: bf16[128,128], index: 4, kind: input, shape index: {}]
  %s5 = inlined_call_operand.hbm [shape: bf16[128,256], index: 5, kind: input, shape index: {}]
  %s6 = inlined_call_operand.hbm [shape: bf16[256,1024], index: 6, kind: input, shape index: {}]
  %s7 = inlined_call_operand.vmem [shape: f32[1,2304], index: 7, kind: input, shape index: {}]
  %s8 = inlined_call_operand.vmem [shape: f32[2,1024], index: 8, kind: output, shape index: {}]
  %s9 = sld [smem:[#allocation0]]
  $region62: #{autoencoder_forward.1} parent=0
    _
  %s11 = ssub.s32 1, %s9
  %s12 = scalar_select 0, %s11, %s9
  $region1: #{autoencoder_forward.1} parent=0
    #allocation2 [shape = 'u8[1048576]{0}', space=vmem, size = 0x100000, scoped, tag = 'input window, operand 1, single buffered']
    #allocation3 [shape = 's32[1]{0}', space=sflag, size = 0x4, scoped, tag = 'scoped memory for autoencoder_forward.1']
    #allocation4 [shape = 'u8[262144]{0}', space=vmem, size = 0x40000, scoped, tag = 'input window, operand 2, single buffered']
    #allocation5 [shape = 's32[1]{0}', space=sflag, size = 0x4, scoped, tag = 'scoped memory for autoencoder_forward.1']
    #allocation6 [shape = 'u8[32768]{0}', space=vmem, size = 0x8000, scoped, tag = 'input window, operand 4, single buffered']
    #allocation7 [shape = 'u8[65536]{0}', space=vmem, size = 0x10000, scoped, tag = 'input window, operand 5, single buffered']
    #allocation8 [shape = 's32[1]{0}', space=sflag, size = 0x4, scoped, tag = 'scoped memory for autoencoder_forward.1']
    #allocation9 [shape = 'u8[524288]{0}', space=vmem, size = 0x80000, scoped, tag = 'input window, operand 6, single buffered']
    %13 = vsyncpa [#allocation3], 0
    %14 = vsyncpa [#allocation5], 0
    %15 = vsyncpa [#allocation8], 0
    // Predicated region
    $region2: #{autoencoder_forward.1} parent=1 // pred_check
      _
    $region3: #{autoencoder_forward.1} parent=1 // pred_check_branch
      %17 = sbr.rel (0) target = $region5
    $region4: #{autoencoder_forward.1} parent=1 // pred_region
      _
    $region5: #{autoencoder_forward.1} parent=1 // pred_fallthru
      _
    // Predicated region
    $region6: #{autoencoder_forward.1} parent=1 // pred_check
      _
    $region7: #{autoencoder_forward.1} parent=1 // pred_check_branch
      %19 = sbr.rel (0) target = $region9
    $region8: #{autoencoder_forward.1} parent=1 // pred_region
      %21 = vsyncadd [#allocation3], 0
      %s22 = sshll.u32 %s1, 4
      %s23 = int_to_ptr.hbm [resolvable:$true] %s22
      %s24 = sshll.u32 [#allocation2], 4
      %s25 = int_to_ptr.vmem [resolvable:$true] %s24
      %30 = dma.hbm_to_vmem [thread:$0]  %s23, 32768, %s25, [#allocation3], 256, 256, 16
    $region9: #{autoencoder_forward.1} parent=1 // pred_fallthru
      _
    // Predicated region
    $region10: #{autoencoder_forward.1} parent=1 // pred_check
      _
    $region11: #{autoencoder_forward.1} parent=1 // pred_check_branch
      %32 = sbr.rel (0) target = $region13
    $region12: #{autoencoder_forward.1} parent=1 // pred_region
      %34 = vsyncadd [#allocation5], 0
      %s35 = sshll.u32 %s2, 4
      %s36 = int_to_ptr.hbm [resolvable:$true] %s35
      %s37 = sshll.u32 [#allocation4], 4
      %s38 = int_to_ptr.vmem [resolvable:$true] %s37
      %43 = dma.hbm_to_vmem [thread:$0]  %s36, 8192, %s38, [#allocation5], 128, 128, 8
    $region13: #{autoencoder_forward.1} parent=1 // pred_fallthru
      _
    // Predicated region
    $region14: #{autoencoder_forward.1} parent=1 // pred_check
      _
    $region15: #{autoencoder_forward.1} parent=1 // pred_check_branch
      %45 = sbr.rel (0) target = $region17
    $region16: #{autoencoder_forward.1} parent=1 // pred_region
      _
    $region17: #{autoencoder_forward.1} parent=1 // pred_fallthru
      _
    // Predicated region
    $region18: #{autoencoder_forward.1} parent=1 // pred_check
      _
    $region19: #{autoencoder_forward.1} parent=1 // pred_check_branch
      %47 = sbr.rel (0) target = $region21
    $region20: #{autoencoder_forward.1} parent=1 // pred_region
      %49 = vsyncadd [#allocation5], 0
      %s50 = sshll.u32 %s4, 4
      %s51 = int_to_ptr.hbm [resolvable:$true] %s50
      %s52 = sshll.u32 [#allocation6], 4
      %s53 = int_to_ptr.vmem [resolvable:$true] %s52
      %58 = dma.hbm_to_vmem [thread:$0]  %s51, 1024, %s53, [#allocation5], 64, 64, 4
    $region21: #{autoencoder_forward.1} parent=1 // pred_fallthru
      _
    // Predicated region
    $region22: #{autoencoder_forward.1} parent=1 // pred_check
      _
    $region23: #{autoencoder_forward.1} parent=1 // pred_check_branch
      %60 = sbr.rel (0) target = $region25
    $region24: #{autoencoder_forward.1} parent=1 // pred_region
      %62 = vsyncadd [#allocation8], 0
      %s63 = sshll.u32 %s5, 4
      %s64 = int_to_ptr.hbm [resolvable:$true] %s63
      %s65 = sshll.u32 [#allocation7], 4
      %s66 = int_to_ptr.vmem [resolvable:$true] %s65
      %71 = dma.hbm_to_vmem [thread:$0]  %s64, 2048, %s66, [#allocation8], 128, 128, 8
    $region25: #{autoencoder_forward.1} parent=1 // pred_fallthru
      _
    // Predicated region
    $region26: #{autoencoder_forward.1} parent=1 // pred_check
      _
    $region27: #{autoencoder_forward.1} parent=1 // pred_check_branch
      %73 = sbr.rel (0) target = $region29
    $region28: #{autoencoder_forward.1} parent=1 // pred_region
      %75 = vsyncadd [#allocation8], 0
      %s76 = sshll.u32 %s6, 4
      %s77 = int_to_ptr.hbm [resolvable:$true] %s76
      %s78 = sshll.u32 [#allocation9], 4
      %s79 = int_to_ptr.vmem [resolvable:$true] %s78
      %84 = dma.hbm_to_vmem [thread:$0]  %s77, 16384, %s79, [#allocation8], 512, 512, 32
    $region29: #{autoencoder_forward.1} parent=1 // pred_fallthru
      _
    // Predicated region
    $region30: #{autoencoder_forward.1} parent=1 // pred_check
      _
    $region31: #{autoencoder_forward.1} parent=1 // pred_check_branch
      %86 = sbr.rel (0) target = $region33
    $region32: #{autoencoder_forward.1} parent=1 // pred_region
      _
    $region33: #{autoencoder_forward.1} parent=1 // pred_fallthru
      _
    // Predicated region
    $region34: #{autoencoder_forward.1} parent=1 // pred_check
      _
    $region35: #{autoencoder_forward.1} parent=1 // pred_check_branch
      %88 = sbr.rel (0) target = $region37
    $region36: #{autoencoder_forward.1} parent=1 // pred_region
      %90 = dma.done [#allocation3], 32768
    $region37: #{autoencoder_forward.1} parent=1 // pred_fallthru
      _
    // Predicated region
    $region38: #{autoencoder_forward.1} parent=1 // pred_check
      _
    $region39: #{autoencoder_forward.1} parent=1 // pred_check_branch
      %92 = sbr.rel (0) target = $region41
    $region40: #{autoencoder_forward.1} parent=1 // pred_region
      %94 = dma.done [#allocation5], 8192
    $region41: #{autoencoder_forward.1} parent=1 // pred_fallthru
      _
    // Predicated region
    $region42: #{autoencoder_forward.1} parent=1 // pred_check
      _
    $region43: #{autoencoder_forward.1} parent=1 // pred_check_branch
      %96 = sbr.rel (0) target = $region45
    $region44: #{autoencoder_forward.1} parent=1 // pred_region
      %98 = dma.done [#allocation5], 1024
    $region45: #{autoencoder_forward.1} parent=1 // pred_fallthru
      _
    // Predicated region
    $region46: #{autoencoder_forward.1} parent=1 // pred_check
      _
    $region47: #{autoencoder_forward.1} parent=1 // pred_check_branch
      %100 = sbr.rel (0) target = $region49
    $region48: #{autoencoder_forward.1} parent=1 // pred_region
      %102 = dma.done [#allocation8], 2048
    $region49: #{autoencoder_forward.1} parent=1 // pred_fallthru
      _
    // Predicated region
    $region50: #{autoencoder_forward.1} parent=1 // pred_check
      _
    $region51: #{autoencoder_forward.1} parent=1 // pred_check_branch
      %104 = sbr.rel (0) target = $region53
    $region52: #{autoencoder_forward.1} parent=1 // pred_region
      %106 = dma.done [#allocation8], 16384
    $region53: #{autoencoder_forward.1} parent=1 // pred_fallthru
      _
    %v107 = vld [vmem:[%s0] sm:$0xff]
    %v108 = vld [vmem:[%s0 + $0x8] sm:$0xff]
    %111 = vst [vmem:[#allocation1] ss:$4 sm:$0xff] %v107
    %s112 = scalar_lea.vmem [#allocation1], 32
    %113 = vst [vmem:[%s112] ss:$4 sm:$0xff] %v108
    %v114 = vld.sshfl [vmem:[#allocation1] sm:$0xff pattern:$0x73625140]
    %v115 = vld.sshfl [vmem:[#allocation1 + $0x8] sm:$0xff pattern:$0x73625140]
    %v116 = vld.sshfl [vmem:[#allocation1 + $0x10] sm:$0xff pattern:$0x73625140]
    %v117 = vld.sshfl [vmem:[#allocation1 + $0x18] sm:$0xff pattern:$0x73625140]
    %v118 = vld.sshfl [vmem:[#allocation1 + $0x20] sm:$0xff pattern:$0x73625140]
    %v119 = vld.sshfl [vmem:[#allocation1 + $0x28] sm:$0xff pattern:$0x73625140]
    %v120 = vld.sshfl [vmem:[#allocation1 + $0x30] sm:$0xff pattern:$0x73625140]
    %v121 = vld.sshfl [vmem:[#allocation1 + $0x38] sm:$0xff pattern:$0x73625140]
    %v130 = vpack.c.bf16 %v114, %v114
    %v131 = vpack.c.bf16 %v115, %v115
    %v132 = vpack.c.bf16 %v116, %v116
    %v133 = vpack.c.bf16 %v117, %v117
    %v134 = vpack.c.bf16 %v118, %v118
    %v135 = vpack.c.bf16 %v119, %v119
    %v136 = vpack.c.bf16 %v120, %v120
    %v137 = vpack.c.bf16 %v121, %v121
    %v138 = vld [vmem:[#allocation2] sm:$0xff]
    %v139 = vld [vmem:[#allocation2 + $0x8] sm:$0xff]
    %v140 = vld [vmem:[#allocation2 + $0x10] sm:$0xff]
    %v141 = vld [vmem:[#allocation2 + $0x18] sm:$0xff]
    %v142 = vld [vmem:[#allocation2 + $0x20] sm:$0xff]
    %v143 = vld [vmem:[#allocation2 + $0x28] sm:$0xff]
    %v144 = vld [vmem:[#allocation2 + $0x30] sm:$0xff]
    %v145 = vld [vmem:[#allocation2 + $0x38] sm:$0xff]
    %v146 = vld [vmem:[#allocation2 + $0x40] sm:$0xff]
    %v147 = vld [vmem:[#allocation2 + $0x48] sm:$0xff]
    %v148 = vld [vmem:[#allocation2 + $0x50] sm:$0xff]
    %v149 = vld [vmem:[#allocation2 + $0x58] sm:$0xff]
    %v150 = vld [vmem:[#allocation2 + $0x60] sm:$0xff]
    %v151 = vld [vmem:[#allocation2 + $0x68] sm:$0xff]
    %v152 = vld [vmem:[#allocation2 + $0x70] sm:$0xff]
    %v153 = vld [vmem:[#allocation2 + $0x78] sm:$0xff]
    %v154 = vld [vmem:[#allocation2 + $0x80] sm:$0xff]
    %v155 = vld [vmem:[#allocation2 + $0x88] sm:$0xff]
    %v156 = vld [vmem:[#allocation2 + $0x90] sm:$0xff]
    %v157 = vld [vmem:[#allocation2 + $0x98] sm:$0xff]
    %v158 = vld [vmem:[#allocation2 + $0xa0] sm:$0xff]
    %v159 = vld [vmem:[#allocation2 + $0xa8] sm:$0xff]
    %v160 = vld [vmem:[#allocation2 + $0xb0] sm:$0xff]
    %v161 = vld [vmem:[#allocation2 + $0xb8] sm:$0xff]
    %v162 = vld [vmem:[#allocation2 + $0xc0] sm:$0xff]
    %v163 = vld [vmem:[#allocation2 + $0xc8] sm:$0xff]
    %v164 = vld [vmem:[#allocation2 + $0xd0] sm:$0xff]
    %v165 = vld [vmem:[#allocation2 + $0xd8] sm:$0xff]
    %v166 = vld [vmem:[#allocation2 + $0xe0] sm:$0xff]
    %v167 = vld [vmem:[#allocation2 + $0xe8] sm:$0xff]
    %v168 = vld [vmem:[#allocation2 + $0xf0] sm:$0xff]
    %v169 = vld [vmem:[#allocation2 + $0xf8] sm:$0xff]
    %v170 = vld [vmem:[#allocation2 + $0x100] sm:$0xff]
    %v171 = vld [vmem:[#allocation2 + $0x108] sm:$0xff]
    %v172 = vld [vmem:[#allocation2 + $0x110] sm:$0xff]
    %v173 = vld [vmem:[#allocation2 + $0x118] sm:$0xff]
    %v174 = vld [vmem:[#allocation2 + $0x120] sm:$0xff]
    %v175 = vld [vmem:[#allocation2 + $0x128] sm:$0xff]
    %v176 = vld [vmem:[#allocation2 + $0x130] sm:$0xff]
    %v177 = vld [vmem:[#allocation2 + $0x138] sm:$0xff]
    %v178 = vld [vmem:[#allocation2 + $0x140] sm:$0xff]
    %v179 = vld [vmem:[#allocation2 + $0x148] sm:$0xff]
    %v180 = vld [vmem:[#allocation2 + $0x150] sm:$0xff]
    %v181 = vld [vmem:[#allocation2 + $0x158] sm:$0xff]
    %v182 = vld [vmem:[#allocation2 + $0x160] sm:$0xff]
    %v183 = vld [vmem:[#allocation2 + $0x168] sm:$0xff]
    %v184 = vld [vmem:[#allocation2 + $0x170] sm:$0xff]
    %v185 = vld [vmem:[#allocation2 + $0x178] sm:$0xff]
    %v186 = vld [vmem:[#allocation2 + $0x180] sm:$0xff]
    %v187 = vld [vmem:[#allocation2 + $0x188] sm:$0xff]
    %v188 = vld [vmem:[#allocation2 + $0x190] sm:$0xff]
    %v189 = vld [vmem:[#allocation2 + $0x198] sm:$0xff]
    %v190 = vld [vmem:[#allocation2 + $0x1a0] sm:$0xff]
    %v191 = vld [vmem:[#allocation2 + $0x1a8] sm:$0xff]
    %v192 = vld [vmem:[#allocation2 + $0x1b0] sm:$0xff]
    %v193 = vld [vmem:[#allocation2 + $0x1b8] sm:$0xff]
    %v194 = vld [vmem:[#allocation2 + $0x1c0] sm:$0xff]
    %v195 = vld [vmem:[#allocation2 + $0x1c8] sm:$0xff]
    %v196 = vld [vmem:[#allocation2 + $0x1d0] sm:$0xff]
    %v197 = vld [vmem:[#allocation2 + $0x1d8] sm:$0xff]
    %v198 = vld [vmem:[#allocation2 + $0x1e0] sm:$0xff]
    %v199 = vld [vmem:[#allocation2 + $0x1e8] sm:$0xff]
    %v200 = vld [vmem:[#allocation2 + $0x1f0] sm:$0xff]
    %v201 = vld [vmem:[#allocation2 + $0x1f8] sm:$0xff]
    %v202 = vld [vmem:[#allocation2 + $0x200] sm:$0xff]
    %v203 = vld [vmem:[#allocation2 + $0x208] sm:$0xff]
    %v204 = vld [vmem:[#allocation2 + $0x210] sm:$0xff]
    %v205 = vld [vmem:[#allocation2 + $0x218] sm:$0xff]
    %v206 = vld [vmem:[#allocation2 + $0x220] sm:$0xff]
    %v207 = vld [vmem:[#allocation2 + $0x228] sm:$0xff]
    %v208 = vld [vmem:[#allocation2 + $0x230] sm:$0xff]
    %v209 = vld [vmem:[#allocation2 + $0x238] sm:$0xff]
    %v210 = vld [vmem:[#allocation2 + $0x240] sm:$0xff]
    %v211 = vld [vmem:[#allocation2 + $0x248] sm:$0xff]
    %v212 = vld [vmem:[#allocation2 + $0x250] sm:$0xff]
    %v213 = vld [vmem:[#allocation2 + $0x258] sm:$0xff]
    %v214 = vld [vmem:[#allocation2 + $0x260] sm:$0xff]
    %v215 = vld [vmem:[#allocation2 + $0x268] sm:$0xff]
    %v216 = vld [vmem:[#allocation2 + $0x270] sm:$0xff]
    %v217 = vld [vmem:[#allocation2 + $0x278] sm:$0xff]
    %v218 = vld [vmem:[#allocation2 + $0x280] sm:$0xff]
    %v219 = vld [vmem:[#allocation2 + $0x288] sm:$0xff]
    %v220 = vld [vmem:[#allocation2 + $0x290] sm:$0xff]
    %v221 = vld [vmem:[#allocation2 + $0x298] sm:$0xff]
    %v222 = vld [vmem:[#allocation2 + $0x2a0] sm:$0xff]
    %v223 = vld [vmem:[#allocation2 + $0x2a8] sm:$0xff]
    %v224 = vld [vmem:[#allocation2 + $0x2b0] sm:$0xff]
    %v225 = vld [vmem:[#allocation2 + $0x2b8] sm:$0xff]
    %v226 = vld [vmem:[#allocation2 + $0x2c0] sm:$0xff]
    %v227 = vld [vmem:[#allocation2 + $0x2c8] sm:$0xff]
    %v228 = vld [vmem:[#allocation2 + $0x2d0] sm:$0xff]
    %v229 = vld [vmem:[#allocation2 + $0x2d8] sm:$0xff]
    %v230 = vld [vmem:[#allocation2 + $0x2e0] sm:$0xff]
    %v231 = vld [vmem:[#allocation2 + $0x2e8] sm:$0xff]
    %v232 = vld [vmem:[#allocation2 + $0x2f0] sm:$0xff]
    %v233 = vld [vmem:[#allocation2 + $0x2f8] sm:$0xff]
    %v234 = vld [vmem:[#allocation2 + $0x300] sm:$0xff]
    %v235 = vld [vmem:[#allocation2 + $0x308] sm:$0xff]
    %v236 = vld [vmem:[#allocation2 + $0x310] sm:$0xff]
    %v237 = vld [vmem:[#allocation2 + $0x318] sm:$0xff]
    %v238 = vld [vmem:[#allocation2 + $0x320] sm:$0xff]
    %v239 = vld [vmem:[#allocation2 + $0x328] sm:$0xff]
    %v240 = vld [vmem:[#allocation2 + $0x330] sm:$0xff]
    %v241 = vld [vmem:[#allocation2 + $0x338] sm:$0xff]
    %v242 = vld [vmem:[#allocation2 + $0x340] sm:$0xff]
    %v243 = vld [vmem:[#allocation2 + $0x348] sm:$0xff]
    %v244 = vld [vmem:[#allocation2 + $0x350] sm:$0xff]
    %v245 = vld [vmem:[#allocation2 + $0x358] sm:$0xff]
    %v246 = vld [vmem:[#allocation2 + $0x360] sm:$0xff]
    %v247 = vld [vmem:[#allocation2 + $0x368] sm:$0xff]
    %v248 = vld [vmem:[#allocation2 + $0x370] sm:$0xff]
    %v249 = vld [vmem:[#allocation2 + $0x378] sm:$0xff]
    %v250 = vld [vmem:[#allocation2 + $0x380] sm:$0xff]
    %v251 = vld [vmem:[#allocation2 + $0x388] sm:$0xff]
    %v252 = vld [vmem:[#allocation2 + $0x390] sm:$0xff]
    %v253 = vld [vmem:[#allocation2 + $0x398] sm:$0xff]
    %v254 = vld [vmem:[#allocation2 + $0x3a0] sm:$0xff]
    %v255 = vld [vmem:[#allocation2 + $0x3a8] sm:$0xff]
    %v256 = vld [vmem:[#allocation2 + $0x3b0] sm:$0xff]
    %v257 = vld [vmem:[#allocation2 + $0x3b8] sm:$0xff]
    %v258 = vld [vmem:[#allocation2 + $0x3c0] sm:$0xff]
    %v259 = vld [vmem:[#allocation2 + $0x3c8] sm:$0xff]
    %v260 = vld [vmem:[#allocation2 + $0x3d0] sm:$0xff]
    %v261 = vld [vmem:[#allocation2 + $0x3d8] sm:$0xff]
    %v262 = vld [vmem:[#allocation2 + $0x3e0] sm:$0xff]
    %v263 = vld [vmem:[#allocation2 + $0x3e8] sm:$0xff]
    %v264 = vld [vmem:[#allocation2 + $0x3f0] sm:$0xff]
    %v265 = vld [vmem:[#allocation2 + $0x3f8] sm:$0xff]
    %v266 = vld [vmem:[#allocation2 + $0x400] sm:$0xff]
    %v267 = vld [vmem:[#allocation2 + $0x408] sm:$0xff]
    %v268 = vld [vmem:[#allocation2 + $0x410] sm:$0xff]
    %v269 = vld [vmem:[#allocation2 + $0x418] sm:$0xff]
    %v270 = vld [vmem:[#allocation2 + $0x420] sm:$0xff]
    %v271 = vld [vmem:[#allocation2 + $0x428] sm:$0xff]
    %v272 = vld [vmem:[#allocation2 + $0x430] sm:$0xff]
    %v273 = vld [vmem:[#allocation2 + $0x438] sm:$0xff]
    %v274 = vld [vmem:[#allocation2 + $0x440] sm:$0xff]
    %v275 = vld [vmem:[#allocation2 + $0x448] sm:$0xff]
    %v276 = vld [vmem:[#allocation2 + $0x450] sm:$0xff]
    %v277 = vld [vmem:[#allocation2 + $0x458] sm:$0xff]
    %v278 = vld [vmem:[#allocation2 + $0x460] sm:$0xff]
    %v279 = vld [vmem:[#allocation2 + $0x468] sm:$0xff]
    %v280 = vld [vmem:[#allocation2 + $0x470] sm:$0xff]
    %v281 = vld [vmem:[#allocation2 + $0x478] sm:$0xff]
    %v282 = vld [vmem:[#allocation2 + $0x480] sm:$0xff]
    %v283 = vld [vmem:[#allocation2 + $0x488] sm:$0xff]
    %v284 = vld [vmem:[#allocation2 + $0x490] sm:$0xff]
    %v285 = vld [vmem:[#allocation2 + $0x498] sm:$0xff]
    %v286 = vld [vmem:[#allocation2 + $0x4a0] sm:$0xff]
    %v287 = vld [vmem:[#allocation2 + $0x4a8] sm:$0xff]
    %v288 = vld [vmem:[#allocation2 + $0x4b0] sm:$0xff]
    %v289 = vld [vmem:[#allocation2 + $0x4b8] sm:$0xff]
    %v290 = vld [vmem:[#allocation2 + $0x4c0] sm:$0xff]
    %v291 = vld [vmem:[#allocation2 + $0x4c8] sm:$0xff]
    %v292 = vld [vmem:[#allocation2 + $0x4d0] sm:$0xff]
    %v293 = vld [vmem:[#allocation2 + $0x4d8] sm:$0xff]
    %v294 = vld [vmem:[#allocation2 + $0x4e0] sm:$0xff]
    %v295 = vld [vmem:[#allocation2 + $0x4e8] sm:$0xff]
    %v296 = vld [vmem:[#allocation2 + $0x4f0] sm:$0xff]
    %v297 = vld [vmem:[#allocation2 + $0x4f8] sm:$0xff]
    %v298 = vld [vmem:[#allocation2 + $0x500] sm:$0xff]
    %v299 = vld [vmem:[#allocation2 + $0x508] sm:$0xff]
    %v300 = vld [vmem:[#allocation2 + $0x510] sm:$0xff]
    %v301 = vld [vmem:[#allocation2 + $0x518] sm:$0xff]
    %v302 = vld [vmem:[#allocation2 + $0x520] sm:$0xff]
    %v303 = vld [vmem:[#allocation2 + $0x528] sm:$0xff]
    %v304 = vld [vmem:[#allocation2 + $0x530] sm:$0xff]
    %v305 = vld [vmem:[#allocation2 + $0x538] sm:$0xff]
    %v306 = vld [vmem:[#allocation2 + $0x540] sm:$0xff]
    %v307 = vld [vmem:[#allocation2 + $0x548] sm:$0xff]
    %v308 = vld [vmem:[#allocation2 + $0x550] sm:$0xff]
    %v309 = vld [vmem:[#allocation2 + $0x558] sm:$0xff]
    %v310 = vld [vmem:[#allocation2 + $0x560] sm:$0xff]
    %v311 = vld [vmem:[#allocation2 + $0x568] sm:$0xff]
    %v312 = vld [vmem:[#allocation2 + $0x570] sm:$0xff]
    %v313 = vld [vmem:[#allocation2 + $0x578] sm:$0xff]
    %v314 = vld [vmem:[#allocation2 + $0x580] sm:$0xff]
    %v315 = vld [vmem:[#allocation2 + $0x588] sm:$0xff]
    %v316 = vld [vmem:[#allocation2 + $0x590] sm:$0xff]
    %v317 = vld [vmem:[#allocation2 + $0x598] sm:$0xff]
    %v318 = vld [vmem:[#allocation2 + $0x5a0] sm:$0xff]
    %v319 = vld [vmem:[#allocation2 + $0x5a8] sm:$0xff]
    %v320 = vld [vmem:[#allocation2 + $0x5b0] sm:$0xff]
    %v321 = vld [vmem:[#allocation2 + $0x5b8] sm:$0xff]
    %v322 = vld [vmem:[#allocation2 + $0x5c0] sm:$0xff]
    %v323 = vld [vmem:[#allocation2 + $0x5c8] sm:$0xff]
    %v324 = vld [vmem:[#allocation2 + $0x5d0] sm:$0xff]
    %v325 = vld [vmem:[#allocation2 + $0x5d8] sm:$0xff]
    %v326 = vld [vmem:[#allocation2 + $0x5e0] sm:$0xff]
    %v327 = vld [vmem:[#allocation2 + $0x5e8] sm:$0xff]
    %v328 = vld [vmem:[#allocation2 + $0x5f0] sm:$0xff]
    %v329 = vld [vmem:[#allocation2 + $0x5f8] sm:$0xff]
    %v330 = vld [vmem:[#allocation2 + $0x600] sm:$0xff]
    %v331 = vld [vmem:[#allocation2 + $0x608] sm:$0xff]
    %v332 = vld [vmem:[#allocation2 + $0x610] sm:$0xff]
    %v333 = vld [vmem:[#allocation2 + $0x618] sm:$0xff]
    %v334 = vld [vmem:[#allocation2 + $0x620] sm:$0xff]
    %v335 = vld [vmem:[#allocation2 + $0x628] sm:$0xff]
    %v336 = vld [vmem:[#allocation2 + $0x630] sm:$0xff]
    %v337 = vld [vmem:[#allocation2 + $0x638] sm:$0xff]
    %v338 = vld [vmem:[#allocation2 + $0x640] sm:$0xff]
    %v339 = vld [vmem:[#allocation2 + $0x648] sm:$0xff]
    %v340 = vld [vmem:[#allocation2 + $0x650] sm:$0xff]
    %v341 = vld [vmem:[#allocation2 + $0x658] sm:$0xff]
    %v342 = vld [vmem:[#allocation2 + $0x660] sm:$0xff]
    %v343 = vld [vmem:[#allocation2 + $0x668] sm:$0xff]
    %v344 = vld [vmem:[#allocation2 + $0x670] sm:$0xff]
    %v345 = vld [vmem:[#allocation2 + $0x678] sm:$0xff]
    %v346 = vld [vmem:[#allocation2 + $0x680] sm:$0xff]
    %v347 = vld [vmem:[#allocation2 + $0x688] sm:$0xff]
    %v348 = vld [vmem:[#allocation2 + $0x690] sm:$0xff]
    %v349 = vld [vmem:[#allocation2 + $0x698] sm:$0xff]
    %v350 = vld [vmem:[#allocation2 + $0x6a0] sm:$0xff]
    %v351 = vld [vmem:[#allocation2 + $0x6a8] sm:$0xff]
    %v352 = vld [vmem:[#allocation2 + $0x6b0] sm:$0xff]
    %v353 = vld [vmem:[#allocation2 + $0x6b8] sm:$0xff]
    %v354 = vld [vmem:[#allocation2 + $0x6c0] sm:$0xff]
    %v355 = vld [vmem:[#allocation2 + $0x6c8] sm:$0xff]
    %v356 = vld [vmem:[#allocation2 + $0x6d0] sm:$0xff]
    %v357 = vld [vmem:[#allocation2 + $0x6d8] sm:$0xff]
    %v358 = vld [vmem:[#allocation2 + $0x6e0] sm:$0xff]
    %v359 = vld [vmem:[#allocation2 + $0x6e8] sm:$0xff]
    %v360 = vld [vmem:[#allocation2 + $0x6f0] sm:$0xff]
    %v361 = vld [vmem:[#allocation2 + $0x6f8] sm:$0xff]
    %v362 = vld [vmem:[#allocation2 + $0x700] sm:$0xff]
    %v363 = vld [vmem:[#allocation2 + $0x708] sm:$0xff]
    %v364 = vld [vmem:[#allocation2 + $0x710] sm:$0xff]
    %v365 = vld [vmem:[#allocation2 + $0x718] sm:$0xff]
    %v366 = vld [vmem:[#allocation2 + $0x720] sm:$0xff]
    %v367 = vld [vmem:[#allocation2 + $0x728] sm:$0xff]
    %v368 = vld [vmem:[#allocation2 + $0x730] sm:$0xff]
    %v369 = vld [vmem:[#allocation2 + $0x738] sm:$0xff]
    %v370 = vld [vmem:[#allocation2 + $0x740] sm:$0xff]
    %v371 = vld [vmem:[#allocation2 + $0x748] sm:$0xff]
    %v372 = vld [vmem:[#allocation2 + $0x750] sm:$0xff]
    %v373 = vld [vmem:[#allocation2 + $0x758] sm:$0xff]
    %v374 = vld [vmem:[#allocation2 + $0x760] sm:$0xff]
    %v375 = vld [vmem:[#allocation2 + $0x768] sm:$0xff]
    %v376 = vld [vmem:[#allocation2 + $0x770] sm:$0xff]
    %v377 = vld [vmem:[#allocation2 + $0x778] sm:$0xff]
    %v378 = vld [vmem:[#allocation2 + $0x780] sm:$0xff]
    %v379 = vld [vmem:[#allocation2 + $0x788] sm:$0xff]
    %v380 = vld [vmem:[#allocation2 + $0x790] sm:$0xff]
    %v381 = vld [vmem:[#allocation2 + $0x798] sm:$0xff]
    %v382 = vld [vmem:[#allocation2 + $0x7a0] sm:$0xff]
    %v383 = vld [vmem:[#allocation2 + $0x7a8] sm:$0xff]
    %v384 = vld [vmem:[#allocation2 + $0x7b0] sm:$0xff]
    %v385 = vld [vmem:[#allocation2 + $0x7b8] sm:$0xff]
    %v386 = vld [vmem:[#allocation2 + $0x7c0] sm:$0xff]
    %v387 = vld [vmem:[#allocation2 + $0x7c8] sm:$0xff]
    %v388 = vld [vmem:[#allocation2 + $0x7d0] sm:$0xff]
    %v389 = vld [vmem:[#allocation2 + $0x7d8] sm:$0xff]
    %v390 = vld [vmem:[#allocation2 + $0x7e0] sm:$0xff]
    %v391 = vld [vmem:[#allocation2 + $0x7e8] sm:$0xff]
    %v392 = vld [vmem:[#allocation2 + $0x7f0] sm:$0xff]
    %v393 = vld [vmem:[#allocation2 + $0x7f8] sm:$0xff]
    %v394 = vld [vmem:[%s7] sm:$0xf]
    %v396 = vperm.slane %v394, 0
    %v397 = vperm.slane %v394, 1
    %v398 = vperm.slane %v394, 2
    %v399 = vperm.slane %v394, 3
    %v660 = vunpack.c.l.b16 %v138
    %v661 = vunpack.c.h.b16 %v138
    %v662 = vunpack.c.l.b16 %v139
    %v663 = vunpack.c.h.b16 %v139
    %v664 = vunpack.c.l.b16 %v140
    %v665 = vunpack.c.h.b16 %v140
    %v666 = vunpack.c.l.b16 %v141
    %v667 = vunpack.c.h.b16 %v141
    %v668 = vunpack.c.l.b16 %v142
    %v669 = vunpack.c.h.b16 %v142
    %v670 = vunpack.c.l.b16 %v143
    %v671 = vunpack.c.h.b16 %v143
    %v672 = vunpack.c.l.b16 %v144
    %v673 = vunpack.c.h.b16 %v144
    %v674 = vunpack.c.l.b16 %v145
    %v675 = vunpack.c.h.b16 %v145
    %v676 = vunpack.c.l.b16 %v146
    %v677 = vunpack.c.h.b16 %v146
    %v678 = vunpack.c.l.b16 %v147
    %v679 = vunpack.c.h.b16 %v147
    %v680 = vunpack.c.l.b16 %v148
    %v681 = vunpack.c.h.b16 %v148
    %v682 = vunpack.c.l.b16 %v149
    %v683 = vunpack.c.h.b16 %v149
    %v684 = vunpack.c.l.b16 %v150
    %v685 = vunpack.c.h.b16 %v150
    %v686 = vunpack.c.l.b16 %v151
    %v687 = vunpack.c.h.b16 %v151
    %v688 = vunpack.c.l.b16 %v152
    %v689 = vunpack.c.h.b16 %v152
    %v690 = vunpack.c.l.b16 %v153
    %v691 = vunpack.c.h.b16 %v153
    %v692 = vunpack.c.l.b16 %v154
    %v693 = vunpack.c.h.b16 %v154
    %v694 = vunpack.c.l.b16 %v155
    %v695 = vunpack.c.h.b16 %v155
    %v696 = vunpack.c.l.b16 %v156
    %v697 = vunpack.c.h.b16 %v156
    %v698 = vunpack.c.l.b16 %v157
    %v699 = vunpack.c.h.b16 %v157
    %v700 = vunpack.c.l.b16 %v158
    %v701 = vunpack.c.h.b16 %v158
    %v702 = vunpack.c.l.b16 %v159
    %v703 = vunpack.c.h.b16 %v159
    %v704 = vunpack.c.l.b16 %v160
    %v705 = vunpack.c.h.b16 %v160
    %v706 = vunpack.c.l.b16 %v161
    %v707 = vunpack.c.h.b16 %v161
    %v708 = vunpack.c.l.b16 %v162
    %v709 = vunpack.c.h.b16 %v162
    %v710 = vunpack.c.l.b16 %v163
    %v711 = vunpack.c.h.b16 %v163
    %v712 = vunpack.c.l.b16 %v164
    %v713 = vunpack.c.h.b16 %v164
    %v714 = vunpack.c.l.b16 %v165
    %v715 = vunpack.c.h.b16 %v165
    %v716 = vunpack.c.l.b16 %v166
    %v717 = vunpack.c.h.b16 %v166
    %v718 = vunpack.c.l.b16 %v167
    %v719 = vunpack.c.h.b16 %v167
    %v720 = vunpack.c.l.b16 %v168
    %v721 = vunpack.c.h.b16 %v168
    %v722 = vunpack.c.l.b16 %v169
    %v723 = vunpack.c.h.b16 %v169
    %v724 = vunpack.c.l.b16 %v170
    %v725 = vunpack.c.h.b16 %v170
    %v726 = vunpack.c.l.b16 %v171
    %v727 = vunpack.c.h.b16 %v171
    %v728 = vunpack.c.l.b16 %v172
    %v729 = vunpack.c.h.b16 %v172
    %v730 = vunpack.c.l.b16 %v173
    %v731 = vunpack.c.h.b16 %v173
    %v732 = vunpack.c.l.b16 %v174
    %v733 = vunpack.c.h.b16 %v174
    %v734 = vunpack.c.l.b16 %v175
    %v735 = vunpack.c.h.b16 %v175
    %v736 = vunpack.c.l.b16 %v176
    %v737 = vunpack.c.h.b16 %v176
    %v738 = vunpack.c.l.b16 %v177
    %v739 = vunpack.c.h.b16 %v177
    %v740 = vunpack.c.l.b16 %v178
    %v741 = vunpack.c.h.b16 %v178
    %v742 = vunpack.c.l.b16 %v179
    %v743 = vunpack.c.h.b16 %v179
    %v744 = vunpack.c.l.b16 %v180
    %v745 = vunpack.c.h.b16 %v180
    %v746 = vunpack.c.l.b16 %v181
    %v747 = vunpack.c.h.b16 %v181
    %v748 = vunpack.c.l.b16 %v182
    %v749 = vunpack.c.h.b16 %v182
    %v750 = vunpack.c.l.b16 %v183
    %v751 = vunpack.c.h.b16 %v183
    %v752 = vunpack.c.l.b16 %v184
    %v753 = vunpack.c.h.b16 %v184
    %v754 = vunpack.c.l.b16 %v185
    %v755 = vunpack.c.h.b16 %v185
    %v756 = vunpack.c.l.b16 %v186
    %v757 = vunpack.c.h.b16 %v186
    %v758 = vunpack.c.l.b16 %v187
    %v759 = vunpack.c.h.b16 %v187
    %v760 = vunpack.c.l.b16 %v188
    %v761 = vunpack.c.h.b16 %v188
    %v762 = vunpack.c.l.b16 %v189
    %v763 = vunpack.c.h.b16 %v189
    %v764 = vunpack.c.l.b16 %v190
    %v765 = vunpack.c.h.b16 %v190
    %v766 = vunpack.c.l.b16 %v191
    %v767 = vunpack.c.h.b16 %v191
    %v768 = vunpack.c.l.b16 %v192
    %v769 = vunpack.c.h.b16 %v192
    %v770 = vunpack.c.l.b16 %v193
    %v771 = vunpack.c.h.b16 %v193
    %v772 = vunpack.c.l.b16 %v194
    %v773 = vunpack.c.h.b16 %v194
    %v774 = vunpack.c.l.b16 %v195
    %v775 = vunpack.c.h.b16 %v195
    %v776 = vunpack.c.l.b16 %v196
    %v777 = vunpack.c.h.b16 %v196
    %v778 = vunpack.c.l.b16 %v197
    %v779 = vunpack.c.h.b16 %v197
    %v780 = vunpack.c.l.b16 %v198
    %v781 = vunpack.c.h.b16 %v198
    %v782 = vunpack.c.l.b16 %v199
    %v783 = vunpack.c.h.b16 %v199
    %v784 = vunpack.c.l.b16 %v200
    %v785 = vunpack.c.h.b16 %v200
    %v786 = vunpack.c.l.b16 %v201
    %v787 = vunpack.c.h.b16 %v201
    %v788 = vunpack.c.l.b16 %v202
    %v789 = vunpack.c.h.b16 %v202
    %v790 = vunpack.c.l.b16 %v203
    %v791 = vunpack.c.h.b16 %v203
    %v792 = vunpack.c.l.b16 %v204
    %v793 = vunpack.c.h.b16 %v204
    %v794 = vunpack.c.l.b16 %v205
    %v795 = vunpack.c.h.b16 %v205
    %v796 = vunpack.c.l.b16 %v206
    %v797 = vunpack.c.h.b16 %v206
    %v798 = vunpack.c.l.b16 %v207
    %v799 = vunpack.c.h.b16 %v207
    %v800 = vunpack.c.l.b16 %v208
    %v801 = vunpack.c.h.b16 %v208
    %v802 = vunpack.c.l.b16 %v209
    %v803 = vunpack.c.h.b16 %v209
    %v804 = vunpack.c.l.b16 %v210
    %v805 = vunpack.c.h.b16 %v210
    %v806 = vunpack.c.l.b16 %v211
    %v807 = vunpack.c.h.b16 %v211
    %v808 = vunpack.c.l.b16 %v212
    %v809 = vunpack.c.h.b16 %v212
    %v810 = vunpack.c.l.b16 %v213
    %v811 = vunpack.c.h.b16 %v213
    %v812 = vunpack.c.l.b16 %v214
    %v813 = vunpack.c.h.b16 %v214
    %v814 = vunpack.c.l.b16 %v215
    %v815 = vunpack.c.h.b16 %v215
    %v816 = vunpack.c.l.b16 %v216
    %v817 = vunpack.c.h.b16 %v216
    %v818 = vunpack.c.l.b16 %v217
    %v819 = vunpack.c.h.b16 %v217
    %v820 = vunpack.c.l.b16 %v218
    %v821 = vunpack.c.h.b16 %v218
    %v822 = vunpack.c.l.b16 %v219
    %v823 = vunpack.c.h.b16 %v219
    %v824 = vunpack.c.l.b16 %v220
    %v825 = vunpack.c.h.b16 %v220
    %v826 = vunpack.c.l.b16 %v221
    %v827 = vunpack.c.h.b16 %v221
    %v828 = vunpack.c.l.b16 %v222
    %v829 = vunpack.c.h.b16 %v222
    %v830 = vunpack.c.l.b16 %v223
    %v831 = vunpack.c.h.b16 %v223
    %v832 = vunpack.c.l.b16 %v224
    %v833 = vunpack.c.h.b16 %v224
    %v834 = vunpack.c.l.b16 %v225
    %v835 = vunpack.c.h.b16 %v225
    %v836 = vunpack.c.l.b16 %v226
    %v837 = vunpack.c.h.b16 %v226
    %v838 = vunpack.c.l.b16 %v227
    %v839 = vunpack.c.h.b16 %v227
    %v840 = vunpack.c.l.b16 %v228
    %v841 = vunpack.c.h.b16 %v228
    %v842 = vunpack.c.l.b16 %v229
    %v843 = vunpack.c.h.b16 %v229
    %v844 = vunpack.c.l.b16 %v230
    %v845 = vunpack.c.h.b16 %v230
    %v846 = vunpack.c.l.b16 %v231
    %v847 = vunpack.c.h.b16 %v231
    %v848 = vunpack.c.l.b16 %v232
    %v849 = vunpack.c.h.b16 %v232
    %v850 = vunpack.c.l.b16 %v233
    %v851 = vunpack.c.h.b16 %v233
    %v852 = vunpack.c.l.b16 %v234
    %v853 = vunpack.c.h.b16 %v234
    %v854 = vunpack.c.l.b16 %v235
    %v855 = vunpack.c.h.b16 %v235
    %v856 = vunpack.c.l.b16 %v236
    %v857 = vunpack.c.h.b16 %v236
    %v858 = vunpack.c.l.b16 %v237
    %v859 = vunpack.c.h.b16 %v237
    %v860 = vunpack.c.l.b16 %v238
    %v861 = vunpack.c.h.b16 %v238
    %v862 = vunpack.c.l.b16 %v239
    %v863 = vunpack.c.h.b16 %v239
    %v864 = vunpack.c.l.b16 %v240
    %v865 = vunpack.c.h.b16 %v240
    %v866 = vunpack.c.l.b16 %v241
    %v867 = vunpack.c.h.b16 %v241
    %v868 = vunpack.c.l.b16 %v242
    %v869 = vunpack.c.h.b16 %v242
    %v870 = vunpack.c.l.b16 %v243
    %v871 = vunpack.c.h.b16 %v243
    %v872 = vunpack.c.l.b16 %v244
    %v873 = vunpack.c.h.b16 %v244
    %v874 = vunpack.c.l.b16 %v245
    %v875 = vunpack.c.h.b16 %v245
    %v876 = vunpack.c.l.b16 %v246
    %v877 = vunpack.c.h.b16 %v246
    %v878 = vunpack.c.l.b16 %v247
    %v879 = vunpack.c.h.b16 %v247
    %v880 = vunpack.c.l.b16 %v248
    %v881 = vunpack.c.h.b16 %v248
    %v882 = vunpack.c.l.b16 %v249
    %v883 = vunpack.c.h.b16 %v249
    %v884 = vunpack.c.l.b16 %v250
    %v885 = vunpack.c.h.b16 %v250
    %v886 = vunpack.c.l.b16 %v251
    %v887 = vunpack.c.h.b16 %v251
    %v888 = vunpack.c.l.b16 %v252
    %v889 = vunpack.c.h.b16 %v252
    %v890 = vunpack.c.l.b16 %v253
    %v891 = vunpack.c.h.b16 %v253
    %v892 = vunpack.c.l.b16 %v254
    %v893 = vunpack.c.h.b16 %v254
    %v894 = vunpack.c.l.b16 %v255
    %v895 = vunpack.c.h.b16 %v255
    %v896 = vunpack.c.l.b16 %v256
    %v897 = vunpack.c.h.b16 %v256
    %v898 = vunpack.c.l.b16 %v257
    %v899 = vunpack.c.h.b16 %v257
    %v900 = vunpack.c.l.b16 %v258
    %v901 = vunpack.c.h.b16 %v258
    %v902 = vunpack.c.l.b16 %v259
    %v903 = vunpack.c.h.b16 %v259
    %v904 = vunpack.c.l.b16 %v260
    %v905 = vunpack.c.h.b16 %v260
    %v906 = vunpack.c.l.b16 %v261
    %v907 = vunpack.c.h.b16 %v261
    %v908 = vunpack.c.l.b16 %v262
    %v909 = vunpack.c.h.b16 %v262
    %v910 = vunpack.c.l.b16 %v263
    %v911 = vunpack.c.h.b16 %v263
    %v912 = vunpack.c.l.b16 %v264
    %v913 = vunpack.c.h.b16 %v264
    %v914 = vunpack.c.l.b16 %v265
    %v915 = vunpack.c.h.b16 %v265
    %v916 = vunpack.c.l.b16 %v266
    %v917 = vunpack.c.h.b16 %v266
    %v918 = vunpack.c.l.b16 %v267
    %v919 = vunpack.c.h.b16 %v267
    %v920 = vunpack.c.l.b16 %v268
    %v921 = vunpack.c.h.b16 %v268
    %v922 = vunpack.c.l.b16 %v269
    %v923 = vunpack.c.h.b16 %v269
    %v924 = vunpack.c.l.b16 %v270
    %v925 = vunpack.c.h.b16 %v270
    %v926 = vunpack.c.l.b16 %v271
    %v927 = vunpack.c.h.b16 %v271
    %v928 = vunpack.c.l.b16 %v272
    %v929 = vunpack.c.h.b16 %v272
    %v930 = vunpack.c.l.b16 %v273
    %v931 = vunpack.c.h.b16 %v273
    %v932 = vunpack.c.l.b16 %v274
    %v933 = vunpack.c.h.b16 %v274
    %v934 = vunpack.c.l.b16 %v275
    %v935 = vunpack.c.h.b16 %v275
    %v936 = vunpack.c.l.b16 %v276
    %v937 = vunpack.c.h.b16 %v276
    %v938 = vunpack.c.l.b16 %v277
    %v939 = vunpack.c.h.b16 %v277
    %v940 = vunpack.c.l.b16 %v278
    %v941 = vunpack.c.h.b16 %v278
    %v942 = vunpack.c.l.b16 %v279
    %v943 = vunpack.c.h.b16 %v279
    %v944 = vunpack.c.l.b16 %v280
    %v945 = vunpack.c.h.b16 %v280
    %v946 = vunpack.c.l.b16 %v281
    %v947 = vunpack.c.h.b16 %v281
    %v948 = vunpack.c.l.b16 %v282
    %v949 = vunpack.c.h.b16 %v282
    %v950 = vunpack.c.l.b16 %v283
    %v951 = vunpack.c.h.b16 %v283
    %v952 = vunpack.c.l.b16 %v284
    %v953 = vunpack.c.h.b16 %v284
    %v954 = vunpack.c.l.b16 %v285
    %v955 = vunpack.c.h.b16 %v285
    %v956 = vunpack.c.l.b16 %v286
    %v957 = vunpack.c.h.b16 %v286
    %v958 = vunpack.c.l.b16 %v287
    %v959 = vunpack.c.h.b16 %v287
    %v960 = vunpack.c.l.b16 %v288
    %v961 = vunpack.c.h.b16 %v288
    %v962 = vunpack.c.l.b16 %v289
    %v963 = vunpack.c.h.b16 %v289
    %v964 = vunpack.c.l.b16 %v290
    %v965 = vunpack.c.h.b16 %v290
    %v966 = vunpack.c.l.b16 %v291
    %v967 = vunpack.c.h.b16 %v291
    %v968 = vunpack.c.l.b16 %v292
    %v969 = vunpack.c.h.b16 %v292
    %v970 = vunpack.c.l.b16 %v293
    %v971 = vunpack.c.h.b16 %v293
    %v972 = vunpack.c.l.b16 %v294
    %v973 = vunpack.c.h.b16 %v294
    %v974 = vunpack.c.l.b16 %v295
    %v975 = vunpack.c.h.b16 %v295
    %v976 = vunpack.c.l.b16 %v296
    %v977 = vunpack.c.h.b16 %v296
    %v978 = vunpack.c.l.b16 %v297
    %v979 = vunpack.c.h.b16 %v297
    %v980 = vunpack.c.l.b16 %v298
    %v981 = vunpack.c.h.b16 %v298
    %v982 = vunpack.c.l.b16 %v299
    %v983 = vunpack.c.h.b16 %v299
    %v984 = vunpack.c.l.b16 %v300
    %v985 = vunpack.c.h.b16 %v300
    %v986 = vunpack.c.l.b16 %v301
    %v987 = vunpack.c.h.b16 %v301
    %v988 = vunpack.c.l.b16 %v302
    %v989 = vunpack.c.h.b16 %v302
    %v990 = vunpack.c.l.b16 %v303
    %v991 = vunpack.c.h.b16 %v303
    %v992 = vunpack.c.l.b16 %v304
    %v993 = vunpack.c.h.b16 %v304
    %v994 = vunpack.c.l.b16 %v305
    %v995 = vunpack.c.h.b16 %v305
    %v996 = vunpack.c.l.b16 %v306
    %v997 = vunpack.c.h.b16 %v306
    %v998 = vunpack.c.l.b16 %v307
    %v999 = vunpack.c.h.b16 %v307
    %v1000 = vunpack.c.l.b16 %v308
    %v1001 = vunpack.c.h.b16 %v308
    %v1002 = vunpack.c.l.b16 %v309
    %v1003 = vunpack.c.h.b16 %v309
    %v1004 = vunpack.c.l.b16 %v310
    %v1005 = vunpack.c.h.b16 %v310
    %v1006 = vunpack.c.l.b16 %v311
    %v1007 = vunpack.c.h.b16 %v311
    %v1008 = vunpack.c.l.b16 %v312
    %v1009 = vunpack.c.h.b16 %v312
    %v1010 = vunpack.c.l.b16 %v313
    %v1011 = vunpack.c.h.b16 %v313
    %v1012 = vunpack.c.l.b16 %v314
    %v1013 = vunpack.c.h.b16 %v314
    %v1014 = vunpack.c.l.b16 %v315
    %v1015 = vunpack.c.h.b16 %v315
    %v1016 = vunpack.c.l.b16 %v316
    %v1017 = vunpack.c.h.b16 %v316
    %v1018 = vunpack.c.l.b16 %v317
    %v1019 = vunpack.c.h.b16 %v317
    %v1020 = vunpack.c.l.b16 %v318
    %v1021 = vunpack.c.h.b16 %v318
    %v1022 = vunpack.c.l.b16 %v319
    %v1023 = vunpack.c.h.b16 %v319
    %v1024 = vunpack.c.l.b16 %v320
    %v1025 = vunpack.c.h.b16 %v320
    %v1026 = vunpack.c.l.b16 %v321
    %v1027 = vunpack.c.h.b16 %v321
    %v1028 = vunpack.c.l.b16 %v322
    %v1029 = vunpack.c.h.b16 %v322
    %v1030 = vunpack.c.l.b16 %v323
    %v1031 = vunpack.c.h.b16 %v323
    %v1032 = vunpack.c.l.b16 %v324
    %v1033 = vunpack.c.h.b16 %v324
    %v1034 = vunpack.c.l.b16 %v325
    %v1035 = vunpack.c.h.b16 %v325
    %v1036 = vunpack.c.l.b16 %v326
    %v1037 = vunpack.c.h.b16 %v326
    %v1038 = vunpack.c.l.b16 %v327
    %v1039 = vunpack.c.h.b16 %v327
    %v1040 = vunpack.c.l.b16 %v328
    %v1041 = vunpack.c.h.b16 %v328
    %v1042 = vunpack.c.l.b16 %v329
    %v1043 = vunpack.c.h.b16 %v329
    %v1044 = vunpack.c.l.b16 %v330
    %v1045 = vunpack.c.h.b16 %v330
    %v1046 = vunpack.c.l.b16 %v331
    %v1047 = vunpack.c.h.b16 %v331
    %v1048 = vunpack.c.l.b16 %v332
    %v1049 = vunpack.c.h.b16 %v332
    %v1050 = vunpack.c.l.b16 %v333
    %v1051 = vunpack.c.h.b16 %v333
    %v1052 = vunpack.c.l.b16 %v334
    %v1053 = vunpack.c.h.b16 %v334
    %v1054 = vunpack.c.l.b16 %v335
    %v1055 = vunpack.c.h.b16 %v335
    %v1056 = vunpack.c.l.b16 %v336
    %v1057 = vunpack.c.h.b16 %v336
    %v1058 = vunpack.c.l.b16 %v337
    %v1059 = vunpack.c.h.b16 %v337
    %v1060 = vunpack.c.l.b16 %v338
    %v1061 = vunpack.c.h.b16 %v338
    %v1062 = vunpack.c.l.b16 %v339
    %v1063 = vunpack.c.h.b16 %v339
    %v1064 = vunpack.c.l.b16 %v340
    %v1065 = vunpack.c.h.b16 %v340
    %v1066 = vunpack.c.l.b16 %v341
    %v1067 = vunpack.c.h.b16 %v341
    %v1068 = vunpack.c.l.b16 %v342
    %v1069 = vunpack.c.h.b16 %v342
    %v1070 = vunpack.c.l.b16 %v343
    %v1071 = vunpack.c.h.b16 %v343
    %v1072 = vunpack.c.l.b16 %v344
    %v1073 = vunpack.c.h.b16 %v344
    %v1074 = vunpack.c.l.b16 %v345
    %v1075 = vunpack.c.h.b16 %v345
    %v1076 = vunpack.c.l.b16 %v346
    %v1077 = vunpack.c.h.b16 %v346
    %v1078 = vunpack.c.l.b16 %v347
    %v1079 = vunpack.c.h.b16 %v347
    %v1080 = vunpack.c.l.b16 %v348
    %v1081 = vunpack.c.h.b16 %v348
    %v1082 = vunpack.c.l.b16 %v349
    %v1083 = vunpack.c.h.b16 %v349
    %v1084 = vunpack.c.l.b16 %v350
    %v1085 = vunpack.c.h.b16 %v350
    %v1086 = vunpack.c.l.b16 %v351
    %v1087 = vunpack.c.h.b16 %v351
    %v1088 = vunpack.c.l.b16 %v352
    %v1089 = vunpack.c.h.b16 %v352
    %v1090 = vunpack.c.l.b16 %v353
    %v1091 = vunpack.c.h.b16 %v353
    %v1092 = vunpack.c.l.b16 %v354
    %v1093 = vunpack.c.h.b16 %v354
    %v1094 = vunpack.c.l.b16 %v355
    %v1095 = vunpack.c.h.b16 %v355
    %v1096 = vunpack.c.l.b16 %v356
    %v1097 = vunpack.c.h.b16 %v356
    %v1098 = vunpack.c.l.b16 %v357
    %v1099 = vunpack.c.h.b16 %v357
    %v1100 = vunpack.c.l.b16 %v358
    %v1101 = vunpack.c.h.b16 %v358
    %v1102 = vunpack.c.l.b16 %v359
    %v1103 = vunpack.c.h.b16 %v359
    %v1104 = vunpack.c.l.b16 %v360
    %v1105 = vunpack.c.h.b16 %v360
    %v1106 = vunpack.c.l.b16 %v361
    %v1107 = vunpack.c.h.b16 %v361
    %v1108 = vunpack.c.l.b16 %v362
    %v1109 = vunpack.c.h.b16 %v362
    %v1110 = vunpack.c.l.b16 %v363
    %v1111 = vunpack.c.h.b16 %v363
    %v1112 = vunpack.c.l.b16 %v364
    %v1113 = vunpack.c.h.b16 %v364
    %v1114 = vunpack.c.l.b16 %v365
    %v1115 = vunpack.c.h.b16 %v365
    %v1116 = vunpack.c.l.b16 %v366
    %v1117 = vunpack.c.h.b16 %v366
    %v1118 = vunpack.c.l.b16 %v367
    %v1119 = vunpack.c.h.b16 %v367
    %v1120 = vunpack.c.l.b16 %v368
    %v1121 = vunpack.c.h.b16 %v368
    %v1122 = vunpack.c.l.b16 %v369
    %v1123 = vunpack.c.h.b16 %v369
    %v1124 = vunpack.c.l.b16 %v370
    %v1125 = vunpack.c.h.b16 %v370
    %v1126 = vunpack.c.l.b16 %v371
    %v1127 = vunpack.c.h.b16 %v371
    %v1128 = vunpack.c.l.b16 %v372
    %v1129 = vunpack.c.h.b16 %v372
    %v1130 = vunpack.c.l.b16 %v373
    %v1131 = vunpack.c.h.b16 %v373
    %v1132 = vunpack.c.l.b16 %v374
    %v1133 = vunpack.c.h.b16 %v374
    %v1134 = vunpack.c.l.b16 %v375
    %v1135 = vunpack.c.h.b16 %v375
    %v1136 = vunpack.c.l.b16 %v376
    %v1137 = vunpack.c.h.b16 %v376
    %v1138 = vunpack.c.l.b16 %v377
    %v1139 = vunpack.c.h.b16 %v377
    %v1140 = vunpack.c.l.b16 %v378
    %v1141 = vunpack.c.h.b16 %v378
    %v1142 = vunpack.c.l.b16 %v379
    %v1143 = vunpack.c.h.b16 %v379
    %v1144 = vunpack.c.l.b16 %v380
    %v1145 = vunpack.c.h.b16 %v380
    %v1146 = vunpack.c.l.b16 %v381
    %v1147 = vunpack.c.h.b16 %v381
    %v1148 = vunpack.c.l.b16 %v382
    %v1149 = vunpack.c.h.b16 %v382
    %v1150 = vunpack.c.l.b16 %v383
    %v1151 = vunpack.c.h.b16 %v383
    %v1152 = vunpack.c.l.b16 %v384
    %v1153 = vunpack.c.h.b16 %v384
    %v1154 = vunpack.c.l.b16 %v385
    %v1155 = vunpack.c.h.b16 %v385
    %v1156 = vunpack.c.l.b16 %v386
    %v1157 = vunpack.c.h.b16 %v386
    %v1158 = vunpack.c.l.b16 %v387
    %v1159 = vunpack.c.h.b16 %v387
    %v1160 = vunpack.c.l.b16 %v388
    %v1161 = vunpack.c.h.b16 %v388
    %v1162 = vunpack.c.l.b16 %v389
    %v1163 = vunpack.c.h.b16 %v389
    %v1164 = vunpack.c.l.b16 %v390
    %v1165 = vunpack.c.h.b16 %v390
    %v1166 = vunpack.c.l.b16 %v391
    %v1167 = vunpack.c.h.b16 %v391
    %v1168 = vunpack.c.l.b16 %v392
    %v1169 = vunpack.c.h.b16 %v392
    %v1170 = vunpack.c.l.b16 %v393
    %v1171 = vunpack.c.h.b16 %v393
    %v1172 = vpack.c.b16 %v664, %v660
    %v1173 = vpack.c.b16 %v665, %v661
    %v1174 = vpack.c.b16 %v666, %v662
    %v1175 = vpack.c.b16 %v667, %v663
    %v1176 = vpack.c.b16 %v672, %v668
    %v1177 = vpack.c.b16 %v673, %v669
    %v1178 = vpack.c.b16 %v674, %v670
    %v1179 = vpack.c.b16 %v675, %v671
    %v1180 = vpack.c.b16 %v680, %v676
    %v1181 = vpack.c.b16 %v681, %v677
    %v1182 = vpack.c.b16 %v682, %v678
    %v1183 = vpack.c.b16 %v683, %v679
    %v1184 = vpack.c.b16 %v688, %v684
    %v1185 = vpack.c.b16 %v689, %v685
    %v1186 = vpack.c.b16 %v690, %v686
    %v1187 = vpack.c.b16 %v691, %v687
    %v1188 = vpack.c.b16 %v696, %v692
    %v1189 = vpack.c.b16 %v697, %v693
    %v1190 = vpack.c.b16 %v698, %v694
    %v1191 = vpack.c.b16 %v699, %v695
    %v1192 = vpack.c.b16 %v704, %v700
    %v1193 = vpack.c.b16 %v705, %v701
    %v1194 = vpack.c.b16 %v706, %v702
    %v1195 = vpack.c.b16 %v707, %v703
    %v1196 = vpack.c.b16 %v712, %v708
    %v1197 = vpack.c.b16 %v713, %v709
    %v1198 = vpack.c.b16 %v714, %v710
    %v1199 = vpack.c.b16 %v715, %v711
    %v1200 = vpack.c.b16 %v720, %v716
    %v1201 = vpack.c.b16 %v721, %v717
    %v1202 = vpack.c.b16 %v722, %v718
    %v1203 = vpack.c.b16 %v723, %v719
    %v1204 = vpack.c.b16 %v728, %v724
    %v1205 = vpack.c.b16 %v729, %v725
    %v1206 = vpack.c.b16 %v730, %v726
    %v1207 = vpack.c.b16 %v731, %v727
    %v1208 = vpack.c.b16 %v736, %v732
    %v1209 = vpack.c.b16 %v737, %v733
    %v1210 = vpack.c.b16 %v738, %v734
    %v1211 = vpack.c.b16 %v739, %v735
    %v1212 = vpack.c.b16 %v744, %v740
    %v1213 = vpack.c.b16 %v745, %v741
    %v1214 = vpack.c.b16 %v746, %v742
    %v1215 = vpack.c.b16 %v747, %v743
    %v1216 = vpack.c.b16 %v752, %v748
    %v1217 = vpack.c.b16 %v753, %v749
    %v1218 = vpack.c.b16 %v754, %v750
    %v1219 = vpack.c.b16 %v755, %v751
    %v1220 = vpack.c.b16 %v760, %v756
    %v1221 = vpack.c.b16 %v761, %v757
    %v1222 = vpack.c.b16 %v762, %v758
    %v1223 = vpack.c.b16 %v763, %v759
    %v1224 = vpack.c.b16 %v768, %v764
    %v1225 = vpack.c.b16 %v769, %v765
    %v1226 = vpack.c.b16 %v770, %v766
    %v1227 = vpack.c.b16 %v771, %v767
    %v1228 = vpack.c.b16 %v776, %v772
    %v1229 = vpack.c.b16 %v777, %v773
    %v1230 = vpack.c.b16 %v778, %v774
    %v1231 = vpack.c.b16 %v779, %v775
    %v1232 = vpack.c.b16 %v784, %v780
    %v1233 = vpack.c.b16 %v785, %v781
    %v1234 = vpack.c.b16 %v786, %v782
    %v1235 = vpack.c.b16 %v787, %v783
    %v1236 = vpack.c.b16 %v792, %v788
    %v1237 = vpack.c.b16 %v793, %v789
    %v1238 = vpack.c.b16 %v794, %v790
    %v1239 = vpack.c.b16 %v795, %v791
    %v1240 = vpack.c.b16 %v800, %v796
    %v1241 = vpack.c.b16 %v801, %v797
    %v1242 = vpack.c.b16 %v802, %v798
    %v1243 = vpack.c.b16 %v803, %v799
    %v1244 = vpack.c.b16 %v808, %v804
    %v1245 = vpack.c.b16 %v809, %v805
    %v1246 = vpack.c.b16 %v810, %v806
    %v1247 = vpack.c.b16 %v811, %v807
    %v1248 = vpack.c.b16 %v816, %v812
    %v1249 = vpack.c.b16 %v817, %v813
    %v1250 = vpack.c.b16 %v818, %v814
    %v1251 = vpack.c.b16 %v819, %v815
    %v1252 = vpack.c.b16 %v824, %v820
    %v1253 = vpack.c.b16 %v825, %v821
    %v1254 = vpack.c.b16 %v826, %v822
    %v1255 = vpack.c.b16 %v827, %v823
    %v1256 = vpack.c.b16 %v832, %v828
    %v1257 = vpack.c.b16 %v833, %v829
    %v1258 = vpack.c.b16 %v834, %v830
    %v1259 = vpack.c.b16 %v835, %v831
    %v1260 = vpack.c.b16 %v840, %v836
    %v1261 = vpack.c.b16 %v841, %v837
    %v1262 = vpack.c.b16 %v842, %v838
    %v1263 = vpack.c.b16 %v843, %v839
    %v1264 = vpack.c.b16 %v848, %v844
    %v1265 = vpack.c.b16 %v849, %v845
    %v1266 = vpack.c.b16 %v850, %v846
    %v1267 = vpack.c.b16 %v851, %v847
    %v1268 = vpack.c.b16 %v856, %v852
    %v1269 = vpack.c.b16 %v857, %v853
    %v1270 = vpack.c.b16 %v858, %v854
    %v1271 = vpack.c.b16 %v859, %v855
    %v1272 = vpack.c.b16 %v864, %v860
    %v1273 = vpack.c.b16 %v865, %v861
    %v1274 = vpack.c.b16 %v866, %v862
    %v1275 = vpack.c.b16 %v867, %v863
    %v1276 = vpack.c.b16 %v872, %v868
    %v1277 = vpack.c.b16 %v873, %v869
    %v1278 = vpack.c.b16 %v874, %v870
    %v1279 = vpack.c.b16 %v875, %v871
    %v1280 = vpack.c.b16 %v880, %v876
    %v1281 = vpack.c.b16 %v881, %v877
    %v1282 = vpack.c.b16 %v882, %v878
    %v1283 = vpack.c.b16 %v883, %v879
    %v1284 = vpack.c.b16 %v888, %v884
    %v1285 = vpack.c.b16 %v889, %v885
    %v1286 = vpack.c.b16 %v890, %v886
    %v1287 = vpack.c.b16 %v891, %v887
    %v1288 = vpack.c.b16 %v896, %v892
    %v1289 = vpack.c.b16 %v897, %v893
    %v1290 = vpack.c.b16 %v898, %v894
    %v1291 = vpack.c.b16 %v899, %v895
    %v1292 = vpack.c.b16 %v904, %v900
    %v1293 = vpack.c.b16 %v905, %v901
    %v1294 = vpack.c.b16 %v906, %v902
    %v1295 = vpack.c.b16 %v907, %v903
    %v1296 = vpack.c.b16 %v912, %v908
    %v1297 = vpack.c.b16 %v913, %v909
    %v1298 = vpack.c.b16 %v914, %v910
    %v1299 = vpack.c.b16 %v915, %v911
    %v1300 = vpack.c.b16 %v920, %v916
    %v1301 = vpack.c.b16 %v921, %v917
    %v1302 = vpack.c.b16 %v922, %v918
    %v1303 = vpack.c.b16 %v923, %v919
    %v1304 = vpack.c.b16 %v928, %v924
    %v1305 = vpack.c.b16 %v929, %v925
    %v1306 = vpack.c.b16 %v930, %v926
    %v1307 = vpack.c.b16 %v931, %v927
    %v1308 = vpack.c.b16 %v936, %v932
    %v1309 = vpack.c.b16 %v937, %v933
    %v1310 = vpack.c.b16 %v938, %v934
    %v1311 = vpack.c.b16 %v939, %v935
    %v1312 = vpack.c.b16 %v944, %v940
    %v1313 = vpack.c.b16 %v945, %v941
    %v1314 = vpack.c.b16 %v946, %v942
    %v1315 = vpack.c.b16 %v947, %v943
    %v1316 = vpack.c.b16 %v952, %v948
    %v1317 = vpack.c.b16 %v953, %v949
    %v1318 = vpack.c.b16 %v954, %v950
    %v1319 = vpack.c.b16 %v955, %v951
    %v1320 = vpack.c.b16 %v960, %v956
    %v1321 = vpack.c.b16 %v961, %v957
    %v1322 = vpack.c.b16 %v962, %v958
    %v1323 = vpack.c.b16 %v963, %v959
    %v1324 = vpack.c.b16 %v968, %v964
    %v1325 = vpack.c.b16 %v969, %v965
    %v1326 = vpack.c.b16 %v970, %v966
    %v1327 = vpack.c.b16 %v971, %v967
    %v1328 = vpack.c.b16 %v976, %v972
    %v1329 = vpack.c.b16 %v977, %v973
    %v1330 = vpack.c.b16 %v978, %v974
    %v1331 = vpack.c.b16 %v979, %v975
    %v1332 = vpack.c.b16 %v984, %v980
    %v1333 = vpack.c.b16 %v985, %v981
    %v1334 = vpack.c.b16 %v986, %v982
    %v1335 = vpack.c.b16 %v987, %v983
    %v1336 = vpack.c.b16 %v992, %v988
    %v1337 = vpack.c.b16 %v993, %v989
    %v1338 = vpack.c.b16 %v994, %v990
    %v1339 = vpack.c.b16 %v995, %v991
    %v1340 = vpack.c.b16 %v1000, %v996
    %v1341 = vpack.c.b16 %v1001, %v997
    %v1342 = vpack.c.b16 %v1002, %v998
    %v1343 = vpack.c.b16 %v1003, %v999
    %v1344 = vpack.c.b16 %v1008, %v1004
    %v1345 = vpack.c.b16 %v1009, %v1005
    %v1346 = vpack.c.b16 %v1010, %v1006
    %v1347 = vpack.c.b16 %v1011, %v1007
    %v1348 = vpack.c.b16 %v1016, %v1012
    %v1349 = vpack.c.b16 %v1017, %v1013
    %v1350 = vpack.c.b16 %v1018, %v1014
    %v1351 = vpack.c.b16 %v1019, %v1015
    %v1352 = vpack.c.b16 %v1024, %v1020
    %v1353 = vpack.c.b16 %v1025, %v1021
    %v1354 = vpack.c.b16 %v1026, %v1022
    %v1355 = vpack.c.b16 %v1027, %v1023
    %v1356 = vpack.c.b16 %v1032, %v1028
    %v1357 = vpack.c.b16 %v1033, %v1029
    %v1358 = vpack.c.b16 %v1034, %v1030
    %v1359 = vpack.c.b16 %v1035, %v1031
    %v1360 = vpack.c.b16 %v1040, %v1036
    %v1361 = vpack.c.b16 %v1041, %v1037
    %v1362 = vpack.c.b16 %v1042, %v1038
    %v1363 = vpack.c.b16 %v1043, %v1039
    %v1364 = vpack.c.b16 %v1048, %v1044
    %v1365 = vpack.c.b16 %v1049, %v1045
    %v1366 = vpack.c.b16 %v1050, %v1046
    %v1367 = vpack.c.b16 %v1051, %v1047
    %v1368 = vpack.c.b16 %v1056, %v1052
    %v1369 = vpack.c.b16 %v1057, %v1053
    %v1370 = vpack.c.b16 %v1058, %v1054
    %v1371 = vpack.c.b16 %v1059, %v1055
    %v1372 = vpack.c.b16 %v1064, %v1060
    %v1373 = vpack.c.b16 %v1065, %v1061
    %v1374 = vpack.c.b16 %v1066, %v1062
    %v1375 = vpack.c.b16 %v1067, %v1063
    %v1376 = vpack.c.b16 %v1072, %v1068
    %v1377 = vpack.c.b16 %v1073, %v1069
    %v1378 = vpack.c.b16 %v1074, %v1070
    %v1379 = vpack.c.b16 %v1075, %v1071
    %v1380 = vpack.c.b16 %v1080, %v1076
    %v1381 = vpack.c.b16 %v1081, %v1077
    %v1382 = vpack.c.b16 %v1082, %v1078
    %v1383 = vpack.c.b16 %v1083, %v1079
    %v1384 = vpack.c.b16 %v1088, %v1084
    %v1385 = vpack.c.b16 %v1089, %v1085
    %v1386 = vpack.c.b16 %v1090, %v1086
    %v1387 = vpack.c.b16 %v1091, %v1087
    %v1388 = vpack.c.b16 %v1096, %v1092
    %v1389 = vpack.c.b16 %v1097, %v1093
    %v1390 = vpack.c.b16 %v1098, %v1094
    %v1391 = vpack.c.b16 %v1099, %v1095
    %v1392 = vpack.c.b16 %v1104, %v1100
    %v1393 = vpack.c.b16 %v1105, %v1101
    %v1394 = vpack.c.b16 %v1106, %v1102
    %v1395 = vpack.c.b16 %v1107, %v1103
    %v1396 = vpack.c.b16 %v1112, %v1108
    %v1397 = vpack.c.b16 %v1113, %v1109
    %v1398 = vpack.c.b16 %v1114, %v1110
    %v1399 = vpack.c.b16 %v1115, %v1111
    %v1400 = vpack.c.b16 %v1120, %v1116
    %v1401 = vpack.c.b16 %v1121, %v1117
    %v1402 = vpack.c.b16 %v1122, %v1118
    %v1403 = vpack.c.b16 %v1123, %v1119
    %v1404 = vpack.c.b16 %v1128, %v1124
    %v1405 = vpack.c.b16 %v1129, %v1125
    %v1406 = vpack.c.b16 %v1130, %v1126
    %v1407 = vpack.c.b16 %v1131, %v1127
    %v1408 = vpack.c.b16 %v1136, %v1132
    %v1409 = vpack.c.b16 %v1137, %v1133
    %v1410 = vpack.c.b16 %v1138, %v1134
    %v1411 = vpack.c.b16 %v1139, %v1135
    %v1412 = vpack.c.b16 %v1144, %v1140
    %v1413 = vpack.c.b16 %v1145, %v1141
    %v1414 = vpack.c.b16 %v1146, %v1142
    %v1415 = vpack.c.b16 %v1147, %v1143
    %v1416 = vpack.c.b16 %v1152, %v1148
    %v1417 = vpack.c.b16 %v1153, %v1149
    %v1418 = vpack.c.b16 %v1154, %v1150
    %v1419 = vpack.c.b16 %v1155, %v1151
    %v1420 = vpack.c.b16 %v1160, %v1156
    %v1421 = vpack.c.b16 %v1161, %v1157
    %v1422 = vpack.c.b16 %v1162, %v1158
    %v1423 = vpack.c.b16 %v1163, %v1159
    %v1424 = vpack.c.b16 %v1168, %v1164
    %v1425 = vpack.c.b16 %v1169, %v1165
    %v1426 = vpack.c.b16 %v1170, %v1166
    %v1427 = vpack.c.b16 %v1171, %v1167
    %1684 = vmatpush.bf16.msra.mxu0 %v1200
    %1685 = vmatpush.bf16.msra.mxu0 %v1196
    %1686 = vmatpush.bf16.msra.mxu0 %v1192
    %1687 = vmatpush.bf16.msra.mxu0 %v1188
    %1688 = vmatpush.bf16.msra.mxu0 %v1184
    %1689 = vmatpush.bf16.msra.mxu0 %v1180
    %1690 = vmatpush.bf16.msra.mxu0 %v1176
    %1691 = vmatpush.bf16.msra.mxu0 %v1172
    %1692 = vmatmul.bf16.gmra.mxu0 %v130
    %v1693 = vpop.f32.mrf.mxu0
    %v1694 = vadd.f32 %v396, %v1693
    %v1695 = vpop.f32.mrf.mxu0
    %1696 = vdwg.mxu0
    %1697 = vmatpush.bf16.msra.mxu0 %v1232
    %1698 = vmatpush.bf16.msra.mxu0 %v1228
    %1699 = vmatpush.bf16.msra.mxu0 %v1224
    %1700 = vmatpush.bf16.msra.mxu0 %v1220
    %1701 = vmatpush.bf16.msra.mxu0 %v1216
    %1702 = vmatpush.bf16.msra.mxu0 %v1212
    %1703 = vmatpush.bf16.msra.mxu0 %v1208
    %1704 = vmatpush.bf16.msra.mxu0 %v1204
    %1705 = vmatmul.bf16.gmra.mxu0 %v131
    %v1706 = vpop.f32.mrf.mxu0
    %v1707 = vadd.f32 %v1694, %v1706
    %v1708 = vpop.f32.mrf.mxu0
    %1709 = vdwg.mxu0
    %1710 = vmatpush.bf16.msra.mxu0 %v1264
    %1711 = vmatpush.bf16.msra.mxu0 %v1260
    %1712 = vmatpush.bf16.msra.mxu0 %v1256
    %1713 = vmatpush.bf16.msra.mxu0 %v1252
    %1714 = vmatpush.bf16.msra.mxu0 %v1248
    %1715 = vmatpush.bf16.msra.mxu0 %v1244
    %1716 = vmatpush.bf16.msra.mxu0 %v1240
    %1717 = vmatpush.bf16.msra.mxu0 %v1236
    %1718 = vmatmul.bf16.gmra.mxu0 %v132
    %v1719 = vpop.f32.mrf.mxu0
    %v1720 = vadd.f32 %v1707, %v1719
    %v1721 = vpop.f32.mrf.mxu0
    %1722 = vdwg.mxu0
    %1723 = vmatpush.bf16.msra.mxu0 %v1296
    %1724 = vmatpush.bf16.msra.mxu0 %v1292
    %1725 = vmatpush.bf16.msra.mxu0 %v1288
    %1726 = vmatpush.bf16.msra.mxu0 %v1284
    %1727 = vmatpush.bf16.msra.mxu0 %v1280
    %1728 = vmatpush.bf16.msra.mxu0 %v1276
    %1729 = vmatpush.bf16.msra.mxu0 %v1272
    %1730 = vmatpush.bf16.msra.mxu0 %v1268
    %1731 = vmatmul.bf16.gmra.mxu0 %v133
    %v1732 = vpop.f32.mrf.mxu0
    %v1733 = vadd.f32 %v1720, %v1732
    %v1734 = vpop.f32.mrf.mxu0
    %1735 = vdwg.mxu0
    %1736 = vmatpush.bf16.msra.mxu0 %v1328
    %1737 = vmatpush.bf16.msra.mxu0 %v1324
    %1738 = vmatpush.bf16.msra.mxu0 %v1320
    %1739 = vmatpush.bf16.msra.mxu0 %v1316
    %1740 = vmatpush.bf16.msra.mxu0 %v1312
    %1741 = vmatpush.bf16.msra.mxu0 %v1308
    %1742 = vmatpush.bf16.msra.mxu0 %v1304
    %1743 = vmatpush.bf16.msra.mxu0 %v1300
    %1744 = vmatmul.bf16.gmra.mxu0 %v134
    %v1745 = vpop.f32.mrf.mxu0
    %v1746 = vadd.f32 %v1733, %v1745
    %v1747 = vpop.f32.mrf.mxu0
    %1748 = vdwg.mxu0
    %1749 = vmatpush.bf16.msra.mxu0 %v1360
    %1750 = vmatpush.bf16.msra.mxu0 %v1356
    %1751 = vmatpush.bf16.msra.mxu0 %v1352
    %1752 = vmatpush.bf16.msra.mxu0 %v1348
    %1753 = vmatpush.bf16.msra.mxu0 %v1344
    %1754 = vmatpush.bf16.msra.mxu0 %v1340
    %1755 = vmatpush.bf16.msra.mxu0 %v1336
    %1756 = vmatpush.bf16.msra.mxu0 %v1332
    %1757 = vmatmul.bf16.gmra.mxu0 %v135
    %v1758 = vpop.f32.mrf.mxu0
    %v1759 = vadd.f32 %v1746, %v1758
    %v1760 = vpop.f32.mrf.mxu0
    %1761 = vdwg.mxu0
    %1762 = vmatpush.bf16.msra.mxu0 %v1392
    %1763 = vmatpush.bf16.msra.mxu0 %v1388
    %1764 = vmatpush.bf16.msra.mxu0 %v1384
    %1765 = vmatpush.bf16.msra.mxu0 %v1380
    %1766 = vmatpush.bf16.msra.mxu0 %v1376
    %1767 = vmatpush.bf16.msra.mxu0 %v1372
    %1768 = vmatpush.bf16.msra.mxu0 %v1368
    %1769 = vmatpush.bf16.msra.mxu0 %v1364
    %1770 = vmatmul.bf16.gmra.mxu0 %v136
    %v1771 = vpop.f32.mrf.mxu0
    %v1772 = vadd.f32 %v1759, %v1771
    %v1773 = vpop.f32.mrf.mxu0
    %1774 = vdwg.mxu0
    %1775 = vmatpush.bf16.msra.mxu0 %v1424
    %1776 = vmatpush.bf16.msra.mxu0 %v1420
    %1777 = vmatpush.bf16.msra.mxu0 %v1416
    %1778 = vmatpush.bf16.msra.mxu0 %v1412
    %1779 = vmatpush.bf16.msra.mxu0 %v1408
    %1780 = vmatpush.bf16.msra.mxu0 %v1404
    %1781 = vmatpush.bf16.msra.mxu0 %v1400
    %1782 = vmatpush.bf16.msra.mxu0 %v1396
    %1783 = vmatmul.bf16.gmra.mxu0 %v137
    %v1784 = vpop.f32.mrf.mxu0
    %v1785 = vadd.f32 %v1772, %v1784
    %v1786 = vpop.f32.mrf.mxu0
    %1787 = vdwg.mxu0
    %1788 = vmatpush.bf16.msra.mxu0 %v1201
    %1789 = vmatpush.bf16.msra.mxu0 %v1197
    %1790 = vmatpush.bf16.msra.mxu0 %v1193
    %1791 = vmatpush.bf16.msra.mxu0 %v1189
    %1792 = vmatpush.bf16.msra.mxu0 %v1185
    %1793 = vmatpush.bf16.msra.mxu0 %v1181
    %1794 = vmatpush.bf16.msra.mxu0 %v1177
    %1795 = vmatpush.bf16.msra.mxu0 %v1173
    %1796 = vmatmul.bf16.gmra.mxu0 %v130
    %v1797 = vpop.f32.mrf.mxu0
    %v1798 = vadd.f32 %v397, %v1797
    %v1799 = vpop.f32.mrf.mxu0
    %1800 = vdwg.mxu0
    %1801 = vmatpush.bf16.msra.mxu0 %v1233
    %1802 = vmatpush.bf16.msra.mxu0 %v1229
    %1803 = vmatpush.bf16.msra.mxu0 %v1225
    %1804 = vmatpush.bf16.msra.mxu0 %v1221
    %1805 = vmatpush.bf16.msra.mxu0 %v1217
    %1806 = vmatpush.bf16.msra.mxu0 %v1213
    %1807 = vmatpush.bf16.msra.mxu0 %v1209
    %1808 = vmatpush.bf16.msra.mxu0 %v1205
    %1809 = vmatmul.bf16.gmra.mxu0 %v131
    %v1810 = vpop.f32.mrf.mxu0
    %v1811 = vadd.f32 %v1798, %v1810
    %v1812 = vpop.f32.mrf.mxu0
    %1813 = vdwg.mxu0
    %1814 = vmatpush.bf16.msra.mxu0 %v1265
    %1815 = vmatpush.bf16.msra.mxu0 %v1261
    %1816 = vmatpush.bf16.msra.mxu0 %v1257
    %1817 = vmatpush.bf16.msra.mxu0 %v1253
    %1818 = vmatpush.bf16.msra.mxu0 %v1249
    %1819 = vmatpush.bf16.msra.mxu0 %v1245
    %1820 = vmatpush.bf16.msra.mxu0 %v1241
    %1821 = vmatpush.bf16.msra.mxu0 %v1237
    %1822 = vmatmul.bf16.gmra.mxu0 %v132
    %v1823 = vpop.f32.mrf.mxu0
    %v1824 = vadd.f32 %v1811, %v1823
    %v1825 = vpop.f32.mrf.mxu0
    %1826 = vdwg.mxu0
    %1827 = vmatpush.bf16.msra.mxu0 %v1297
    %1828 = vmatpush.bf16.msra.mxu0 %v1293
    %1829 = vmatpush.bf16.msra.mxu0 %v1289
    %1830 = vmatpush.bf16.msra.mxu0 %v1285
    %1831 = vmatpush.bf16.msra.mxu0 %v1281
    %1832 = vmatpush.bf16.msra.mxu0 %v1277
    %1833 = vmatpush.bf16.msra.mxu0 %v1273
    %1834 = vmatpush.bf16.msra.mxu0 %v1269
    %1835 = vmatmul.bf16.gmra.mxu0 %v133
    %v1836 = vpop.f32.mrf.mxu0
    %v1837 = vadd.f32 %v1824, %v1836
    %v1838 = vpop.f32.mrf.mxu0
    %1839 = vdwg.mxu0
    %1840 = vmatpush.bf16.msra.mxu0 %v1329
    %1841 = vmatpush.bf16.msra.mxu0 %v1325
    %1842 = vmatpush.bf16.msra.mxu0 %v1321
    %1843 = vmatpush.bf16.msra.mxu0 %v1317
    %1844 = vmatpush.bf16.msra.mxu0 %v1313
    %1845 = vmatpush.bf16.msra.mxu0 %v1309
    %1846 = vmatpush.bf16.msra.mxu0 %v1305
    %1847 = vmatpush.bf16.msra.mxu0 %v1301
    %1848 = vmatmul.bf16.gmra.mxu0 %v134
    %v1849 = vpop.f32.mrf.mxu0
    %v1850 = vadd.f32 %v1837, %v1849
    %v1851 = vpop.f32.mrf.mxu0
    %1852 = vdwg.mxu0
    %1853 = vmatpush.bf16.msra.mxu0 %v1361
    %1854 = vmatpush.bf16.msra.mxu0 %v1357
    %1855 = vmatpush.bf16.msra.mxu0 %v1353
    %1856 = vmatpush.bf16.msra.mxu0 %v1349
    %1857 = vmatpush.bf16.msra.mxu0 %v1345
    %1858 = vmatpush.bf16.msra.mxu0 %v1341
    %1859 = vmatpush.bf16.msra.mxu0 %v1337
    %1860 = vmatpush.bf16.msra.mxu0 %v1333
    %1861 = vmatmul.bf16.gmra.mxu0 %v135
    %v1862 = vpop.f32.mrf.mxu0
    %v1863 = vadd.f32 %v1850, %v1862
    %v1864 = vpop.f32.mrf.mxu0
    %1865 = vdwg.mxu0
    %1866 = vmatpush.bf16.msra.mxu0 %v1393
    %1867 = vmatpush.bf16.msra.mxu0 %v1389
    %1868 = vmatpush.bf16.msra.mxu0 %v1385
    %1869 = vmatpush.bf16.msra.mxu0 %v1381
    %1870 = vmatpush.bf16.msra.mxu0 %v1377
    %1871 = vmatpush.bf16.msra.mxu0 %v1373
    %1872 = vmatpush.bf16.msra.mxu0 %v1369
    %1873 = vmatpush.bf16.msra.mxu0 %v1365
    %1874 = vmatmul.bf16.gmra.mxu0 %v136
    %v1875 = vpop.f32.mrf.mxu0
    %v1876 = vadd.f32 %v1863, %v1875
    %v1877 = vpop.f32.mrf.mxu0
    %1878 = vdwg.mxu0
    %1879 = vmatpush.bf16.msra.mxu0 %v1425
    %1880 = vmatpush.bf16.msra.mxu0 %v1421
    %1881 = vmatpush.bf16.msra.mxu0 %v1417
    %1882 = vmatpush.bf16.msra.mxu0 %v1413
    %1883 = vmatpush.bf16.msra.mxu0 %v1409
    %1884 = vmatpush.bf16.msra.mxu0 %v1405
    %1885 = vmatpush.bf16.msra.mxu0 %v1401
    %1886 = vmatpush.bf16.msra.mxu0 %v1397
    %1887 = vmatmul.bf16.gmra.mxu0 %v137
    %v1888 = vpop.f32.mrf.mxu0
    %v1889 = vadd.f32 %v1876, %v1888
    %v1890 = vpop.f32.mrf.mxu0
    %1891 = vdwg.mxu0
    %1892 = vmatpush.bf16.msra.mxu0 %v1202
    %1893 = vmatpush.bf16.msra.mxu0 %v1198
    %1894 = vmatpush.bf16.msra.mxu0 %v1194
    %1895 = vmatpush.bf16.msra.mxu0 %v1190
    %1896 = vmatpush.bf16.msra.mxu0 %v1186
    %1897 = vmatpush.bf16.msra.mxu0 %v1182
    %1898 = vmatpush.bf16.msra.mxu0 %v1178
    %1899 = vmatpush.bf16.msra.mxu0 %v1174
    %1900 = vmatmul.bf16.gmra.mxu0 %v130
    %v1901 = vpop.f32.mrf.mxu0
    %v1902 = vadd.f32 %v398, %v1901
    %v1903 = vpop.f32.mrf.mxu0
    %1904 = vdwg.mxu0
    %1905 = vmatpush.bf16.msra.mxu0 %v1234
    %1906 = vmatpush.bf16.msra.mxu0 %v1230
    %1907 = vmatpush.bf16.msra.mxu0 %v1226
    %1908 = vmatpush.bf16.msra.mxu0 %v1222
    %1909 = vmatpush.bf16.msra.mxu0 %v1218
    %1910 = vmatpush.bf16.msra.mxu0 %v1214
    %1911 = vmatpush.bf16.msra.mxu0 %v1210
    %1912 = vmatpush.bf16.msra.mxu0 %v1206
    %1913 = vmatmul.bf16.gmra.mxu0 %v131
    %v1914 = vpop.f32.mrf.mxu0
    %v1915 = vadd.f32 %v1902, %v1914
    %v1916 = vpop.f32.mrf.mxu0
    %1917 = vdwg.mxu0
    %1918 = vmatpush.bf16.msra.mxu0 %v1266
    %1919 = vmatpush.bf16.msra.mxu0 %v1262
    %1920 = vmatpush.bf16.msra.mxu0 %v1258
    %1921 = vmatpush.bf16.msra.mxu0 %v1254
    %1922 = vmatpush.bf16.msra.mxu0 %v1250
    %1923 = vmatpush.bf16.msra.mxu0 %v1246
    %1924 = vmatpush.bf16.msra.mxu0 %v1242
    %1925 = vmatpush.bf16.msra.mxu0 %v1238
    %1926 = vmatmul.bf16.gmra.mxu0 %v132
    %v1927 = vpop.f32.mrf.mxu0
    %v1928 = vadd.f32 %v1915, %v1927
    %v1929 = vpop.f32.mrf.mxu0
    %1930 = vdwg.mxu0
    %1931 = vmatpush.bf16.msra.mxu0 %v1298
    %1932 = vmatpush.bf16.msra.mxu0 %v1294
    %1933 = vmatpush.bf16.msra.mxu0 %v1290
    %1934 = vmatpush.bf16.msra.mxu0 %v1286
    %1935 = vmatpush.bf16.msra.mxu0 %v1282
    %1936 = vmatpush.bf16.msra.mxu0 %v1278
    %1937 = vmatpush.bf16.msra.mxu0 %v1274
    %1938 = vmatpush.bf16.msra.mxu0 %v1270
    %1939 = vmatmul.bf16.gmra.mxu0 %v133
    %v1940 = vpop.f32.mrf.mxu0
    %v1941 = vadd.f32 %v1928, %v1940
    %v1942 = vpop.f32.mrf.mxu0
    %1943 = vdwg.mxu0
    %1944 = vmatpush.bf16.msra.mxu0 %v1330
    %1945 = vmatpush.bf16.msra.mxu0 %v1326
    %1946 = vmatpush.bf16.msra.mxu0 %v1322
    %1947 = vmatpush.bf16.msra.mxu0 %v1318
    %1948 = vmatpush.bf16.msra.mxu0 %v1314
    %1949 = vmatpush.bf16.msra.mxu0 %v1310
    %1950 = vmatpush.bf16.msra.mxu0 %v1306
    %1951 = vmatpush.bf16.msra.mxu0 %v1302
    %1952 = vmatmul.bf16.gmra.mxu0 %v134
    %v1953 = vpop.f32.mrf.mxu0
    %v1954 = vadd.f32 %v1941, %v1953
    %v1955 = vpop.f32.mrf.mxu0
    %1956 = vdwg.mxu0
    %1957 = vmatpush.bf16.msra.mxu0 %v1362
    %1958 = vmatpush.bf16.msra.mxu0 %v1358
    %1959 = vmatpush.bf16.msra.mxu0 %v1354
    %1960 = vmatpush.bf16.msra.mxu0 %v1350
    %1961 = vmatpush.bf16.msra.mxu0 %v1346
    %1962 = vmatpush.bf16.msra.mxu0 %v1342
    %1963 = vmatpush.bf16.msra.mxu0 %v1338
    %1964 = vmatpush.bf16.msra.mxu0 %v1334
    %1965 = vmatmul.bf16.gmra.mxu0 %v135
    %v1966 = vpop.f32.mrf.mxu0
    %v1967 = vadd.f32 %v1954, %v1966
    %v1968 = vpop.f32.mrf.mxu0
    %1969 = vdwg.mxu0
    %1970 = vmatpush.bf16.msra.mxu0 %v1394
    %1971 = vmatpush.bf16.msra.mxu0 %v1390
    %1972 = vmatpush.bf16.msra.mxu0 %v1386
    %1973 = vmatpush.bf16.msra.mxu0 %v1382
    %1974 = vmatpush.bf16.msra.mxu0 %v1378
    %1975 = vmatpush.bf16.msra.mxu0 %v1374
    %1976 = vmatpush.bf16.msra.mxu0 %v1370
    %1977 = vmatpush.bf16.msra.mxu0 %v1366
    %1978 = vmatmul.bf16.gmra.mxu0 %v136
    %v1979 = vpop.f32.mrf.mxu0
    %v1980 = vadd.f32 %v1967, %v1979
    %v1981 = vpop.f32.mrf.mxu0
    %1982 = vdwg.mxu0
    %1983 = vmatpush.bf16.msra.mxu0 %v1426
    %1984 = vmatpush.bf16.msra.mxu0 %v1422
    %1985 = vmatpush.bf16.msra.mxu0 %v1418
    %1986 = vmatpush.bf16.msra.mxu0 %v1414
    %1987 = vmatpush.bf16.msra.mxu0 %v1410
    %1988 = vmatpush.bf16.msra.mxu0 %v1406
    %1989 = vmatpush.bf16.msra.mxu0 %v1402
    %1990 = vmatpush.bf16.msra.mxu0 %v1398
    %1991 = vmatmul.bf16.gmra.mxu0 %v137
    %v1992 = vpop.f32.mrf.mxu0
    %v1993 = vadd.f32 %v1980, %v1992
    %v1994 = vpop.f32.mrf.mxu0
    %1995 = vdwg.mxu0
    %1996 = vmatpush.bf16.msra.mxu0 %v1203
    %1997 = vmatpush.bf16.msra.mxu0 %v1199
    %1998 = vmatpush.bf16.msra.mxu0 %v1195
    %1999 = vmatpush.bf16.msra.mxu0 %v1191
    %2000 = vmatpush.bf16.msra.mxu0 %v1187
    %2001 = vmatpush.bf16.msra.mxu0 %v1183
    %2002 = vmatpush.bf16.msra.mxu0 %v1179
    %2003 = vmatpush.bf16.msra.mxu0 %v1175
    %2004 = vmatmul.bf16.gmra.mxu0 %v130
    %v2005 = vpop.f32.mrf.mxu0
    %v2006 = vadd.f32 %v399, %v2005
    %v2007 = vpop.f32.mrf.mxu0
    %2008 = vdwg.mxu0
    %2009 = vmatpush.bf16.msra.mxu0 %v1235
    %2010 = vmatpush.bf16.msra.mxu0 %v1231
    %2011 = vmatpush.bf16.msra.mxu0 %v1227
    %2012 = vmatpush.bf16.msra.mxu0 %v1223
    %2013 = vmatpush.bf16.msra.mxu0 %v1219
    %2014 = vmatpush.bf16.msra.mxu0 %v1215
    %2015 = vmatpush.bf16.msra.mxu0 %v1211
    %2016 = vmatpush.bf16.msra.mxu0 %v1207
    %2017 = vmatmul.bf16.gmra.mxu0 %v131
    %v2018 = vpop.f32.mrf.mxu0
    %v2019 = vadd.f32 %v2006, %v2018
    %v2020 = vpop.f32.mrf.mxu0
    %2021 = vdwg.mxu0
    %2022 = vmatpush.bf16.msra.mxu0 %v1267
    %2023 = vmatpush.bf16.msra.mxu0 %v1263
    %2024 = vmatpush.bf16.msra.mxu0 %v1259
    %2025 = vmatpush.bf16.msra.mxu0 %v1255
    %2026 = vmatpush.bf16.msra.mxu0 %v1251
    %2027 = vmatpush.bf16.msra.mxu0 %v1247
    %2028 = vmatpush.bf16.msra.mxu0 %v1243
    %2029 = vmatpush.bf16.msra.mxu0 %v1239
    %2030 = vmatmul.bf16.gmra.mxu0 %v132
    %v2031 = vpop.f32.mrf.mxu0
    %v2032 = vadd.f32 %v2019, %v2031
    %v2033 = vpop.f32.mrf.mxu0
    %2034 = vdwg.mxu0
    %2035 = vmatpush.bf16.msra.mxu0 %v1299
    %2036 = vmatpush.bf16.msra.mxu0 %v1295
    %2037 = vmatpush.bf16.msra.mxu0 %v1291
    %2038 = vmatpush.bf16.msra.mxu0 %v1287
    %2039 = vmatpush.bf16.msra.mxu0 %v1283
    %2040 = vmatpush.bf16.msra.mxu0 %v1279
    %2041 = vmatpush.bf16.msra.mxu0 %v1275
    %2042 = vmatpush.bf16.msra.mxu0 %v1271
    %2043 = vmatmul.bf16.gmra.mxu0 %v133
    %v2044 = vpop.f32.mrf.mxu0
    %v2045 = vadd.f32 %v2032, %v2044
    %v2046 = vpop.f32.mrf.mxu0
    %2047 = vdwg.mxu0
    %2048 = vmatpush.bf16.msra.mxu0 %v1331
    %2049 = vmatpush.bf16.msra.mxu0 %v1327
    %2050 = vmatpush.bf16.msra.mxu0 %v1323
    %2051 = vmatpush.bf16.msra.mxu0 %v1319
    %2052 = vmatpush.bf16.msra.mxu0 %v1315
    %2053 = vmatpush.bf16.msra.mxu0 %v1311
    %2054 = vmatpush.bf16.msra.mxu0 %v1307
    %2055 = vmatpush.bf16.msra.mxu0 %v1303
    %2056 = vmatmul.bf16.gmra.mxu0 %v134
    %v2057 = vpop.f32.mrf.mxu0
    %v2058 = vadd.f32 %v2045, %v2057
    %v2059 = vpop.f32.mrf.mxu0
    %2060 = vdwg.mxu0
    %2061 = vmatpush.bf16.msra.mxu0 %v1363
    %2062 = vmatpush.bf16.msra.mxu0 %v1359
    %2063 = vmatpush.bf16.msra.mxu0 %v1355
    %2064 = vmatpush.bf16.msra.mxu0 %v1351
    %2065 = vmatpush.bf16.msra.mxu0 %v1347
    %2066 = vmatpush.bf16.msra.mxu0 %v1343
    %2067 = vmatpush.bf16.msra.mxu0 %v1339
    %2068 = vmatpush.bf16.msra.mxu0 %v1335
    %2069 = vmatmul.bf16.gmra.mxu0 %v135
    %v2070 = vpop.f32.mrf.mxu0
    %v2071 = vadd.f32 %v2058, %v2070
    %v2072 = vpop.f32.mrf.mxu0
    %2073 = vdwg.mxu0
    %2074 = vmatpush.bf16.msra.mxu0 %v1395
    %2075 = vmatpush.bf16.msra.mxu0 %v1391
    %2076 = vmatpush.bf16.msra.mxu0 %v1387
    %2077 = vmatpush.bf16.msra.mxu0 %v1383
    %2078 = vmatpush.bf16.msra.mxu0 %v1379
    %2079 = vmatpush.bf16.msra.mxu0 %v1375
    %2080 = vmatpush.bf16.msra.mxu0 %v1371
    %2081 = vmatpush.bf16.msra.mxu0 %v1367
    %2082 = vmatmul.bf16.gmra.mxu0 %v136
    %v2083 = vpop.f32.mrf.mxu0
    %v2084 = vadd.f32 %v2071, %v2083
    %v2085 = vpop.f32.mrf.mxu0
    %2086 = vdwg.mxu0
    %2087 = vmatpush.bf16.msra.mxu0 %v1427
    %2088 = vmatpush.bf16.msra.mxu0 %v1423
    %2089 = vmatpush.bf16.msra.mxu0 %v1419
    %2090 = vmatpush.bf16.msra.mxu0 %v1415
    %2091 = vmatpush.bf16.msra.mxu0 %v1411
    %2092 = vmatpush.bf16.msra.mxu0 %v1407
    %2093 = vmatpush.bf16.msra.mxu0 %v1403
    %2094 = vmatpush.bf16.msra.mxu0 %v1399
    %2095 = vmatmul.bf16.gmra.mxu0 %v137
    %v2096 = vpop.f32.mrf.mxu0
    %v2097 = vadd.f32 %v2084, %v2096
    %v2098 = vpop.f32.mrf.mxu0
    %2099 = vdwg.mxu0
    %v2100 = vxor.u32 %v1785, 2147483648
    %v2101 = vxor.u32 %v1889, 2147483648
    %v2102 = vxor.u32 %v1993, 2147483648
    %v2103 = vxor.u32 %v2097, 2147483648
    %v2104 = vmul.f32 %v2100, 1.442695
    %v2105 = vpow.pop %v2104
    %v2106 = vmul.f32 %v2101, 1.442695
    %v2107 = vpow.pop %v2106
    %v2108 = vmul.f32 %v2102, 1.442695
    %v2109 = vpow.pop %v2108
    %v2110 = vmul.f32 %v2103, 1.442695
    %v2111 = vpow.pop %v2110
    %v2112 = vadd.f32 %v2105, 1.0
    %v2113 = vadd.f32 %v2107, 1.0
    %v2114 = vadd.f32 %v2109, 1.0
    %v2115 = vadd.f32 %v2111, 1.0
    %v2116 = vrcp.pop %v2112
    %v2117 = vmul.f32 %v2112, %v2116
    %v2118 = vsub.f32 1.0, %v2117
    %v2119 = vmul.f32 %v2116, %v2118
    %v2120 = vadd.f32 %v2116, %v2119
    %vm2121 = vweird.f32 %v2112
    %vm2122 = vweird.f32 %v2116
    %vm2123 = vmor %vm2121, %vm2122
    %v2124 = vsel %vm2123, %v2116, %v2120
    %v2125 = vand.u32 2147483647, %v2112
    %vm2126 = vcmp.eq.f32.partialorder %v2125, 8.507059e+37
    %v2127 = vand.u32 %v2112, 2147483648
    %v2128 = vor.u32 1.1754944e-38, %v2127
    %v2129 = vsel %vm2126, %v2128, %v2124
    %v2130 = vmul.f32 1.0, %v2129
    %v2131 = vrcp.pop %v2113
    %v2132 = vmul.f32 %v2113, %v2131
    %v2133 = vsub.f32 1.0, %v2132
    %v2134 = vmul.f32 %v2131, %v2133
    %v2135 = vadd.f32 %v2131, %v2134
    %vm2136 = vweird.f32 %v2113
    %vm2137 = vweird.f32 %v2131
    %vm2138 = vmor %vm2136, %vm2137
    %v2139 = vsel %vm2138, %v2131, %v2135
    %v2140 = vand.u32 2147483647, %v2113
    %vm2141 = vcmp.eq.f32.partialorder %v2140, 8.507059e+37
    %v2142 = vand.u32 %v2113, 2147483648
    %v2143 = vor.u32 1.1754944e-38, %v2142
    %v2144 = vsel %vm2141, %v2143, %v2139
    %v2145 = vmul.f32 1.0, %v2144
    %v2146 = vrcp.pop %v2114
    %v2147 = vmul.f32 %v2114, %v2146
    %v2148 = vsub.f32 1.0, %v2147
    %v2149 = vmul.f32 %v2146, %v2148
    %v2150 = vadd.f32 %v2146, %v2149
    %vm2151 = vweird.f32 %v2114
    %vm2152 = vweird.f32 %v2146
    %vm2153 = vmor %vm2151, %vm2152
    %v2154 = vsel %vm2153, %v2146, %v2150
    %v2155 = vand.u32 2147483647, %v2114
    %vm2156 = vcmp.eq.f32.partialorder %v2155, 8.507059e+37
    %v2157 = vand.u32 %v2114, 2147483648
    %v2158 = vor.u32 1.1754944e-38, %v2157
    %v2159 = vsel %vm2156, %v2158, %v2154
    %v2160 = vmul.f32 1.0, %v2159
    %v2161 = vrcp.pop %v2115
    %v2162 = vmul.f32 %v2115, %v2161
    %v2163 = vsub.f32 1.0, %v2162
    %v2164 = vmul.f32 %v2161, %v2163
    %v2165 = vadd.f32 %v2161, %v2164
    %vm2166 = vweird.f32 %v2115
    %vm2167 = vweird.f32 %v2161
    %vm2168 = vmor %vm2166, %vm2167
    %v2169 = vsel %vm2168, %v2161, %v2165
    %v2170 = vand.u32 2147483647, %v2115
    %vm2171 = vcmp.eq.f32.partialorder %v2170, 8.507059e+37
    %v2172 = vand.u32 %v2115, 2147483648
    %v2173 = vor.u32 1.1754944e-38, %v2172
    %v2174 = vsel %vm2171, %v2173, %v2169
    %v2175 = vmul.f32 1.0, %v2174
    %v2176 = vmul.f32 %v1785, %v2130
    %v2177 = vmul.f32 %v1889, %v2145
    %v2178 = vmul.f32 %v1993, %v2160
    %v2179 = vmul.f32 %v2097, %v2175
    %v2180 = vpack.c.bf16 %v2176, %v2176
    %v2181 = vpack.c.bf16 %v2177, %v2177
    %v2182 = vpack.c.bf16 %v2178, %v2178
    %v2183 = vpack.c.bf16 %v2179, %v2179
    %v2184 = vld [vmem:[#allocation4] sm:$0xff]
    %v2185 = vld [vmem:[#allocation4 + $0x8] sm:$0xff]
    %v2186 = vld [vmem:[#allocation4 + $0x10] sm:$0xff]
    %v2187 = vld [vmem:[#allocation4 + $0x18] sm:$0xff]
    %v2188 = vld [vmem:[#allocation4 + $0x20] sm:$0xff]
    %v2189 = vld [vmem:[#allocation4 + $0x28] sm:$0xff]
    %v2190 = vld [vmem:[#allocation4 + $0x30] sm:$0xff]
    %v2191 = vld [vmem:[#allocation4 + $0x38] sm:$0xff]
    %v2192 = vld [vmem:[#allocation4 + $0x40] sm:$0xff]
    %v2193 = vld [vmem:[#allocation4 + $0x48] sm:$0xff]
    %v2194 = vld [vmem:[#allocation4 + $0x50] sm:$0xff]
    %v2195 = vld [vmem:[#allocation4 + $0x58] sm:$0xff]
    %v2196 = vld [vmem:[#allocation4 + $0x60] sm:$0xff]
    %v2197 = vld [vmem:[#allocation4 + $0x68] sm:$0xff]
    %v2198 = vld [vmem:[#allocation4 + $0x70] sm:$0xff]
    %v2199 = vld [vmem:[#allocation4 + $0x78] sm:$0xff]
    %v2200 = vld [vmem:[#allocation4 + $0x80] sm:$0xff]
    %v2201 = vld [vmem:[#allocation4 + $0x88] sm:$0xff]
    %v2202 = vld [vmem:[#allocation4 + $0x90] sm:$0xff]
    %v2203 = vld [vmem:[#allocation4 + $0x98] sm:$0xff]
    %v2204 = vld [vmem:[#allocation4 + $0xa0] sm:$0xff]
    %v2205 = vld [vmem:[#allocation4 + $0xa8] sm:$0xff]
    %v2206 = vld [vmem:[#allocation4 + $0xb0] sm:$0xff]
    %v2207 = vld [vmem:[#allocation4 + $0xb8] sm:$0xff]
    %v2208 = vld [vmem:[#allocation4 + $0xc0] sm:$0xff]
    %v2209 = vld [vmem:[#allocation4 + $0xc8] sm:$0xff]
    %v2210 = vld [vmem:[#allocation4 + $0xd0] sm:$0xff]
    %v2211 = vld [vmem:[#allocation4 + $0xd8] sm:$0xff]
    %v2212 = vld [vmem:[#allocation4 + $0xe0] sm:$0xff]
    %v2213 = vld [vmem:[#allocation4 + $0xe8] sm:$0xff]
    %v2214 = vld [vmem:[#allocation4 + $0xf0] sm:$0xff]
    %v2215 = vld [vmem:[#allocation4 + $0xf8] sm:$0xff]
    %v2216 = vld [vmem:[#allocation4 + $0x100] sm:$0xff]
    %v2217 = vld [vmem:[#allocation4 + $0x108] sm:$0xff]
    %v2218 = vld [vmem:[#allocation4 + $0x110] sm:$0xff]
    %v2219 = vld [vmem:[#allocation4 + $0x118] sm:$0xff]
    %v2220 = vld [vmem:[#allocation4 + $0x120] sm:$0xff]
    %v2221 = vld [vmem:[#allocation4 + $0x128] sm:$0xff]
    %v2222 = vld [vmem:[#allocation4 + $0x130] sm:$0xff]
    %v2223 = vld [vmem:[#allocation4 + $0x138] sm:$0xff]
    %v2224 = vld [vmem:[#allocation4 + $0x140] sm:$0xff]
    %v2225 = vld [vmem:[#allocation4 + $0x148] sm:$0xff]
    %v2226 = vld [vmem:[#allocation4 + $0x150] sm:$0xff]
    %v2227 = vld [vmem:[#allocation4 + $0x158] sm:$0xff]
    %v2228 = vld [vmem:[#allocation4 + $0x160] sm:$0xff]
    %v2229 = vld [vmem:[#allocation4 + $0x168] sm:$0xff]
    %v2230 = vld [vmem:[#allocation4 + $0x170] sm:$0xff]
    %v2231 = vld [vmem:[#allocation4 + $0x178] sm:$0xff]
    %v2232 = vld [vmem:[#allocation4 + $0x180] sm:$0xff]
    %v2233 = vld [vmem:[#allocation4 + $0x188] sm:$0xff]
    %v2234 = vld [vmem:[#allocation4 + $0x190] sm:$0xff]
    %v2235 = vld [vmem:[#allocation4 + $0x198] sm:$0xff]
    %v2236 = vld [vmem:[#allocation4 + $0x1a0] sm:$0xff]
    %v2237 = vld [vmem:[#allocation4 + $0x1a8] sm:$0xff]
    %v2238 = vld [vmem:[#allocation4 + $0x1b0] sm:$0xff]
    %v2239 = vld [vmem:[#allocation4 + $0x1b8] sm:$0xff]
    %v2240 = vld [vmem:[#allocation4 + $0x1c0] sm:$0xff]
    %v2241 = vld [vmem:[#allocation4 + $0x1c8] sm:$0xff]
    %v2242 = vld [vmem:[#allocation4 + $0x1d0] sm:$0xff]
    %v2243 = vld [vmem:[#allocation4 + $0x1d8] sm:$0xff]
    %v2244 = vld [vmem:[#allocation4 + $0x1e0] sm:$0xff]
    %v2245 = vld [vmem:[#allocation4 + $0x1e8] sm:$0xff]
    %v2246 = vld [vmem:[#allocation4 + $0x1f0] sm:$0xff]
    %v2247 = vld [vmem:[#allocation4 + $0x1f8] sm:$0xff]
    %v2248 = vld [vmem:[%s7 + $0x4] sm:$0x3]
    %v2250 = vperm.slane %v2248, 0
    %v2251 = vperm.slane %v2248, 1
    %v2318 = vunpack.c.l.b16 %v2184
    %v2319 = vunpack.c.h.b16 %v2184
    %v2320 = vunpack.c.l.b16 %v2185
    %v2321 = vunpack.c.h.b16 %v2185
    %v2322 = vunpack.c.l.b16 %v2186
    %v2323 = vunpack.c.h.b16 %v2186
    %v2324 = vunpack.c.l.b16 %v2187
    %v2325 = vunpack.c.h.b16 %v2187
    %v2326 = vunpack.c.l.b16 %v2188
    %v2327 = vunpack.c.h.b16 %v2188
    %v2328 = vunpack.c.l.b16 %v2189
    %v2329 = vunpack.c.h.b16 %v2189
    %v2330 = vunpack.c.l.b16 %v2190
    %v2331 = vunpack.c.h.b16 %v2190
    %v2332 = vunpack.c.l.b16 %v2191
    %v2333 = vunpack.c.h.b16 %v2191
    %v2334 = vunpack.c.l.b16 %v2192
    %v2335 = vunpack.c.h.b16 %v2192
    %v2336 = vunpack.c.l.b16 %v2193
    %v2337 = vunpack.c.h.b16 %v2193
    %v2338 = vunpack.c.l.b16 %v2194
    %v2339 = vunpack.c.h.b16 %v2194
    %v2340 = vunpack.c.l.b16 %v2195
    %v2341 = vunpack.c.h.b16 %v2195
    %v2342 = vunpack.c.l.b16 %v2196
    %v2343 = vunpack.c.h.b16 %v2196
    %v2344 = vunpack.c.l.b16 %v2197
    %v2345 = vunpack.c.h.b16 %v2197
    %v2346 = vunpack.c.l.b16 %v2198
    %v2347 = vunpack.c.h.b16 %v2198
    %v2348 = vunpack.c.l.b16 %v2199
    %v2349 = vunpack.c.h.b16 %v2199
    %v2350 = vunpack.c.l.b16 %v2200
    %v2351 = vunpack.c.h.b16 %v2200
    %v2352 = vunpack.c.l.b16 %v2201
    %v2353 = vunpack.c.h.b16 %v2201
    %v2354 = vunpack.c.l.b16 %v2202
    %v2355 = vunpack.c.h.b16 %v2202
    %v2356 = vunpack.c.l.b16 %v2203
    %v2357 = vunpack.c.h.b16 %v2203
    %v2358 = vunpack.c.l.b16 %v2204
    %v2359 = vunpack.c.h.b16 %v2204
    %v2360 = vunpack.c.l.b16 %v2205
    %v2361 = vunpack.c.h.b16 %v2205
    %v2362 = vunpack.c.l.b16 %v2206
    %v2363 = vunpack.c.h.b16 %v2206
    %v2364 = vunpack.c.l.b16 %v2207
    %v2365 = vunpack.c.h.b16 %v2207
    %v2366 = vunpack.c.l.b16 %v2208
    %v2367 = vunpack.c.h.b16 %v2208
    %v2368 = vunpack.c.l.b16 %v2209
    %v2369 = vunpack.c.h.b16 %v2209
    %v2370 = vunpack.c.l.b16 %v2210
    %v2371 = vunpack.c.h.b16 %v2210
    %v2372 = vunpack.c.l.b16 %v2211
    %v2373 = vunpack.c.h.b16 %v2211
    %v2374 = vunpack.c.l.b16 %v2212
    %v2375 = vunpack.c.h.b16 %v2212
    %v2376 = vunpack.c.l.b16 %v2213
    %v2377 = vunpack.c.h.b16 %v2213
    %v2378 = vunpack.c.l.b16 %v2214
    %v2379 = vunpack.c.h.b16 %v2214
    %v2380 = vunpack.c.l.b16 %v2215
    %v2381 = vunpack.c.h.b16 %v2215
    %v2382 = vunpack.c.l.b16 %v2216
    %v2383 = vunpack.c.h.b16 %v2216
    %v2384 = vunpack.c.l.b16 %v2217
    %v2385 = vunpack.c.h.b16 %v2217
    %v2386 = vunpack.c.l.b16 %v2218
    %v2387 = vunpack.c.h.b16 %v2218
    %v2388 = vunpack.c.l.b16 %v2219
    %v2389 = vunpack.c.h.b16 %v2219
    %v2390 = vunpack.c.l.b16 %v2220
    %v2391 = vunpack.c.h.b16 %v2220
    %v2392 = vunpack.c.l.b16 %v2221
    %v2393 = vunpack.c.h.b16 %v2221
    %v2394 = vunpack.c.l.b16 %v2222
    %v2395 = vunpack.c.h.b16 %v2222
    %v2396 = vunpack.c.l.b16 %v2223
    %v2397 = vunpack.c.h.b16 %v2223
    %v2398 = vunpack.c.l.b16 %v2224
    %v2399 = vunpack.c.h.b16 %v2224
    %v2400 = vunpack.c.l.b16 %v2225
    %v2401 = vunpack.c.h.b16 %v2225
    %v2402 = vunpack.c.l.b16 %v2226
    %v2403 = vunpack.c.h.b16 %v2226
    %v2404 = vunpack.c.l.b16 %v2227
    %v2405 = vunpack.c.h.b16 %v2227
    %v2406 = vunpack.c.l.b16 %v2228
    %v2407 = vunpack.c.h.b16 %v2228
    %v2408 = vunpack.c.l.b16 %v2229
    %v2409 = vunpack.c.h.b16 %v2229
    %v2410 = vunpack.c.l.b16 %v2230
    %v2411 = vunpack.c.h.b16 %v2230
    %v2412 = vunpack.c.l.b16 %v2231
    %v2413 = vunpack.c.h.b16 %v2231
    %v2414 = vunpack.c.l.b16 %v2232
    %v2415 = vunpack.c.h.b16 %v2232
    %v2416 = vunpack.c.l.b16 %v2233
    %v2417 = vunpack.c.h.b16 %v2233
    %v2418 = vunpack.c.l.b16 %v2234
    %v2419 = vunpack.c.h.b16 %v2234
    %v2420 = vunpack.c.l.b16 %v2235
    %v2421 = vunpack.c.h.b16 %v2235
    %v2422 = vunpack.c.l.b16 %v2236
    %v2423 = vunpack.c.h.b16 %v2236
    %v2424 = vunpack.c.l.b16 %v2237
    %v2425 = vunpack.c.h.b16 %v2237
    %v2426 = vunpack.c.l.b16 %v2238
    %v2427 = vunpack.c.h.b16 %v2238
    %v2428 = vunpack.c.l.b16 %v2239
    %v2429 = vunpack.c.h.b16 %v2239
    %v2430 = vunpack.c.l.b16 %v2240
    %v2431 = vunpack.c.h.b16 %v2240
    %v2432 = vunpack.c.l.b16 %v2241
    %v2433 = vunpack.c.h.b16 %v2241
    %v2434 = vunpack.c.l.b16 %v2242
    %v2435 = vunpack.c.h.b16 %v2242
    %v2436 = vunpack.c.l.b16 %v2243
    %v2437 = vunpack.c.h.b16 %v2243
    %v2438 = vunpack.c.l.b16 %v2244
    %v2439 = vunpack.c.h.b16 %v2244
    %v2440 = vunpack.c.l.b16 %v2245
    %v2441 = vunpack.c.h.b16 %v2245
    %v2442 = vunpack.c.l.b16 %v2246
    %v2443 = vunpack.c.h.b16 %v2246
    %v2444 = vunpack.c.l.b16 %v2247
    %v2445 = vunpack.c.h.b16 %v2247
    %v2446 = vpack.c.b16 %v2320, %v2318
    %v2447 = vpack.c.b16 %v2321, %v2319
    %v2448 = vpack.c.b16 %v2324, %v2322
    %v2449 = vpack.c.b16 %v2325, %v2323
    %v2450 = vpack.c.b16 %v2328, %v2326
    %v2451 = vpack.c.b16 %v2329, %v2327
    %v2452 = vpack.c.b16 %v2332, %v2330
    %v2453 = vpack.c.b16 %v2333, %v2331
    %v2454 = vpack.c.b16 %v2336, %v2334
    %v2455 = vpack.c.b16 %v2337, %v2335
    %v2456 = vpack.c.b16 %v2340, %v2338
    %v2457 = vpack.c.b16 %v2341, %v2339
    %v2458 = vpack.c.b16 %v2344, %v2342
    %v2459 = vpack.c.b16 %v2345, %v2343
    %v2460 = vpack.c.b16 %v2348, %v2346
    %v2461 = vpack.c.b16 %v2349, %v2347
    %v2462 = vpack.c.b16 %v2352, %v2350
    %v2463 = vpack.c.b16 %v2353, %v2351
    %v2464 = vpack.c.b16 %v2356, %v2354
    %v2465 = vpack.c.b16 %v2357, %v2355
    %v2466 = vpack.c.b16 %v2360, %v2358
    %v2467 = vpack.c.b16 %v2361, %v2359
    %v2468 = vpack.c.b16 %v2364, %v2362
    %v2469 = vpack.c.b16 %v2365, %v2363
    %v2470 = vpack.c.b16 %v2368, %v2366
    %v2471 = vpack.c.b16 %v2369, %v2367
    %v2472 = vpack.c.b16 %v2372, %v2370
    %v2473 = vpack.c.b16 %v2373, %v2371
    %v2474 = vpack.c.b16 %v2376, %v2374
    %v2475 = vpack.c.b16 %v2377, %v2375
    %v2476 = vpack.c.b16 %v2380, %v2378
    %v2477 = vpack.c.b16 %v2381, %v2379
    %v2478 = vpack.c.b16 %v2384, %v2382
    %v2479 = vpack.c.b16 %v2385, %v2383
    %v2480 = vpack.c.b16 %v2388, %v2386
    %v2481 = vpack.c.b16 %v2389, %v2387
    %v2482 = vpack.c.b16 %v2392, %v2390
    %v2483 = vpack.c.b16 %v2393, %v2391
    %v2484 = vpack.c.b16 %v2396, %v2394
    %v2485 = vpack.c.b16 %v2397, %v2395
    %v2486 = vpack.c.b16 %v2400, %v2398
    %v2487 = vpack.c.b16 %v2401, %v2399
    %v2488 = vpack.c.b16 %v2404, %v2402
    %v2489 = vpack.c.b16 %v2405, %v2403
    %v2490 = vpack.c.b16 %v2408, %v2406
    %v2491 = vpack.c.b16 %v2409, %v2407
    %v2492 = vpack.c.b16 %v2412, %v2410
    %v2493 = vpack.c.b16 %v2413, %v2411
    %v2494 = vpack.c.b16 %v2416, %v2414
    %v2495 = vpack.c.b16 %v2417, %v2415
    %v2496 = vpack.c.b16 %v2420, %v2418
    %v2497 = vpack.c.b16 %v2421, %v2419
    %v2498 = vpack.c.b16 %v2424, %v2422
    %v2499 = vpack.c.b16 %v2425, %v2423
    %v2500 = vpack.c.b16 %v2428, %v2426
    %v2501 = vpack.c.b16 %v2429, %v2427
    %v2502 = vpack.c.b16 %v2432, %v2430
    %v2503 = vpack.c.b16 %v2433, %v2431
    %v2504 = vpack.c.b16 %v2436, %v2434
    %v2505 = vpack.c.b16 %v2437, %v2435
    %v2506 = vpack.c.b16 %v2440, %v2438
    %v2507 = vpack.c.b16 %v2441, %v2439
    %v2508 = vpack.c.b16 %v2444, %v2442
    %v2509 = vpack.c.b16 %v2445, %v2443
    %2574 = vmatpush.bf16.msra.mxu0 %v2460
    %2575 = vmatpush.bf16.msra.mxu0 %v2458
    %2576 = vmatpush.bf16.msra.mxu0 %v2456
    %2577 = vmatpush.bf16.msra.mxu0 %v2454
    %2578 = vmatpush.bf16.msra.mxu0 %v2452
    %2579 = vmatpush.bf16.msra.mxu0 %v2450
    %2580 = vmatpush.bf16.msra.mxu0 %v2448
    %2581 = vmatpush.bf16.msra.mxu0 %v2446
    %2582 = vmatmul.bf16.gmra.mxu0 %v2180
    %v2583 = vpop.f32.mrf.mxu0
    %v2584 = vadd.f32 %v2250, %v2583
    %v2585 = vpop.f32.mrf.mxu0
    %2586 = vdwg.mxu0
    %2587 = vmatpush.bf16.msra.mxu0 %v2476
    %2588 = vmatpush.bf16.msra.mxu0 %v2474
    %2589 = vmatpush.bf16.msra.mxu0 %v2472
    %2590 = vmatpush.bf16.msra.mxu0 %v2470
    %2591 = vmatpush.bf16.msra.mxu0 %v2468
    %2592 = vmatpush.bf16.msra.mxu0 %v2466
    %2593 = vmatpush.bf16.msra.mxu0 %v2464
    %2594 = vmatpush.bf16.msra.mxu0 %v2462
    %2595 = vmatmul.bf16.gmra.mxu0 %v2181
    %v2596 = vpop.f32.mrf.mxu0
    %v2597 = vadd.f32 %v2584, %v2596
    %v2598 = vpop.f32.mrf.mxu0
    %2599 = vdwg.mxu0
    %2600 = vmatpush.bf16.msra.mxu0 %v2492
    %2601 = vmatpush.bf16.msra.mxu0 %v2490
    %2602 = vmatpush.bf16.msra.mxu0 %v2488
    %2603 = vmatpush.bf16.msra.mxu0 %v2486
    %2604 = vmatpush.bf16.msra.mxu0 %v2484
    %2605 = vmatpush.bf16.msra.mxu0 %v2482
    %2606 = vmatpush.bf16.msra.mxu0 %v2480
    %2607 = vmatpush.bf16.msra.mxu0 %v2478
    %2608 = vmatmul.bf16.gmra.mxu0 %v2182
    %v2609 = vpop.f32.mrf.mxu0
    %v2610 = vadd.f32 %v2597, %v2609
    %v2611 = vpop.f32.mrf.mxu0
    %2612 = vdwg.mxu0
    %2613 = vmatpush.bf16.msra.mxu0 %v2508
    %2614 = vmatpush.bf16.msra.mxu0 %v2506
    %2615 = vmatpush.bf16.msra.mxu0 %v2504
    %2616 = vmatpush.bf16.msra.mxu0 %v2502
    %2617 = vmatpush.bf16.msra.mxu0 %v2500
    %2618 = vmatpush.bf16.msra.mxu0 %v2498
    %2619 = vmatpush.bf16.msra.mxu0 %v2496
    %2620 = vmatpush.bf16.msra.mxu0 %v2494
    %2621 = vmatmul.bf16.gmra.mxu0 %v2183
    %v2622 = vpop.f32.mrf.mxu0
    %v2623 = vadd.f32 %v2610, %v2622
    %v2624 = vpop.f32.mrf.mxu0
    %2625 = vdwg.mxu0
    %2626 = vmatpush.bf16.msra.mxu0 %v2461
    %2627 = vmatpush.bf16.msra.mxu0 %v2459
    %2628 = vmatpush.bf16.msra.mxu0 %v2457
    %2629 = vmatpush.bf16.msra.mxu0 %v2455
    %2630 = vmatpush.bf16.msra.mxu0 %v2453
    %2631 = vmatpush.bf16.msra.mxu0 %v2451
    %2632 = vmatpush.bf16.msra.mxu0 %v2449
    %2633 = vmatpush.bf16.msra.mxu0 %v2447
    %2634 = vmatmul.bf16.gmra.mxu0 %v2180
    %v2635 = vpop.f32.mrf.mxu0
    %v2636 = vadd.f32 %v2251, %v2635
    %v2637 = vpop.f32.mrf.mxu0
    %2638 = vdwg.mxu0
    %2639 = vmatpush.bf16.msra.mxu0 %v2477
    %2640 = vmatpush.bf16.msra.mxu0 %v2475
    %2641 = vmatpush.bf16.msra.mxu0 %v2473
    %2642 = vmatpush.bf16.msra.mxu0 %v2471
    %2643 = vmatpush.bf16.msra.mxu0 %v2469
    %2644 = vmatpush.bf16.msra.mxu0 %v2467
    %2645 = vmatpush.bf16.msra.mxu0 %v2465
    %2646 = vmatpush.bf16.msra.mxu0 %v2463
    %2647 = vmatmul.bf16.gmra.mxu0 %v2181
    %v2648 = vpop.f32.mrf.mxu0
    %v2649 = vadd.f32 %v2636, %v2648
    %v2650 = vpop.f32.mrf.mxu0
    %2651 = vdwg.mxu0
    %2652 = vmatpush.bf16.msra.mxu0 %v2493
    %2653 = vmatpush.bf16.msra.mxu0 %v2491
    %2654 = vmatpush.bf16.msra.mxu0 %v2489
    %2655 = vmatpush.bf16.msra.mxu0 %v2487
    %2656 = vmatpush.bf16.msra.mxu0 %v2485
    %2657 = vmatpush.bf16.msra.mxu0 %v2483
    %2658 = vmatpush.bf16.msra.mxu0 %v2481
    %2659 = vmatpush.bf16.msra.mxu0 %v2479
    %2660 = vmatmul.bf16.gmra.mxu0 %v2182
    %v2661 = vpop.f32.mrf.mxu0
    %v2662 = vadd.f32 %v2649, %v2661
    %v2663 = vpop.f32.mrf.mxu0
    %2664 = vdwg.mxu0
    %2665 = vmatpush.bf16.msra.mxu0 %v2509
    %2666 = vmatpush.bf16.msra.mxu0 %v2507
    %2667 = vmatpush.bf16.msra.mxu0 %v2505
    %2668 = vmatpush.bf16.msra.mxu0 %v2503
    %2669 = vmatpush.bf16.msra.mxu0 %v2501
    %2670 = vmatpush.bf16.msra.mxu0 %v2499
    %2671 = vmatpush.bf16.msra.mxu0 %v2497
    %2672 = vmatpush.bf16.msra.mxu0 %v2495
    %2673 = vmatmul.bf16.gmra.mxu0 %v2183
    %v2674 = vpop.f32.mrf.mxu0
    %v2675 = vadd.f32 %v2662, %v2674
    %v2676 = vpop.f32.mrf.mxu0
    %2677 = vdwg.mxu0
    %v2678 = vxor.u32 %v2623, 2147483648
    %v2679 = vxor.u32 %v2675, 2147483648
    %v2680 = vmul.f32 %v2678, 1.442695
    %v2681 = vpow.pop %v2680
    %v2682 = vmul.f32 %v2679, 1.442695
    %v2683 = vpow.pop %v2682
    %v2684 = vadd.f32 %v2681, 1.0
    %v2685 = vadd.f32 %v2683, 1.0
    %v2686 = vrcp.pop %v2684
    %v2687 = vmul.f32 %v2684, %v2686
    %v2688 = vsub.f32 1.0, %v2687
    %v2689 = vmul.f32 %v2686, %v2688
    %v2690 = vadd.f32 %v2686, %v2689
    %vm2691 = vweird.f32 %v2684
    %vm2692 = vweird.f32 %v2686
    %vm2693 = vmor %vm2691, %vm2692
    %v2694 = vsel %vm2693, %v2686, %v2690
    %v2695 = vand.u32 2147483647, %v2684
    %vm2696 = vcmp.eq.f32.partialorder %v2695, 8.507059e+37
    %v2697 = vand.u32 %v2684, 2147483648
    %v2698 = vor.u32 1.1754944e-38, %v2697
    %v2699 = vsel %vm2696, %v2698, %v2694
    %v2700 = vmul.f32 1.0, %v2699
    %v2701 = vrcp.pop %v2685
    %v2702 = vmul.f32 %v2685, %v2701
    %v2703 = vsub.f32 1.0, %v2702
    %v2704 = vmul.f32 %v2701, %v2703
    %v2705 = vadd.f32 %v2701, %v2704
    %vm2706 = vweird.f32 %v2685
    %vm2707 = vweird.f32 %v2701
    %vm2708 = vmor %vm2706, %vm2707
    %v2709 = vsel %vm2708, %v2701, %v2705
    %v2710 = vand.u32 2147483647, %v2685
    %vm2711 = vcmp.eq.f32.partialorder %v2710, 8.507059e+37
    %v2712 = vand.u32 %v2685, 2147483648
    %v2713 = vor.u32 1.1754944e-38, %v2712
    %v2714 = vsel %vm2711, %v2713, %v2709
    %v2715 = vmul.f32 1.0, %v2714
    %v2716 = vmul.f32 %v2623, %v2700
    %v2717 = vmul.f32 %v2675, %v2715
    %v2718 = vpack.c.bf16 %v2716, %v2716
    %v2719 = vpack.c.bf16 %v2717, %v2717
    %v2720 = vld [vmem:[%s3] sm:$0xf]
    %v2721 = vld [vmem:[%s3 + $0x4] sm:$0xf]
    %v2722 = vld [vmem:[%s3 + $0x8] sm:$0xf]
    %v2723 = vld [vmem:[%s3 + $0xc] sm:$0xf]
    %v2724 = vld [vmem:[%s3 + $0x10] sm:$0xf]
    %v2725 = vld [vmem:[%s3 + $0x14] sm:$0xf]
    %v2726 = vld [vmem:[%s3 + $0x18] sm:$0xf]
    %v2727 = vld [vmem:[%s3 + $0x1c] sm:$0xf]
    %v2728 = vld [vmem:[%s3 + $0x20] sm:$0xf]
    %v2729 = vld [vmem:[%s3 + $0x24] sm:$0xf]
    %v2730 = vld [vmem:[%s3 + $0x28] sm:$0xf]
    %v2731 = vld [vmem:[%s3 + $0x2c] sm:$0xf]
    %v2732 = vld [vmem:[%s3 + $0x30] sm:$0xf]
    %v2733 = vld [vmem:[%s3 + $0x34] sm:$0xf]
    %v2734 = vld [vmem:[%s3 + $0x38] sm:$0xf]
    %v2735 = vld [vmem:[%s3 + $0x3c] sm:$0xf]
    %v2736 = vld [vmem:[%s3 + $0x40] sm:$0xf]
    %v2737 = vld [vmem:[%s3 + $0x44] sm:$0xf]
    %v2738 = vld [vmem:[%s3 + $0x48] sm:$0xf]
    %v2739 = vld [vmem:[%s3 + $0x4c] sm:$0xf]
    %v2740 = vld [vmem:[%s3 + $0x50] sm:$0xf]
    %v2741 = vld [vmem:[%s3 + $0x54] sm:$0xf]
    %v2742 = vld [vmem:[%s3 + $0x58] sm:$0xf]
    %v2743 = vld [vmem:[%s3 + $0x5c] sm:$0xf]
    %v2744 = vld [vmem:[%s3 + $0x60] sm:$0xf]
    %v2745 = vld [vmem:[%s3 + $0x64] sm:$0xf]
    %v2746 = vld [vmem:[%s3 + $0x68] sm:$0xf]
    %v2747 = vld [vmem:[%s3 + $0x6c] sm:$0xf]
    %v2748 = vld [vmem:[%s3 + $0x70] sm:$0xf]
    %v2749 = vld [vmem:[%s3 + $0x74] sm:$0xf]
    %v2750 = vld [vmem:[%s3 + $0x78] sm:$0xf]
    %v2751 = vld [vmem:[%s3 + $0x7c] sm:$0xf]
    %v2752 = vld [vmem:[%s7 + $0x6] sm:$0x1]
    %v2754 = vperm.slane %v2752, 0
    %v2788 = vunpack.c.l.b16 %v2720
    %v2789 = vunpack.c.l.b16 %v2721
    %v2790 = vunpack.c.l.b16 %v2722
    %v2791 = vunpack.c.l.b16 %v2723
    %v2792 = vunpack.c.l.b16 %v2724
    %v2793 = vunpack.c.l.b16 %v2725
    %v2794 = vunpack.c.l.b16 %v2726
    %v2795 = vunpack.c.l.b16 %v2727
    %v2796 = vunpack.c.l.b16 %v2728
    %v2797 = vunpack.c.l.b16 %v2729
    %v2798 = vunpack.c.l.b16 %v2730
    %v2799 = vunpack.c.l.b16 %v2731
    %v2800 = vunpack.c.l.b16 %v2732
    %v2801 = vunpack.c.l.b16 %v2733
    %v2802 = vunpack.c.l.b16 %v2734
    %v2803 = vunpack.c.l.b16 %v2735
    %v2804 = vunpack.c.l.b16 %v2736
    %v2805 = vunpack.c.l.b16 %v2737
    %v2806 = vunpack.c.l.b16 %v2738
    %v2807 = vunpack.c.l.b16 %v2739
    %v2808 = vunpack.c.l.b16 %v2740
    %v2809 = vunpack.c.l.b16 %v2741
    %v2810 = vunpack.c.l.b16 %v2742
    %v2811 = vunpack.c.l.b16 %v2743
    %v2812 = vunpack.c.l.b16 %v2744
    %v2813 = vunpack.c.l.b16 %v2745
    %v2814 = vunpack.c.l.b16 %v2746
    %v2815 = vunpack.c.l.b16 %v2747
    %v2816 = vunpack.c.l.b16 %v2748
    %v2817 = vunpack.c.l.b16 %v2749
    %v2818 = vunpack.c.l.b16 %v2750
    %v2819 = vunpack.c.l.b16 %v2751
    %v2820 = vpack.c.b16 %v2789, %v2788
    %v2821 = vpack.c.b16 %v2791, %v2790
    %v2822 = vpack.c.b16 %v2793, %v2792
    %v2823 = vpack.c.b16 %v2795, %v2794
    %v2824 = vpack.c.b16 %v2797, %v2796
    %v2825 = vpack.c.b16 %v2799, %v2798
    %v2826 = vpack.c.b16 %v2801, %v2800
    %v2827 = vpack.c.b16 %v2803, %v2802
    %v2828 = vpack.c.b16 %v2805, %v2804
    %v2829 = vpack.c.b16 %v2807, %v2806
    %v2830 = vpack.c.b16 %v2809, %v2808
    %v2831 = vpack.c.b16 %v2811, %v2810
    %v2832 = vpack.c.b16 %v2813, %v2812
    %v2833 = vpack.c.b16 %v2815, %v2814
    %v2834 = vpack.c.b16 %v2817, %v2816
    %v2835 = vpack.c.b16 %v2819, %v2818
    %2852 = vmatpush.bf16.msra.mxu0 %v2827
    %2853 = vmatpush.bf16.msra.mxu0 %v2826
    %2854 = vmatpush.bf16.msra.mxu0 %v2825
    %2855 = vmatpush.bf16.msra.mxu0 %v2824
    %2856 = vmatpush.bf16.msra.mxu0 %v2823
    %2857 = vmatpush.bf16.msra.mxu0 %v2822
    %2858 = vmatpush.bf16.msra.mxu0 %v2821
    %2859 = vmatpush.bf16.msra.mxu0 %v2820
    %2860 = vmatmul.bf16.gmra.mxu0 %v2718
    %v2861 = vpop.f32.mrf.mxu0
    %v2862 = vadd.f32 %v2754, %v2861
    %v2863 = vpop.f32.mrf.mxu0
    %2864 = vdwg.mxu0
    %2865 = vmatpush.bf16.msra.mxu0 %v2835
    %2866 = vmatpush.bf16.msra.mxu0 %v2834
    %2867 = vmatpush.bf16.msra.mxu0 %v2833
    %2868 = vmatpush.bf16.msra.mxu0 %v2832
    %2869 = vmatpush.bf16.msra.mxu0 %v2831
    %2870 = vmatpush.bf16.msra.mxu0 %v2830
    %2871 = vmatpush.bf16.msra.mxu0 %v2829
    %2872 = vmatpush.bf16.msra.mxu0 %v2828
    %2873 = vmatmul.bf16.gmra.mxu0 %v2719
    %v2874 = vpop.f32.mrf.mxu0
    %v2875 = vadd.f32 %v2862, %v2874
    %v2876 = vpop.f32.mrf.mxu0
    %2877 = vdwg.mxu0
    %v2878 = vxor.u32 %v2875, 2147483648
    %v2879 = vmul.f32 %v2878, 1.442695
    %v2880 = vpow.pop %v2879
    %v2881 = vadd.f32 %v2880, 1.0
    %v2882 = vrcp.pop %v2881
    %v2883 = vmul.f32 %v2881, %v2882
    %v2884 = vsub.f32 1.0, %v2883
    %v2885 = vmul.f32 %v2882, %v2884
    %v2886 = vadd.f32 %v2882, %v2885
    %vm2887 = vweird.f32 %v2881
    %vm2888 = vweird.f32 %v2882
    %vm2889 = vmor %vm2887, %vm2888
    %v2890 = vsel %vm2889, %v2882, %v2886
    %v2891 = vand.u32 2147483647, %v2881
    %vm2892 = vcmp.eq.f32.partialorder %v2891, 8.507059e+37
    %v2893 = vand.u32 %v2881, 2147483648
    %v2894 = vor.u32 1.1754944e-38, %v2893
    %v2895 = vsel %vm2892, %v2894, %v2890
    %v2896 = vmul.f32 1.0, %v2895
    %v2897 = vmul.f32 %v2875, %v2896
    %v2898 = vpack.c.bf16 %v2897, %v2897
    %v2899 = vld [vmem:[#allocation6] sm:$0xf]
    %v2900 = vld [vmem:[#allocation6 + $0x4] sm:$0xf]
    %v2901 = vld [vmem:[#allocation6 + $0x8] sm:$0xf]
    %v2902 = vld [vmem:[#allocation6 + $0xc] sm:$0xf]
    %v2903 = vld [vmem:[#allocation6 + $0x10] sm:$0xf]
    %v2904 = vld [vmem:[#allocation6 + $0x14] sm:$0xf]
    %v2905 = vld [vmem:[#allocation6 + $0x18] sm:$0xf]
    %v2906 = vld [vmem:[#allocation6 + $0x1c] sm:$0xf]
    %v2907 = vld [vmem:[#allocation6 + $0x20] sm:$0xf]
    %v2908 = vld [vmem:[#allocation6 + $0x24] sm:$0xf]
    %v2909 = vld [vmem:[#allocation6 + $0x28] sm:$0xf]
    %v2910 = vld [vmem:[#allocation6 + $0x2c] sm:$0xf]
    %v2911 = vld [vmem:[#allocation6 + $0x30] sm:$0xf]
    %v2912 = vld [vmem:[#allocation6 + $0x34] sm:$0xf]
    %v2913 = vld [vmem:[#allocation6 + $0x38] sm:$0xf]
    %v2914 = vld [vmem:[#allocation6 + $0x3c] sm:$0xf]
    %v2915 = vld [vmem:[%s7 + $0x7] sm:$0x1]
    %v2917 = vperm.slane %v2915, 0
    %v2935 = vunpack.c.l.b16 %v2899
    %v2936 = vunpack.c.l.b16 %v2900
    %v2937 = vunpack.c.l.b16 %v2901
    %v2938 = vunpack.c.l.b16 %v2902
    %v2939 = vunpack.c.l.b16 %v2903
    %v2940 = vunpack.c.l.b16 %v2904
    %v2941 = vunpack.c.l.b16 %v2905
    %v2942 = vunpack.c.l.b16 %v2906
    %v2943 = vunpack.c.l.b16 %v2907
    %v2944 = vunpack.c.l.b16 %v2908
    %v2945 = vunpack.c.l.b16 %v2909
    %v2946 = vunpack.c.l.b16 %v2910
    %v2947 = vunpack.c.l.b16 %v2911
    %v2948 = vunpack.c.l.b16 %v2912
    %v2949 = vunpack.c.l.b16 %v2913
    %v2950 = vunpack.c.l.b16 %v2914
    %v2951 = vpack.c.b16 %v2936, %v2935
    %v2952 = vpack.c.b16 %v2938, %v2937
    %v2953 = vpack.c.b16 %v2940, %v2939
    %v2954 = vpack.c.b16 %v2942, %v2941
    %v2955 = vpack.c.b16 %v2944, %v2943
    %v2956 = vpack.c.b16 %v2946, %v2945
    %v2957 = vpack.c.b16 %v2948, %v2947
    %v2958 = vpack.c.b16 %v2950, %v2949
    %2967 = vmatpush.bf16.msra.mxu0 %v2958
    %2968 = vmatpush.bf16.msra.mxu0 %v2957
    %2969 = vmatpush.bf16.msra.mxu0 %v2956
    %2970 = vmatpush.bf16.msra.mxu0 %v2955
    %2971 = vmatpush.bf16.msra.mxu0 %v2954
    %2972 = vmatpush.bf16.msra.mxu0 %v2953
    %2973 = vmatpush.bf16.msra.mxu0 %v2952
    %2974 = vmatpush.bf16.msra.mxu0 %v2951
    %2975 = vmatmul.bf16.gmra.mxu0 %v2898
    %v2976 = vpop.f32.mrf.mxu0
    %v2977 = vadd.f32 %v2917, %v2976
    %v2978 = vpop.f32.mrf.mxu0
    %2979 = vdwg.mxu0
    %v2980 = vxor.u32 %v2977, 2147483648
    %v2981 = vmul.f32 %v2980, 1.442695
    %v2982 = vpow.pop %v2981
    %v2983 = vadd.f32 %v2982, 1.0
    %v2984 = vrcp.pop %v2983
    %v2985 = vmul.f32 %v2983, %v2984
    %v2986 = vsub.f32 1.0, %v2985
    %v2987 = vmul.f32 %v2984, %v2986
    %v2988 = vadd.f32 %v2984, %v2987
    %vm2989 = vweird.f32 %v2983
    %vm2990 = vweird.f32 %v2984
    %vm2991 = vmor %vm2989, %vm2990
    %v2992 = vsel %vm2991, %v2984, %v2988
    %v2993 = vand.u32 2147483647, %v2983
    %vm2994 = vcmp.eq.f32.partialorder %v2993, 8.507059e+37
    %v2995 = vand.u32 %v2983, 2147483648
    %v2996 = vor.u32 1.1754944e-38, %v2995
    %v2997 = vsel %vm2994, %v2996, %v2992
    %v2998 = vmul.f32 1.0, %v2997
    %v2999 = vmul.f32 %v2977, %v2998
    %v3000 = vpack.c.bf16 %v2999, %v2999
    %v3001 = vld [vmem:[#allocation7] sm:$0xff]
    %v3002 = vld [vmem:[#allocation7 + $0x8] sm:$0xff]
    %v3003 = vld [vmem:[#allocation7 + $0x10] sm:$0xff]
    %v3004 = vld [vmem:[#allocation7 + $0x18] sm:$0xff]
    %v3005 = vld [vmem:[#allocation7 + $0x20] sm:$0xff]
    %v3006 = vld [vmem:[#allocation7 + $0x28] sm:$0xff]
    %v3007 = vld [vmem:[#allocation7 + $0x30] sm:$0xff]
    %v3008 = vld [vmem:[#allocation7 + $0x38] sm:$0xff]
    %v3009 = vld [vmem:[#allocation7 + $0x40] sm:$0xff]
    %v3010 = vld [vmem:[#allocation7 + $0x48] sm:$0xff]
    %v3011 = vld [vmem:[#allocation7 + $0x50] sm:$0xff]
    %v3012 = vld [vmem:[#allocation7 + $0x58] sm:$0xff]
    %v3013 = vld [vmem:[#allocation7 + $0x60] sm:$0xff]
    %v3014 = vld [vmem:[#allocation7 + $0x68] sm:$0xff]
    %v3015 = vld [vmem:[#allocation7 + $0x70] sm:$0xff]
    %v3016 = vld [vmem:[#allocation7 + $0x78] sm:$0xff]
    %v3017 = vld [vmem:[%s7 + $0x8] sm:$0x3]
    %v3019 = vperm.slane %v3017, 0
    %v3020 = vperm.slane %v3017, 1
    %v3039 = vunpack.c.l.b16 %v3001
    %v3040 = vunpack.c.h.b16 %v3001
    %v3041 = vunpack.c.l.b16 %v3002
    %v3042 = vunpack.c.h.b16 %v3002
    %v3043 = vunpack.c.l.b16 %v3003
    %v3044 = vunpack.c.h.b16 %v3003
    %v3045 = vunpack.c.l.b16 %v3004
    %v3046 = vunpack.c.h.b16 %v3004
    %v3047 = vunpack.c.l.b16 %v3005
    %v3048 = vunpack.c.h.b16 %v3005
    %v3049 = vunpack.c.l.b16 %v3006
    %v3050 = vunpack.c.h.b16 %v3006
    %v3051 = vunpack.c.l.b16 %v3007
    %v3052 = vunpack.c.h.b16 %v3007
    %v3053 = vunpack.c.l.b16 %v3008
    %v3054 = vunpack.c.h.b16 %v3008
    %v3055 = vunpack.c.l.b16 %v3009
    %v3056 = vunpack.c.h.b16 %v3009
    %v3057 = vunpack.c.l.b16 %v3010
    %v3058 = vunpack.c.h.b16 %v3010
    %v3059 = vunpack.c.l.b16 %v3011
    %v3060 = vunpack.c.h.b16 %v3011
    %v3061 = vunpack.c.l.b16 %v3012
    %v3062 = vunpack.c.h.b16 %v3012
    %v3063 = vunpack.c.l.b16 %v3013
    %v3064 = vunpack.c.h.b16 %v3013
    %v3065 = vunpack.c.l.b16 %v3014
    %v3066 = vunpack.c.h.b16 %v3014
    %v3067 = vunpack.c.l.b16 %v3015
    %v3068 = vunpack.c.h.b16 %v3015
    %v3069 = vunpack.c.l.b16 %v3016
    %v3070 = vunpack.c.h.b16 %v3016
    %v3071 = vpack.c.b16 %v3041, %v3039
    %v3072 = vpack.c.b16 %v3042, %v3040
    %v3073 = vpack.c.b16 %v3045, %v3043
    %v3074 = vpack.c.b16 %v3046, %v3044
    %v3075 = vpack.c.b16 %v3049, %v3047
    %v3076 = vpack.c.b16 %v3050, %v3048
    %v3077 = vpack.c.b16 %v3053, %v3051
    %v3078 = vpack.c.b16 %v3054, %v3052
    %v3079 = vpack.c.b16 %v3057, %v3055
    %v3080 = vpack.c.b16 %v3058, %v3056
    %v3081 = vpack.c.b16 %v3061, %v3059
    %v3082 = vpack.c.b16 %v3062, %v3060
    %v3083 = vpack.c.b16 %v3065, %v3063
    %v3084 = vpack.c.b16 %v3066, %v3064
    %v3085 = vpack.c.b16 %v3069, %v3067
    %v3086 = vpack.c.b16 %v3070, %v3068
    %3103 = vmatpush.bf16.msra.mxu0 %v3085
    %3104 = vmatpush.bf16.msra.mxu0 %v3083
    %3105 = vmatpush.bf16.msra.mxu0 %v3081
    %3106 = vmatpush.bf16.msra.mxu0 %v3079
    %3107 = vmatpush.bf16.msra.mxu0 %v3077
    %3108 = vmatpush.bf16.msra.mxu0 %v3075
    %3109 = vmatpush.bf16.msra.mxu0 %v3073
    %3110 = vmatpush.bf16.msra.mxu0 %v3071
    %3111 = vmatmul.bf16.gmra.mxu0 %v3000
    %v3112 = vpop.f32.mrf.mxu0
    %v3113 = vadd.f32 %v3019, %v3112
    %v3114 = vpop.f32.mrf.mxu0
    %3115 = vdwg.mxu0
    %3116 = vmatpush.bf16.msra.mxu0 %v3086
    %3117 = vmatpush.bf16.msra.mxu0 %v3084
    %3118 = vmatpush.bf16.msra.mxu0 %v3082
    %3119 = vmatpush.bf16.msra.mxu0 %v3080
    %3120 = vmatpush.bf16.msra.mxu0 %v3078
    %3121 = vmatpush.bf16.msra.mxu0 %v3076
    %3122 = vmatpush.bf16.msra.mxu0 %v3074
    %3123 = vmatpush.bf16.msra.mxu0 %v3072
    %3124 = vmatmul.bf16.gmra.mxu0 %v3000
    %v3125 = vpop.f32.mrf.mxu0
    %v3126 = vadd.f32 %v3020, %v3125
    %v3127 = vpop.f32.mrf.mxu0
    %3128 = vdwg.mxu0
    %v3129 = vxor.u32 %v3113, 2147483648
    %v3130 = vxor.u32 %v3126, 2147483648
    %v3131 = vmul.f32 %v3129, 1.442695
    %v3132 = vpow.pop %v3131
    %v3133 = vmul.f32 %v3130, 1.442695
    %v3134 = vpow.pop %v3133
    %v3135 = vadd.f32 %v3132, 1.0
    %v3136 = vadd.f32 %v3134, 1.0
    %v3137 = vrcp.pop %v3135
    %v3138 = vmul.f32 %v3135, %v3137
    %v3139 = vsub.f32 1.0, %v3138
    %v3140 = vmul.f32 %v3137, %v3139
    %v3141 = vadd.f32 %v3137, %v3140
    %vm3142 = vweird.f32 %v3135
    %vm3143 = vweird.f32 %v3137
    %vm3144 = vmor %vm3142, %vm3143
    %v3145 = vsel %vm3144, %v3137, %v3141
    %v3146 = vand.u32 2147483647, %v3135
    %vm3147 = vcmp.eq.f32.partialorder %v3146, 8.507059e+37
    %v3148 = vand.u32 %v3135, 2147483648
    %v3149 = vor.u32 1.1754944e-38, %v3148
    %v3150 = vsel %vm3147, %v3149, %v3145
    %v3151 = vmul.f32 1.0, %v3150
    %v3152 = vrcp.pop %v3136
    %v3153 = vmul.f32 %v3136, %v3152
    %v3154 = vsub.f32 1.0, %v3153
    %v3155 = vmul.f32 %v3152, %v3154
    %v3156 = vadd.f32 %v3152, %v3155
    %vm3157 = vweird.f32 %v3136
    %vm3158 = vweird.f32 %v3152
    %vm3159 = vmor %vm3157, %vm3158
    %v3160 = vsel %vm3159, %v3152, %v3156
    %v3161 = vand.u32 2147483647, %v3136
    %vm3162 = vcmp.eq.f32.partialorder %v3161, 8.507059e+37
    %v3163 = vand.u32 %v3136, 2147483648
    %v3164 = vor.u32 1.1754944e-38, %v3163
    %v3165 = vsel %vm3162, %v3164, %v3160
    %v3166 = vmul.f32 1.0, %v3165
    %v3167 = vmul.f32 %v3113, %v3151
    %v3168 = vmul.f32 %v3126, %v3166
    %v3169 = vpack.c.bf16 %v3167, %v3167
    %v3170 = vpack.c.bf16 %v3168, %v3168
    %v3171 = vld [vmem:[#allocation9] sm:$0xff]
    %v3172 = vld [vmem:[#allocation9 + $0x8] sm:$0xff]
    %v3173 = vld [vmem:[#allocation9 + $0x10] sm:$0xff]
    %v3174 = vld [vmem:[#allocation9 + $0x18] sm:$0xff]
    %v3175 = vld [vmem:[#allocation9 + $0x20] sm:$0xff]
    %v3176 = vld [vmem:[#allocation9 + $0x28] sm:$0xff]
    %v3177 = vld [vmem:[#allocation9 + $0x30] sm:$0xff]
    %v3178 = vld [vmem:[#allocation9 + $0x38] sm:$0xff]
    %v3179 = vld [vmem:[#allocation9 + $0x40] sm:$0xff]
    %v3180 = vld [vmem:[#allocation9 + $0x48] sm:$0xff]
    %v3181 = vld [vmem:[#allocation9 + $0x50] sm:$0xff]
    %v3182 = vld [vmem:[#allocation9 + $0x58] sm:$0xff]
    %v3183 = vld [vmem:[#allocation9 + $0x60] sm:$0xff]
    %v3184 = vld [vmem:[#allocation9 + $0x68] sm:$0xff]
    %v3185 = vld [vmem:[#allocation9 + $0x70] sm:$0xff]
    %v3186 = vld [vmem:[#allocation9 + $0x78] sm:$0xff]
    %v3187 = vld [vmem:[#allocation9 + $0x80] sm:$0xff]
    %v3188 = vld [vmem:[#allocation9 + $0x88] sm:$0xff]
    %v3189 = vld [vmem:[#allocation9 + $0x90] sm:$0xff]
    %v3190 = vld [vmem:[#allocation9 + $0x98] sm:$0xff]
    %v3191 = vld [vmem:[#allocation9 + $0xa0] sm:$0xff]
    %v3192 = vld [vmem:[#allocation9 + $0xa8] sm:$0xff]
    %v3193 = vld [vmem:[#allocation9 + $0xb0] sm:$0xff]
    %v3194 = vld [vmem:[#allocation9 + $0xb8] sm:$0xff]
    %v3195 = vld [vmem:[#allocation9 + $0xc0] sm:$0xff]
    %v3196 = vld [vmem:[#allocation9 + $0xc8] sm:$0xff]
    %v3197 = vld [vmem:[#allocation9 + $0xd0] sm:$0xff]
    %v3198 = vld [vmem:[#allocation9 + $0xd8] sm:$0xff]
    %v3199 = vld [vmem:[#allocation9 + $0xe0] sm:$0xff]
    %v3200 = vld [vmem:[#allocation9 + $0xe8] sm:$0xff]
    %v3201 = vld [vmem:[#allocation9 + $0xf0] sm:$0xff]
    %v3202 = vld [vmem:[#allocation9 + $0xf8] sm:$0xff]
    %v3203 = vld [vmem:[#allocation9 + $0x100] sm:$0xff]
    %v3204 = vld [vmem:[#allocation9 + $0x108] sm:$0xff]
    %v3205 = vld [vmem:[#allocation9 + $0x110] sm:$0xff]
    %v3206 = vld [vmem:[#allocation9 + $0x118] sm:$0xff]
    %v3207 = vld [vmem:[#allocation9 + $0x120] sm:$0xff]
    %v3208 = vld [vmem:[#allocation9 + $0x128] sm:$0xff]
    %v3209 = vld [vmem:[#allocation9 + $0x130] sm:$0xff]
    %v3210 = vld [vmem:[#allocation9 + $0x138] sm:$0xff]
    %v3211 = vld [vmem:[#allocation9 + $0x140] sm:$0xff]
    %v3212 = vld [vmem:[#allocation9 + $0x148] sm:$0xff]
    %v3213 = vld [vmem:[#allocation9 + $0x150] sm:$0xff]
    %v3214 = vld [vmem:[#allocation9 + $0x158] sm:$0xff]
    %v3215 = vld [vmem:[#allocation9 + $0x160] sm:$0xff]
    %v3216 = vld [vmem:[#allocation9 + $0x168] sm:$0xff]
    %v3217 = vld [vmem:[#allocation9 + $0x170] sm:$0xff]
    %v3218 = vld [vmem:[#allocation9 + $0x178] sm:$0xff]
    %v3219 = vld [vmem:[#allocation9 + $0x180] sm:$0xff]
    %v3220 = vld [vmem:[#allocation9 + $0x188] sm:$0xff]
    %v3221 = vld [vmem:[#allocation9 + $0x190] sm:$0xff]
    %v3222 = vld [vmem:[#allocation9 + $0x198] sm:$0xff]
    %v3223 = vld [vmem:[#allocation9 + $0x1a0] sm:$0xff]
    %v3224 = vld [vmem:[#allocation9 + $0x1a8] sm:$0xff]
    %v3225 = vld [vmem:[#allocation9 + $0x1b0] sm:$0xff]
    %v3226 = vld [vmem:[#allocation9 + $0x1b8] sm:$0xff]
    %v3227 = vld [vmem:[#allocation9 + $0x1c0] sm:$0xff]
    %v3228 = vld [vmem:[#allocation9 + $0x1c8] sm:$0xff]
    %v3229 = vld [vmem:[#allocation9 + $0x1d0] sm:$0xff]
    %v3230 = vld [vmem:[#allocation9 + $0x1d8] sm:$0xff]
    %v3231 = vld [vmem:[#allocation9 + $0x1e0] sm:$0xff]
    %v3232 = vld [vmem:[#allocation9 + $0x1e8] sm:$0xff]
    %v3233 = vld [vmem:[#allocation9 + $0x1f0] sm:$0xff]
    %v3234 = vld [vmem:[#allocation9 + $0x1f8] sm:$0xff]
    %v3235 = vld [vmem:[#allocation9 + $0x200] sm:$0xff]
    %v3236 = vld [vmem:[#allocation9 + $0x208] sm:$0xff]
    %v3237 = vld [vmem:[#allocation9 + $0x210] sm:$0xff]
    %v3238 = vld [vmem:[#allocation9 + $0x218] sm:$0xff]
    %v3239 = vld [vmem:[#allocation9 + $0x220] sm:$0xff]
    %v3240 = vld [vmem:[#allocation9 + $0x228] sm:$0xff]
    %v3241 = vld [vmem:[#allocation9 + $0x230] sm:$0xff]
    %v3242 = vld [vmem:[#allocation9 + $0x238] sm:$0xff]
    %v3243 = vld [vmem:[#allocation9 + $0x240] sm:$0xff]
    %v3244 = vld [vmem:[#allocation9 + $0x248] sm:$0xff]
    %v3245 = vld [vmem:[#allocation9 + $0x250] sm:$0xff]
    %v3246 = vld [vmem:[#allocation9 + $0x258] sm:$0xff]
    %v3247 = vld [vmem:[#allocation9 + $0x260] sm:$0xff]
    %v3248 = vld [vmem:[#allocation9 + $0x268] sm:$0xff]
    %v3249 = vld [vmem:[#allocation9 + $0x270] sm:$0xff]
    %v3250 = vld [vmem:[#allocation9 + $0x278] sm:$0xff]
    %v3251 = vld [vmem:[#allocation9 + $0x280] sm:$0xff]
    %v3252 = vld [vmem:[#allocation9 + $0x288] sm:$0xff]
    %v3253 = vld [vmem:[#allocation9 + $0x290] sm:$0xff]
    %v3254 = vld [vmem:[#allocation9 + $0x298] sm:$0xff]
    %v3255 = vld [vmem:[#allocation9 + $0x2a0] sm:$0xff]
    %v3256 = vld [vmem:[#allocation9 + $0x2a8] sm:$0xff]
    %v3257 = vld [vmem:[#allocation9 + $0x2b0] sm:$0xff]
    %v3258 = vld [vmem:[#allocation9 + $0x2b8] sm:$0xff]
    %v3259 = vld [vmem:[#allocation9 + $0x2c0] sm:$0xff]
    %v3260 = vld [vmem:[#allocation9 + $0x2c8] sm:$0xff]
    %v3261 = vld [vmem:[#allocation9 + $0x2d0] sm:$0xff]
    %v3262 = vld [vmem:[#allocation9 + $0x2d8] sm:$0xff]
    %v3263 = vld [vmem:[#allocation9 + $0x2e0] sm:$0xff]
    %v3264 = vld [vmem:[#allocation9 + $0x2e8] sm:$0xff]
    %v3265 = vld [vmem:[#allocation9 + $0x2f0] sm:$0xff]
    %v3266 = vld [vmem:[#allocation9 + $0x2f8] sm:$0xff]
    %v3267 = vld [vmem:[#allocation9 + $0x300] sm:$0xff]
    %v3268 = vld [vmem:[#allocation9 + $0x308] sm:$0xff]
    %v3269 = vld [vmem:[#allocation9 + $0x310] sm:$0xff]
    %v3270 = vld [vmem:[#allocation9 + $0x318] sm:$0xff]
    %v3271 = vld [vmem:[#allocation9 + $0x320] sm:$0xff]
    %v3272 = vld [vmem:[#allocation9 + $0x328] sm:$0xff]
    %v3273 = vld [vmem:[#allocation9 + $0x330] sm:$0xff]
    %v3274 = vld [vmem:[#allocation9 + $0x338] sm:$0xff]
    %v3275 = vld [vmem:[#allocation9 + $0x340] sm:$0xff]
    %v3276 = vld [vmem:[#allocation9 + $0x348] sm:$0xff]
    %v3277 = vld [vmem:[#allocation9 + $0x350] sm:$0xff]
    %v3278 = vld [vmem:[#allocation9 + $0x358] sm:$0xff]
    %v3279 = vld [vmem:[#allocation9 + $0x360] sm:$0xff]
    %v3280 = vld [vmem:[#allocation9 + $0x368] sm:$0xff]
    %v3281 = vld [vmem:[#allocation9 + $0x370] sm:$0xff]
    %v3282 = vld [vmem:[#allocation9 + $0x378] sm:$0xff]
    %v3283 = vld [vmem:[#allocation9 + $0x380] sm:$0xff]
    %v3284 = vld [vmem:[#allocation9 + $0x388] sm:$0xff]
    %v3285 = vld [vmem:[#allocation9 + $0x390] sm:$0xff]
    %v3286 = vld [vmem:[#allocation9 + $0x398] sm:$0xff]
    %v3287 = vld [vmem:[#allocation9 + $0x3a0] sm:$0xff]
    %v3288 = vld [vmem:[#allocation9 + $0x3a8] sm:$0xff]
    %v3289 = vld [vmem:[#allocation9 + $0x3b0] sm:$0xff]
    %v3290 = vld [vmem:[#allocation9 + $0x3b8] sm:$0xff]
    %v3291 = vld [vmem:[#allocation9 + $0x3c0] sm:$0xff]
    %v3292 = vld [vmem:[#allocation9 + $0x3c8] sm:$0xff]
    %v3293 = vld [vmem:[#allocation9 + $0x3d0] sm:$0xff]
    %v3294 = vld [vmem:[#allocation9 + $0x3d8] sm:$0xff]
    %v3295 = vld [vmem:[#allocation9 + $0x3e0] sm:$0xff]
    %v3296 = vld [vmem:[#allocation9 + $0x3e8] sm:$0xff]
    %v3297 = vld [vmem:[#allocation9 + $0x3f0] sm:$0xff]
    %v3298 = vld [vmem:[#allocation9 + $0x3f8] sm:$0xff]
    %v3299 = vld [vmem:[%s7 + $0xa] sm:$0xff]
    %v3301 = vperm.slane %v3299, 0
    %v3302 = vperm.slane %v3299, 1
    %v3303 = vperm.slane %v3299, 2
    %v3304 = vperm.slane %v3299, 3
    %v3305 = vperm.slane %v3299, 4
    %v3306 = vperm.slane %v3299, 5
    %v3307 = vperm.slane %v3299, 6
    %v3308 = vperm.slane %v3299, 7
    %v3445 = vunpack.c.l.b16 %v3171
    %v3446 = vunpack.c.h.b16 %v3171
    %v3447 = vunpack.c.l.b16 %v3172
    %v3448 = vunpack.c.h.b16 %v3172
    %v3449 = vunpack.c.l.b16 %v3173
    %v3450 = vunpack.c.h.b16 %v3173
    %v3451 = vunpack.c.l.b16 %v3174
    %v3452 = vunpack.c.h.b16 %v3174
    %v3453 = vunpack.c.l.b16 %v3175
    %v3454 = vunpack.c.h.b16 %v3175
    %v3455 = vunpack.c.l.b16 %v3176
    %v3456 = vunpack.c.h.b16 %v3176
    %v3457 = vunpack.c.l.b16 %v3177
    %v3458 = vunpack.c.h.b16 %v3177
    %v3459 = vunpack.c.l.b16 %v3178
    %v3460 = vunpack.c.h.b16 %v3178
    %v3461 = vunpack.c.l.b16 %v3179
    %v3462 = vunpack.c.h.b16 %v3179
    %v3463 = vunpack.c.l.b16 %v3180
    %v3464 = vunpack.c.h.b16 %v3180
    %v3465 = vunpack.c.l.b16 %v3181
    %v3466 = vunpack.c.h.b16 %v3181
    %v3467 = vunpack.c.l.b16 %v3182
    %v3468 = vunpack.c.h.b16 %v3182
    %v3469 = vunpack.c.l.b16 %v3183
    %v3470 = vunpack.c.h.b16 %v3183
    %v3471 = vunpack.c.l.b16 %v3184
    %v3472 = vunpack.c.h.b16 %v3184
    %v3473 = vunpack.c.l.b16 %v3185
    %v3474 = vunpack.c.h.b16 %v3185
    %v3475 = vunpack.c.l.b16 %v3186
    %v3476 = vunpack.c.h.b16 %v3186
    %v3477 = vunpack.c.l.b16 %v3187
    %v3478 = vunpack.c.h.b16 %v3187
    %v3479 = vunpack.c.l.b16 %v3188
    %v3480 = vunpack.c.h.b16 %v3188
    %v3481 = vunpack.c.l.b16 %v3189
    %v3482 = vunpack.c.h.b16 %v3189
    %v3483 = vunpack.c.l.b16 %v3190
    %v3484 = vunpack.c.h.b16 %v3190
    %v3485 = vunpack.c.l.b16 %v3191
    %v3486 = vunpack.c.h.b16 %v3191
    %v3487 = vunpack.c.l.b16 %v3192
    %v3488 = vunpack.c.h.b16 %v3192
    %v3489 = vunpack.c.l.b16 %v3193
    %v3490 = vunpack.c.h.b16 %v3193
    %v3491 = vunpack.c.l.b16 %v3194
    %v3492 = vunpack.c.h.b16 %v3194
    %v3493 = vunpack.c.l.b16 %v3195
    %v3494 = vunpack.c.h.b16 %v3195
    %v3495 = vunpack.c.l.b16 %v3196
    %v3496 = vunpack.c.h.b16 %v3196
    %v3497 = vunpack.c.l.b16 %v3197
    %v3498 = vunpack.c.h.b16 %v3197
    %v3499 = vunpack.c.l.b16 %v3198
    %v3500 = vunpack.c.h.b16 %v3198
    %v3501 = vunpack.c.l.b16 %v3199
    %v3502 = vunpack.c.h.b16 %v3199
    %v3503 = vunpack.c.l.b16 %v3200
    %v3504 = vunpack.c.h.b16 %v3200
    %v3505 = vunpack.c.l.b16 %v3201
    %v3506 = vunpack.c.h.b16 %v3201
    %v3507 = vunpack.c.l.b16 %v3202
    %v3508 = vunpack.c.h.b16 %v3202
    %v3509 = vunpack.c.l.b16 %v3203
    %v3510 = vunpack.c.h.b16 %v3203
    %v3511 = vunpack.c.l.b16 %v3204
    %v3512 = vunpack.c.h.b16 %v3204
    %v3513 = vunpack.c.l.b16 %v3205
    %v3514 = vunpack.c.h.b16 %v3205
    %v3515 = vunpack.c.l.b16 %v3206
    %v3516 = vunpack.c.h.b16 %v3206
    %v3517 = vunpack.c.l.b16 %v3207
    %v3518 = vunpack.c.h.b16 %v3207
    %v3519 = vunpack.c.l.b16 %v3208
    %v3520 = vunpack.c.h.b16 %v3208
    %v3521 = vunpack.c.l.b16 %v3209
    %v3522 = vunpack.c.h.b16 %v3209
    %v3523 = vunpack.c.l.b16 %v3210
    %v3524 = vunpack.c.h.b16 %v3210
    %v3525 = vunpack.c.l.b16 %v3211
    %v3526 = vunpack.c.h.b16 %v3211
    %v3527 = vunpack.c.l.b16 %v3212
    %v3528 = vunpack.c.h.b16 %v3212
    %v3529 = vunpack.c.l.b16 %v3213
    %v3530 = vunpack.c.h.b16 %v3213
    %v3531 = vunpack.c.l.b16 %v3214
    %v3532 = vunpack.c.h.b16 %v3214
    %v3533 = vunpack.c.l.b16 %v3215
    %v3534 = vunpack.c.h.b16 %v3215
    %v3535 = vunpack.c.l.b16 %v3216
    %v3536 = vunpack.c.h.b16 %v3216
    %v3537 = vunpack.c.l.b16 %v3217
    %v3538 = vunpack.c.h.b16 %v3217
    %v3539 = vunpack.c.l.b16 %v3218
    %v3540 = vunpack.c.h.b16 %v3218
    %v3541 = vunpack.c.l.b16 %v3219
    %v3542 = vunpack.c.h.b16 %v3219
    %v3543 = vunpack.c.l.b16 %v3220
    %v3544 = vunpack.c.h.b16 %v3220
    %v3545 = vunpack.c.l.b16 %v3221
    %v3546 = vunpack.c.h.b16 %v3221
    %v3547 = vunpack.c.l.b16 %v3222
    %v3548 = vunpack.c.h.b16 %v3222
    %v3549 = vunpack.c.l.b16 %v3223
    %v3550 = vunpack.c.h.b16 %v3223
    %v3551 = vunpack.c.l.b16 %v3224
    %v3552 = vunpack.c.h.b16 %v3224
    %v3553 = vunpack.c.l.b16 %v3225
    %v3554 = vunpack.c.h.b16 %v3225
    %v3555 = vunpack.c.l.b16 %v3226
    %v3556 = vunpack.c.h.b16 %v3226
    %v3557 = vunpack.c.l.b16 %v3227
    %v3558 = vunpack.c.h.b16 %v3227
    %v3559 = vunpack.c.l.b16 %v3228
    %v3560 = vunpack.c.h.b16 %v3228
    %v3561 = vunpack.c.l.b16 %v3229
    %v3562 = vunpack.c.h.b16 %v3229
    %v3563 = vunpack.c.l.b16 %v3230
    %v3564 = vunpack.c.h.b16 %v3230
    %v3565 = vunpack.c.l.b16 %v3231
    %v3566 = vunpack.c.h.b16 %v3231
    %v3567 = vunpack.c.l.b16 %v3232
    %v3568 = vunpack.c.h.b16 %v3232
    %v3569 = vunpack.c.l.b16 %v3233
    %v3570 = vunpack.c.h.b16 %v3233
    %v3571 = vunpack.c.l.b16 %v3234
    %v3572 = vunpack.c.h.b16 %v3234
    %v3573 = vunpack.c.l.b16 %v3235
    %v3574 = vunpack.c.h.b16 %v3235
    %v3575 = vunpack.c.l.b16 %v3236
    %v3576 = vunpack.c.h.b16 %v3236
    %v3577 = vunpack.c.l.b16 %v3237
    %v3578 = vunpack.c.h.b16 %v3237
    %v3579 = vunpack.c.l.b16 %v3238
    %v3580 = vunpack.c.h.b16 %v3238
    %v3581 = vunpack.c.l.b16 %v3239
    %v3582 = vunpack.c.h.b16 %v3239
    %v3583 = vunpack.c.l.b16 %v3240
    %v3584 = vunpack.c.h.b16 %v3240
    %v3585 = vunpack.c.l.b16 %v3241
    %v3586 = vunpack.c.h.b16 %v3241
    %v3587 = vunpack.c.l.b16 %v3242
    %v3588 = vunpack.c.h.b16 %v3242
    %v3589 = vunpack.c.l.b16 %v3243
    %v3590 = vunpack.c.h.b16 %v3243
    %v3591 = vunpack.c.l.b16 %v3244
    %v3592 = vunpack.c.h.b16 %v3244
    %v3593 = vunpack.c.l.b16 %v3245
    %v3594 = vunpack.c.h.b16 %v3245
    %v3595 = vunpack.c.l.b16 %v3246
    %v3596 = vunpack.c.h.b16 %v3246
    %v3597 = vunpack.c.l.b16 %v3247
    %v3598 = vunpack.c.h.b16 %v3247
    %v3599 = vunpack.c.l.b16 %v3248
    %v3600 = vunpack.c.h.b16 %v3248
    %v3601 = vunpack.c.l.b16 %v3249
    %v3602 = vunpack.c.h.b16 %v3249
    %v3603 = vunpack.c.l.b16 %v3250
    %v3604 = vunpack.c.h.b16 %v3250
    %v3605 = vunpack.c.l.b16 %v3251
    %v3606 = vunpack.c.h.b16 %v3251
    %v3607 = vunpack.c.l.b16 %v3252
    %v3608 = vunpack.c.h.b16 %v3252
    %v3609 = vunpack.c.l.b16 %v3253
    %v3610 = vunpack.c.h.b16 %v3253
    %v3611 = vunpack.c.l.b16 %v3254
    %v3612 = vunpack.c.h.b16 %v3254
    %v3613 = vunpack.c.l.b16 %v3255
    %v3614 = vunpack.c.h.b16 %v3255
    %v3615 = vunpack.c.l.b16 %v3256
    %v3616 = vunpack.c.h.b16 %v3256
    %v3617 = vunpack.c.l.b16 %v3257
    %v3618 = vunpack.c.h.b16 %v3257
    %v3619 = vunpack.c.l.b16 %v3258
    %v3620 = vunpack.c.h.b16 %v3258
    %v3621 = vunpack.c.l.b16 %v3259
    %v3622 = vunpack.c.h.b16 %v3259
    %v3623 = vunpack.c.l.b16 %v3260
    %v3624 = vunpack.c.h.b16 %v3260
    %v3625 = vunpack.c.l.b16 %v3261
    %v3626 = vunpack.c.h.b16 %v3261
    %v3627 = vunpack.c.l.b16 %v3262
    %v3628 = vunpack.c.h.b16 %v3262
    %v3629 = vunpack.c.l.b16 %v3263
    %v3630 = vunpack.c.h.b16 %v3263
    %v3631 = vunpack.c.l.b16 %v3264
    %v3632 = vunpack.c.h.b16 %v3264
    %v3633 = vunpack.c.l.b16 %v3265
    %v3634 = vunpack.c.h.b16 %v3265
    %v3635 = vunpack.c.l.b16 %v3266
    %v3636 = vunpack.c.h.b16 %v3266
    %v3637 = vunpack.c.l.b16 %v3267
    %v3638 = vunpack.c.h.b16 %v3267
    %v3639 = vunpack.c.l.b16 %v3268
    %v3640 = vunpack.c.h.b16 %v3268
    %v3641 = vunpack.c.l.b16 %v3269
    %v3642 = vunpack.c.h.b16 %v3269
    %v3643 = vunpack.c.l.b16 %v3270
    %v3644 = vunpack.c.h.b16 %v3270
    %v3645 = vunpack.c.l.b16 %v3271
    %v3646 = vunpack.c.h.b16 %v3271
    %v3647 = vunpack.c.l.b16 %v3272
    %v3648 = vunpack.c.h.b16 %v3272
    %v3649 = vunpack.c.l.b16 %v3273
    %v3650 = vunpack.c.h.b16 %v3273
    %v3651 = vunpack.c.l.b16 %v3274
    %v3652 = vunpack.c.h.b16 %v3274
    %v3653 = vunpack.c.l.b16 %v3275
    %v3654 = vunpack.c.h.b16 %v3275
    %v3655 = vunpack.c.l.b16 %v3276
    %v3656 = vunpack.c.h.b16 %v3276
    %v3657 = vunpack.c.l.b16 %v3277
    %v3658 = vunpack.c.h.b16 %v3277
    %v3659 = vunpack.c.l.b16 %v3278
    %v3660 = vunpack.c.h.b16 %v3278
    %v3661 = vunpack.c.l.b16 %v3279
    %v3662 = vunpack.c.h.b16 %v3279
    %v3663 = vunpack.c.l.b16 %v3280
    %v3664 = vunpack.c.h.b16 %v3280
    %v3665 = vunpack.c.l.b16 %v3281
    %v3666 = vunpack.c.h.b16 %v3281
    %v3667 = vunpack.c.l.b16 %v3282
    %v3668 = vunpack.c.h.b16 %v3282
    %v3669 = vunpack.c.l.b16 %v3283
    %v3670 = vunpack.c.h.b16 %v3283
    %v3671 = vunpack.c.l.b16 %v3284
    %v3672 = vunpack.c.h.b16 %v3284
    %v3673 = vunpack.c.l.b16 %v3285
    %v3674 = vunpack.c.h.b16 %v3285
    %v3675 = vunpack.c.l.b16 %v3286
    %v3676 = vunpack.c.h.b16 %v3286
    %v3677 = vunpack.c.l.b16 %v3287
    %v3678 = vunpack.c.h.b16 %v3287
    %v3679 = vunpack.c.l.b16 %v3288
    %v3680 = vunpack.c.h.b16 %v3288
    %v3681 = vunpack.c.l.b16 %v3289
    %v3682 = vunpack.c.h.b16 %v3289
    %v3683 = vunpack.c.l.b16 %v3290
    %v3684 = vunpack.c.h.b16 %v3290
    %v3685 = vunpack.c.l.b16 %v3291
    %v3686 = vunpack.c.h.b16 %v3291
    %v3687 = vunpack.c.l.b16 %v3292
    %v3688 = vunpack.c.h.b16 %v3292
    %v3689 = vunpack.c.l.b16 %v3293
    %v3690 = vunpack.c.h.b16 %v3293
    %v3691 = vunpack.c.l.b16 %v3294
    %v3692 = vunpack.c.h.b16 %v3294
    %v3693 = vunpack.c.l.b16 %v3295
    %v3694 = vunpack.c.h.b16 %v3295
    %v3695 = vunpack.c.l.b16 %v3296
    %v3696 = vunpack.c.h.b16 %v3296
    %v3697 = vunpack.c.l.b16 %v3297
    %v3698 = vunpack.c.h.b16 %v3297
    %v3699 = vunpack.c.l.b16 %v3298
    %v3700 = vunpack.c.h.b16 %v3298
    %v3701 = vpack.c.b16 %v3453, %v3445
    %v3702 = vpack.c.b16 %v3454, %v3446
    %v3703 = vpack.c.b16 %v3455, %v3447
    %v3704 = vpack.c.b16 %v3456, %v3448
    %v3705 = vpack.c.b16 %v3457, %v3449
    %v3706 = vpack.c.b16 %v3458, %v3450
    %v3707 = vpack.c.b16 %v3459, %v3451
    %v3708 = vpack.c.b16 %v3460, %v3452
    %v3709 = vpack.c.b16 %v3469, %v3461
    %v3710 = vpack.c.b16 %v3470, %v3462
    %v3711 = vpack.c.b16 %v3471, %v3463
    %v3712 = vpack.c.b16 %v3472, %v3464
    %v3713 = vpack.c.b16 %v3473, %v3465
    %v3714 = vpack.c.b16 %v3474, %v3466
    %v3715 = vpack.c.b16 %v3475, %v3467
    %v3716 = vpack.c.b16 %v3476, %v3468
    %v3717 = vpack.c.b16 %v3485, %v3477
    %v3718 = vpack.c.b16 %v3486, %v3478
    %v3719 = vpack.c.b16 %v3487, %v3479
    %v3720 = vpack.c.b16 %v3488, %v3480
    %v3721 = vpack.c.b16 %v3489, %v3481
    %v3722 = vpack.c.b16 %v3490, %v3482
    %v3723 = vpack.c.b16 %v3491, %v3483
    %v3724 = vpack.c.b16 %v3492, %v3484
    %v3725 = vpack.c.b16 %v3501, %v3493
    %v3726 = vpack.c.b16 %v3502, %v3494
    %v3727 = vpack.c.b16 %v3503, %v3495
    %v3728 = vpack.c.b16 %v3504, %v3496
    %v3729 = vpack.c.b16 %v3505, %v3497
    %v3730 = vpack.c.b16 %v3506, %v3498
    %v3731 = vpack.c.b16 %v3507, %v3499
    %v3732 = vpack.c.b16 %v3508, %v3500
    %v3733 = vpack.c.b16 %v3517, %v3509
    %v3734 = vpack.c.b16 %v3518, %v3510
    %v3735 = vpack.c.b16 %v3519, %v3511
    %v3736 = vpack.c.b16 %v3520, %v3512
    %v3737 = vpack.c.b16 %v3521, %v3513
    %v3738 = vpack.c.b16 %v3522, %v3514
    %v3739 = vpack.c.b16 %v3523, %v3515
    %v3740 = vpack.c.b16 %v3524, %v3516
    %v3741 = vpack.c.b16 %v3533, %v3525
    %v3742 = vpack.c.b16 %v3534, %v3526
    %v3743 = vpack.c.b16 %v3535, %v3527
    %v3744 = vpack.c.b16 %v3536, %v3528
    %v3745 = vpack.c.b16 %v3537, %v3529
    %v3746 = vpack.c.b16 %v3538, %v3530
    %v3747 = vpack.c.b16 %v3539, %v3531
    %v3748 = vpack.c.b16 %v3540, %v3532
    %v3749 = vpack.c.b16 %v3549, %v3541
    %v3750 = vpack.c.b16 %v3550, %v3542
    %v3751 = vpack.c.b16 %v3551, %v3543
    %v3752 = vpack.c.b16 %v3552, %v3544
    %v3753 = vpack.c.b16 %v3553, %v3545
    %v3754 = vpack.c.b16 %v3554, %v3546
    %v3755 = vpack.c.b16 %v3555, %v3547
    %v3756 = vpack.c.b16 %v3556, %v3548
    %v3757 = vpack.c.b16 %v3565, %v3557
    %v3758 = vpack.c.b16 %v3566, %v3558
    %v3759 = vpack.c.b16 %v3567, %v3559
    %v3760 = vpack.c.b16 %v3568, %v3560
    %v3761 = vpack.c.b16 %v3569, %v3561
    %v3762 = vpack.c.b16 %v3570, %v3562
    %v3763 = vpack.c.b16 %v3571, %v3563
    %v3764 = vpack.c.b16 %v3572, %v3564
    %v3765 = vpack.c.b16 %v3581, %v3573
    %v3766 = vpack.c.b16 %v3582, %v3574
    %v3767 = vpack.c.b16 %v3583, %v3575
    %v3768 = vpack.c.b16 %v3584, %v3576
    %v3769 = vpack.c.b16 %v3585, %v3577
    %v3770 = vpack.c.b16 %v3586, %v3578
    %v3771 = vpack.c.b16 %v3587, %v3579
    %v3772 = vpack.c.b16 %v3588, %v3580
    %v3773 = vpack.c.b16 %v3597, %v3589
    %v3774 = vpack.c.b16 %v3598, %v3590
    %v3775 = vpack.c.b16 %v3599, %v3591
    %v3776 = vpack.c.b16 %v3600, %v3592
    %v3777 = vpack.c.b16 %v3601, %v3593
    %v3778 = vpack.c.b16 %v3602, %v3594
    %v3779 = vpack.c.b16 %v3603, %v3595
    %v3780 = vpack.c.b16 %v3604, %v3596
    %v3781 = vpack.c.b16 %v3613, %v3605
    %v3782 = vpack.c.b16 %v3614, %v3606
    %v3783 = vpack.c.b16 %v3615, %v3607
    %v3784 = vpack.c.b16 %v3616, %v3608
    %v3785 = vpack.c.b16 %v3617, %v3609
    %v3786 = vpack.c.b16 %v3618, %v3610
    %v3787 = vpack.c.b16 %v3619, %v3611
    %v3788 = vpack.c.b16 %v3620, %v3612
    %v3789 = vpack.c.b16 %v3629, %v3621
    %v3790 = vpack.c.b16 %v3630, %v3622
    %v3791 = vpack.c.b16 %v3631, %v3623
    %v3792 = vpack.c.b16 %v3632, %v3624
    %v3793 = vpack.c.b16 %v3633, %v3625
    %v3794 = vpack.c.b16 %v3634, %v3626
    %v3795 = vpack.c.b16 %v3635, %v3627
    %v3796 = vpack.c.b16 %v3636, %v3628
    %v3797 = vpack.c.b16 %v3645, %v3637
    %v3798 = vpack.c.b16 %v3646, %v3638
    %v3799 = vpack.c.b16 %v3647, %v3639
    %v3800 = vpack.c.b16 %v3648, %v3640
    %v3801 = vpack.c.b16 %v3649, %v3641
    %v3802 = vpack.c.b16 %v3650, %v3642
    %v3803 = vpack.c.b16 %v3651, %v3643
    %v3804 = vpack.c.b16 %v3652, %v3644
    %v3805 = vpack.c.b16 %v3661, %v3653
    %v3806 = vpack.c.b16 %v3662, %v3654
    %v3807 = vpack.c.b16 %v3663, %v3655
    %v3808 = vpack.c.b16 %v3664, %v3656
    %v3809 = vpack.c.b16 %v3665, %v3657
    %v3810 = vpack.c.b16 %v3666, %v3658
    %v3811 = vpack.c.b16 %v3667, %v3659
    %v3812 = vpack.c.b16 %v3668, %v3660
    %v3813 = vpack.c.b16 %v3677, %v3669
    %v3814 = vpack.c.b16 %v3678, %v3670
    %v3815 = vpack.c.b16 %v3679, %v3671
    %v3816 = vpack.c.b16 %v3680, %v3672
    %v3817 = vpack.c.b16 %v3681, %v3673
    %v3818 = vpack.c.b16 %v3682, %v3674
    %v3819 = vpack.c.b16 %v3683, %v3675
    %v3820 = vpack.c.b16 %v3684, %v3676
    %v3821 = vpack.c.b16 %v3693, %v3685
    %v3822 = vpack.c.b16 %v3694, %v3686
    %v3823 = vpack.c.b16 %v3695, %v3687
    %v3824 = vpack.c.b16 %v3696, %v3688
    %v3825 = vpack.c.b16 %v3697, %v3689
    %v3826 = vpack.c.b16 %v3698, %v3690
    %v3827 = vpack.c.b16 %v3699, %v3691
    %v3828 = vpack.c.b16 %v3700, %v3692
    %3957 = vmatpush.bf16.msra.mxu0 %v3757
    %3958 = vmatpush.bf16.msra.mxu0 %v3749
    %3959 = vmatpush.bf16.msra.mxu0 %v3741
    %3960 = vmatpush.bf16.msra.mxu0 %v3733
    %3961 = vmatpush.bf16.msra.mxu0 %v3725
    %3962 = vmatpush.bf16.msra.mxu0 %v3717
    %3963 = vmatpush.bf16.msra.mxu0 %v3709
    %3964 = vmatpush.bf16.msra.mxu0 %v3701
    %3965 = vmatmul.bf16.gmra.mxu0 %v3169
    %v3966 = vpop.f32.mrf.mxu0
    %v3967 = vadd.f32 %v3301, %v3966
    %v3968 = vpop.f32.mrf.mxu0
    %3969 = vdwg.mxu0
    %3970 = vmatpush.bf16.msra.mxu0 %v3821
    %3971 = vmatpush.bf16.msra.mxu0 %v3813
    %3972 = vmatpush.bf16.msra.mxu0 %v3805
    %3973 = vmatpush.bf16.msra.mxu0 %v3797
    %3974 = vmatpush.bf16.msra.mxu0 %v3789
    %3975 = vmatpush.bf16.msra.mxu0 %v3781
    %3976 = vmatpush.bf16.msra.mxu0 %v3773
    %3977 = vmatpush.bf16.msra.mxu0 %v3765
    %3978 = vmatmul.bf16.gmra.mxu0 %v3170
    %v3979 = vpop.f32.mrf.mxu0
    %v3980 = vadd.f32 %v3967, %v3979
    %v3981 = vpop.f32.mrf.mxu0
    %3982 = vdwg.mxu0
    %3983 = vmatpush.bf16.msra.mxu0 %v3758
    %3984 = vmatpush.bf16.msra.mxu0 %v3750
    %3985 = vmatpush.bf16.msra.mxu0 %v3742
    %3986 = vmatpush.bf16.msra.mxu0 %v3734
    %3987 = vmatpush.bf16.msra.mxu0 %v3726
    %3988 = vmatpush.bf16.msra.mxu0 %v3718
    %3989 = vmatpush.bf16.msra.mxu0 %v3710
    %3990 = vmatpush.bf16.msra.mxu0 %v3702
    %3991 = vmatmul.bf16.gmra.mxu0 %v3169
    %v3992 = vpop.f32.mrf.mxu0
    %v3993 = vadd.f32 %v3302, %v3992
    %v3994 = vpop.f32.mrf.mxu0
    %3995 = vdwg.mxu0
    %3996 = vmatpush.bf16.msra.mxu0 %v3822
    %3997 = vmatpush.bf16.msra.mxu0 %v3814
    %3998 = vmatpush.bf16.msra.mxu0 %v3806
    %3999 = vmatpush.bf16.msra.mxu0 %v3798
    %4000 = vmatpush.bf16.msra.mxu0 %v3790
    %4001 = vmatpush.bf16.msra.mxu0 %v3782
    %4002 = vmatpush.bf16.msra.mxu0 %v3774
    %4003 = vmatpush.bf16.msra.mxu0 %v3766
    %4004 = vmatmul.bf16.gmra.mxu0 %v3170
    %v4005 = vpop.f32.mrf.mxu0
    %v4006 = vadd.f32 %v3993, %v4005
    %v4007 = vpop.f32.mrf.mxu0
    %4008 = vdwg.mxu0
    %4009 = vmatpush.bf16.msra.mxu0 %v3759
    %4010 = vmatpush.bf16.msra.mxu0 %v3751
    %4011 = vmatpush.bf16.msra.mxu0 %v3743
    %4012 = vmatpush.bf16.msra.mxu0 %v3735
    %4013 = vmatpush.bf16.msra.mxu0 %v3727
    %4014 = vmatpush.bf16.msra.mxu0 %v3719
    %4015 = vmatpush.bf16.msra.mxu0 %v3711
    %4016 = vmatpush.bf16.msra.mxu0 %v3703
    %4017 = vmatmul.bf16.gmra.mxu0 %v3169
    %v4018 = vpop.f32.mrf.mxu0
    %v4019 = vadd.f32 %v3303, %v4018
    %v4020 = vpop.f32.mrf.mxu0
    %4021 = vdwg.mxu0
    %4022 = vmatpush.bf16.msra.mxu0 %v3823
    %4023 = vmatpush.bf16.msra.mxu0 %v3815
    %4024 = vmatpush.bf16.msra.mxu0 %v3807
    %4025 = vmatpush.bf16.msra.mxu0 %v3799
    %4026 = vmatpush.bf16.msra.mxu0 %v3791
    %4027 = vmatpush.bf16.msra.mxu0 %v3783
    %4028 = vmatpush.bf16.msra.mxu0 %v3775
    %4029 = vmatpush.bf16.msra.mxu0 %v3767
    %4030 = vmatmul.bf16.gmra.mxu0 %v3170
    %v4031 = vpop.f32.mrf.mxu0
    %v4032 = vadd.f32 %v4019, %v4031
    %v4033 = vpop.f32.mrf.mxu0
    %4034 = vdwg.mxu0
    %4035 = vmatpush.bf16.msra.mxu0 %v3760
    %4036 = vmatpush.bf16.msra.mxu0 %v3752
    %4037 = vmatpush.bf16.msra.mxu0 %v3744
    %4038 = vmatpush.bf16.msra.mxu0 %v3736
    %4039 = vmatpush.bf16.msra.mxu0 %v3728
    %4040 = vmatpush.bf16.msra.mxu0 %v3720
    %4041 = vmatpush.bf16.msra.mxu0 %v3712
    %4042 = vmatpush.bf16.msra.mxu0 %v3704
    %4043 = vmatmul.bf16.gmra.mxu0 %v3169
    %v4044 = vpop.f32.mrf.mxu0
    %v4045 = vadd.f32 %v3304, %v4044
    %v4046 = vpop.f32.mrf.mxu0
    %4047 = vdwg.mxu0
    %4048 = vmatpush.bf16.msra.mxu0 %v3824
    %4049 = vmatpush.bf16.msra.mxu0 %v3816
    %4050 = vmatpush.bf16.msra.mxu0 %v3808
    %4051 = vmatpush.bf16.msra.mxu0 %v3800
    %4052 = vmatpush.bf16.msra.mxu0 %v3792
    %4053 = vmatpush.bf16.msra.mxu0 %v3784
    %4054 = vmatpush.bf16.msra.mxu0 %v3776
    %4055 = vmatpush.bf16.msra.mxu0 %v3768
    %4056 = vmatmul.bf16.gmra.mxu0 %v3170
    %v4057 = vpop.f32.mrf.mxu0
    %v4058 = vadd.f32 %v4045, %v4057
    %v4059 = vpop.f32.mrf.mxu0
    %4060 = vdwg.mxu0
    %4061 = vmatpush.bf16.msra.mxu0 %v3761
    %4062 = vmatpush.bf16.msra.mxu0 %v3753
    %4063 = vmatpush.bf16.msra.mxu0 %v3745
    %4064 = vmatpush.bf16.msra.mxu0 %v3737
    %4065 = vmatpush.bf16.msra.mxu0 %v3729
    %4066 = vmatpush.bf16.msra.mxu0 %v3721
    %4067 = vmatpush.bf16.msra.mxu0 %v3713
    %4068 = vmatpush.bf16.msra.mxu0 %v3705
    %4069 = vmatmul.bf16.gmra.mxu0 %v3169
    %v4070 = vpop.f32.mrf.mxu0
    %v4071 = vadd.f32 %v3305, %v4070
    %v4072 = vpop.f32.mrf.mxu0
    %4073 = vdwg.mxu0
    %4074 = vmatpush.bf16.msra.mxu0 %v3825
    %4075 = vmatpush.bf16.msra.mxu0 %v3817
    %4076 = vmatpush.bf16.msra.mxu0 %v3809
    %4077 = vmatpush.bf16.msra.mxu0 %v3801
    %4078 = vmatpush.bf16.msra.mxu0 %v3793
    %4079 = vmatpush.bf16.msra.mxu0 %v3785
    %4080 = vmatpush.bf16.msra.mxu0 %v3777
    %4081 = vmatpush.bf16.msra.mxu0 %v3769
    %4082 = vmatmul.bf16.gmra.mxu0 %v3170
    %v4083 = vpop.f32.mrf.mxu0
    %v4084 = vadd.f32 %v4071, %v4083
    %v4085 = vpop.f32.mrf.mxu0
    %4086 = vdwg.mxu0
    %4087 = vmatpush.bf16.msra.mxu0 %v3762
    %4088 = vmatpush.bf16.msra.mxu0 %v3754
    %4089 = vmatpush.bf16.msra.mxu0 %v3746
    %4090 = vmatpush.bf16.msra.mxu0 %v3738
    %4091 = vmatpush.bf16.msra.mxu0 %v3730
    %4092 = vmatpush.bf16.msra.mxu0 %v3722
    %4093 = vmatpush.bf16.msra.mxu0 %v3714
    %4094 = vmatpush.bf16.msra.mxu0 %v3706
    %4095 = vmatmul.bf16.gmra.mxu0 %v3169
    %v4096 = vpop.f32.mrf.mxu0
    %v4097 = vadd.f32 %v3306, %v4096
    %v4098 = vpop.f32.mrf.mxu0
    %4099 = vdwg.mxu0
    %4100 = vmatpush.bf16.msra.mxu0 %v3826
    %4101 = vmatpush.bf16.msra.mxu0 %v3818
    %4102 = vmatpush.bf16.msra.mxu0 %v3810
    %4103 = vmatpush.bf16.msra.mxu0 %v3802
    %4104 = vmatpush.bf16.msra.mxu0 %v3794
    %4105 = vmatpush.bf16.msra.mxu0 %v3786
    %4106 = vmatpush.bf16.msra.mxu0 %v3778
    %4107 = vmatpush.bf16.msra.mxu0 %v3770
    %4108 = vmatmul.bf16.gmra.mxu0 %v3170
    %v4109 = vpop.f32.mrf.mxu0
    %v4110 = vadd.f32 %v4097, %v4109
    %v4111 = vpop.f32.mrf.mxu0
    %4112 = vdwg.mxu0
    %4113 = vmatpush.bf16.msra.mxu0 %v3763
    %4114 = vmatpush.bf16.msra.mxu0 %v3755
    %4115 = vmatpush.bf16.msra.mxu0 %v3747
    %4116 = vmatpush.bf16.msra.mxu0 %v3739
    %4117 = vmatpush.bf16.msra.mxu0 %v3731
    %4118 = vmatpush.bf16.msra.mxu0 %v3723
    %4119 = vmatpush.bf16.msra.mxu0 %v3715
    %4120 = vmatpush.bf16.msra.mxu0 %v3707
    %4121 = vmatmul.bf16.gmra.mxu0 %v3169
    %v4122 = vpop.f32.mrf.mxu0
    %v4123 = vadd.f32 %v3307, %v4122
    %v4124 = vpop.f32.mrf.mxu0
    %4125 = vdwg.mxu0
    %4126 = vmatpush.bf16.msra.mxu0 %v3827
    %4127 = vmatpush.bf16.msra.mxu0 %v3819
    %4128 = vmatpush.bf16.msra.mxu0 %v3811
    %4129 = vmatpush.bf16.msra.mxu0 %v3803
    %4130 = vmatpush.bf16.msra.mxu0 %v3795
    %4131 = vmatpush.bf16.msra.mxu0 %v3787
    %4132 = vmatpush.bf16.msra.mxu0 %v3779
    %4133 = vmatpush.bf16.msra.mxu0 %v3771
    %4134 = vmatmul.bf16.gmra.mxu0 %v3170
    %v4135 = vpop.f32.mrf.mxu0
    %v4136 = vadd.f32 %v4123, %v4135
    %v4137 = vpop.f32.mrf.mxu0
    %4138 = vdwg.mxu0
    %4139 = vmatpush.bf16.msra.mxu0 %v3764
    %4140 = vmatpush.bf16.msra.mxu0 %v3756
    %4141 = vmatpush.bf16.msra.mxu0 %v3748
    %4142 = vmatpush.bf16.msra.mxu0 %v3740
    %4143 = vmatpush.bf16.msra.mxu0 %v3732
    %4144 = vmatpush.bf16.msra.mxu0 %v3724
    %4145 = vmatpush.bf16.msra.mxu0 %v3716
    %4146 = vmatpush.bf16.msra.mxu0 %v3708
    %4147 = vmatmul.bf16.gmra.mxu0 %v3169
    %v4148 = vpop.f32.mrf.mxu0
    %v4149 = vadd.f32 %v3308, %v4148
    %v4150 = vpop.f32.mrf.mxu0
    %4151 = vdwg.mxu0
    %4152 = vmatpush.bf16.msra.mxu0 %v3828
    %4153 = vmatpush.bf16.msra.mxu0 %v3820
    %4154 = vmatpush.bf16.msra.mxu0 %v3812
    %4155 = vmatpush.bf16.msra.mxu0 %v3804
    %4156 = vmatpush.bf16.msra.mxu0 %v3796
    %4157 = vmatpush.bf16.msra.mxu0 %v3788
    %4158 = vmatpush.bf16.msra.mxu0 %v3780
    %4159 = vmatpush.bf16.msra.mxu0 %v3772
    %4160 = vmatmul.bf16.gmra.mxu0 %v3170
    %v4161 = vpop.f32.mrf.mxu0
    %v4162 = vadd.f32 %v4149, %v4161
    %v4163 = vpop.f32.mrf.mxu0
    %4164 = vdwg.mxu0
    %v4165 = vtanh.pop %v3980
    %v4166 = vtanh.pop %v4006
    %v4167 = vtanh.pop %v4032
    %v4168 = vtanh.pop %v4058
    %v4169 = vtanh.pop %v4084
    %v4170 = vtanh.pop %v4110
    %v4171 = vtanh.pop %v4136
    %v4172 = vtanh.pop %v4162
    %v4181 = vrot.slane %v4166, 6
    %v4182 = vrot.slane %v4167, 4
    %v4183 = vrot.slane %v4168, 2
    %v4184 = vrot.slane %v4170, 6
    %v4185 = vrot.slane %v4171, 4
    %v4186 = vrot.slane %v4172, 2
    %vm4187 = vcmask 1041408
    %v4188 = vsel %vm4187, %v4165, %v4181
    %vm4189 = vcmask 1045508
    %v4190 = vsel %vm4189, %v4182, %v4183
    %vm4191 = vcmask 1043456
    %v4192 = vsel %vm4191, %v4188, %v4190
    %v4193 = vsel %vm4187, %v4169, %v4184
    %v4194 = vsel %vm4189, %v4185, %v4186
    %v4195 = vsel %vm4191, %v4193, %v4194
    %4198 = vst [vmem:[%s8] sm:$0xff] %v4192
    %4199 = vst [vmem:[%s8 + $0x8] sm:$0xff] %v4195
    // Predicated region
    $region54: #{autoencoder_forward.1} parent=1 // pred_check
      _
    $region55: #{autoencoder_forward.1} parent=1 // pred_check_branch
      %4201 = sbr.rel (0) target = $region57
    $region56: #{autoencoder_forward.1} parent=1 // pred_region
      _
    $region57: #{autoencoder_forward.1} parent=1 // pred_fallthru
      _
    // Predicated region
    $region58: #{autoencoder_forward.1} parent=1 // pred_check
      _
    $region59: #{autoencoder_forward.1} parent=1 // pred_check_branch
      %4203 = sbr.rel (0) target = $region61
    $region60: #{autoencoder_forward.1} parent=1 // pred_region
      _
    $region61: #{autoencoder_forward.1} parent=1 // pred_fallthru
      _
    %4204 = vsyncpa [#allocation3], 1
    %4205 = vsyncpa [#allocation5], 1
    %4206 = vsyncpa [#allocation8], 1

</llo_original>
